<compile_context>
chip_gen: v5e
topology: v5e:2x2
jax: 0.10.0
libtpu: 0.0.40
codegen_flags: <defaults>
</compile_context>

<pallas_src>
import math

import jax
import jax.numpy as jnp
from jax.experimental import pallas as pl
from jax.experimental.pallas import tpu as pltpu

D_MODEL_ATTR = 32      # self.d_model (only used for the sqrt() input scale)
E = 2                  # token / embedding width implied by the forward pass
NHEAD = 2
HEAD_DIM = E // NHEAD  # = 1
FFN_DIM = 2048         # dim_feedforward
OUT_DIM = 4            # clsdecoder output
LN_EPS = 1e-5          # nn.LayerNorm default
SCALE = math.sqrt(D_MODEL_ATTR)
MAX_ROWS_PER_BLOCK = 256   # cap on batch rows per grid step (bounds (bb,1,FFN) temp)


# ----------------------------------------------------------------------------
# In-kernel helpers (all pure VPU / XLU, no MXU)
# ----------------------------------------------------------------------------
def _fma2(c0, c1, wT, b):
    """Columns (..., 1) x (2, N) weight + bias -> (..., N) via broadcast-FMA."""
    return c0 * wT[0:1, :] + c1 * wT[1:2, :] + b


def _ln2_cols(y0, y1, w, b):
    """LayerNorm over a 2-wide feature axis given as separate (..., 1) columns."""
    mu = 0.5 * (y0 + y1)
    d0 = y0 - mu
    d1 = y1 - mu
    inv = jax.lax.rsqrt(0.5 * (d0 * d0 + d1 * d1) + LN_EPS)
    return d0 * inv * w[:, 0:1] + b[:, 0:1], d1 * inv * w[:, 1:2] + b[:, 1:2]


# ----------------------------------------------------------------------------
# Pallas kernel: CLS-row-only transformer-encoder layer + CLS decoder
# ----------------------------------------------------------------------------
def _encoder_cls_kernel(xT_ref, peT_ref, cls_ref,
                        wqT_ref, bq_ref, wk_ref, bk_ref, wv_ref, bv_ref,
                        woT_ref, bo_ref,
                        ln1w_ref, ln1b_ref,
                        w1T_ref, b1_ref, w2_ref, b2_ref,
                        ln2w_ref, ln2b_ref,
                        dwT_ref, db_ref,
                        out_ref):
    # Real tokens 1..S in transposed (E, S) layout; sqrt(d)-scale + PE fused here.
    tokT = xT_ref[...] * SCALE + peT_ref[...]                            # (bb, E, S)
    # CLS row after positional encoding (cls_token + pe[0]); identical per sample.
    c0 = cls_ref[0:1, 0:1]                                               # (1, 1)
    c1 = cls_ref[0:1, 1:2]                                               # (1, 1)

    # ---------- projections (E = 2 -> VPU broadcast-FMA, no MXU) ----------
    kT = wk_ref[:, 0:1] * tokT[:, 0:1, :] + wk_ref[:, 1:2] * tokT[:, 1:2, :] + bk_ref[...]
    vT = wv_ref[:, 0:1] * tokT[:, 0:1, :] + wv_ref[:, 1:2] * tokT[:, 1:2, :] + bv_ref[...]
    k_cls = wk_ref[:, 0:1] * c0 + wk_ref[:, 1:2] * c1 + bk_ref[...]      # (E, 1)
    v_cls = wv_ref[:, 0:1] * c0 + wv_ref[:, 1:2] * c1 + bv_ref[...]      # (E, 1)
    q_cls = c0 * wqT_ref[0:1, :] + c1 * wqT_ref[1:2, :] + bq_ref[...]    # (1, E)

    # ---------- attention: only the CLS query row (nhead=2, head_dim=1) ----------
    inv_sqrt_hd = 1.0 / math.sqrt(HEAD_DIM)
    head_out = []
    for h in range(NHEAD):                                               # unrolled (2)
        qh = q_cls[0:1, h:h + 1] * inv_sqrt_hd                           # (1, 1)
        s = qh * kT[:, h:h + 1, :]                                       # (bb, 1, S)
        s_cls = qh * k_cls[h:h + 1, 0:1]                                 # (1, 1)
        m = jnp.maximum(jnp.max(s, axis=-1, keepdims=True), s_cls)       # (bb, 1, 1)
        p = jnp.exp(s - m)                                               # (bb, 1, S)
        p_cls = jnp.exp(s_cls - m)                                       # (bb, 1, 1)
        den = jnp.sum(p, axis=-1, keepdims=True) + p_cls
        num = (jnp.sum(p * vT[:, h:h + 1, :], axis=-1, keepdims=True)
               + p_cls * v_cls[h:h + 1, 0:1])
        head_out.append(num / den)                                       # (bb, 1, 1)

    # out_proj (K = 2 -> broadcast-FMA; heads consumed as columns, no concat)
    attn = _fma2(head_out[0], head_out[1], woT_ref[...], bo_ref[...])    # (bb, 1, E)

    # ---------- residual + LayerNorm1 (post-norm), CLS row only ----------
    n1_0, n1_1 = _ln2_cols(c0 + attn[..., 0:1], c1 + attn[..., 1:2],
                           ln1w_ref[...], ln1b_ref[...])                 # (bb,1,1) x2

    # ---------- feed-forward (relu) on the CLS row only ----------
    h1 = jnp.maximum(_fma2(n1_0, n1_1, w1T_ref[...], b1_ref[...]), 0.0)  # (bb, 1, FFN)
    # Down-projection has only 2 output columns: VPU multiply + lane reduction.
    h2_0 = jnp.sum(h1 * w2_ref[0:1, :], axis=-1, keepdims=True) + b2_ref[:, 0:1]
    h2_1 = jnp.sum(h1 * w2_ref[1:2, :], axis=-1, keepdims=True) + b2_ref[:, 1:2]

    # ---------- residual + LayerNorm2 ----------
    n2_0, n2_1 = _ln2_cols(n1_0 + h2_0, n1_1 + h2_1, ln2w_ref[...], ln2b_ref[...])

    # ---------- CLS-token decoder: Linear(2, 4) ----------
    out_ref[...] = _fma2(n2_0, n2_1, dwT_ref[...], db_ref[...])          # (bb, 1, OUT)


# ----------------------------------------------------------------------------
# Glue: positional encoding, parameter init, pallas_call wrapper
# ----------------------------------------------------------------------------
def make_positional_encoding(seq_len, d_model):
    pos = jnp.arange(seq_len, dtype=jnp.float32)[:, None]
    div = jnp.exp(jnp.arange(0, d_model, 2, dtype=jnp.float32) * (-math.log(10000.0) / d_model))
    pe = jnp.zeros((seq_len, d_model), dtype=jnp.float32)
    pe = pe.at[:, 0::2].set(jnp.sin(pos * div))
    pe = pe.at[:, 1::2].set(jnp.cos(pos * div))
    return pe


def init_params(key):
    ks = jax.random.split(key, 10)

    def unif(k, shape, fan_in):
        bound = 1.0 / math.sqrt(fan_in)
        return jax.random.uniform(k, shape, jnp.float32, -bound, bound)

    return {
        "cls_token":  jnp.zeros((1, E), jnp.float32),          # nn.Parameter(torch.zeros(1, 2))
        "in_proj_w":  unif(ks[0], (3 * E, E), E),              # MHA in_proj
        "in_proj_b":  unif(ks[1], (1, 3 * E), E),
        "out_proj_w": unif(ks[2], (E, E), E),
        "out_proj_b": unif(ks[3], (1, E), E),
        "ln1_w": jnp.ones((1, E), jnp.float32),
        "ln1_b": jnp.zeros((1, E), jnp.float32),
        "lin1_w": unif(ks[4], (FFN_DIM, E), E),                # Linear(E, 2048)
        "lin1_b": unif(ks[5], (1, FFN_DIM), E),
        "lin2_w": unif(ks[6], (E, FFN_DIM), FFN_DIM),          # Linear(2048, E)
        "lin2_b": unif(ks[7], (1, E), FFN_DIM),
        "ln2_w": jnp.ones((1, E), jnp.float32),
        "ln2_b": jnp.zeros((1, E), jnp.float32),
        "dec_w": unif(ks[8], (OUT_DIM, E), E),                 # clsdecoder Linear(2, 4)
        "dec_b": unif(ks[9], (1, OUT_DIM), E),
    }


def _tensorcores_per_chip():
    """2 on v7x-style parts (2 TCs/chip), else 1.  Best-effort; defaults to 1."""
    try:
        kind = jax.devices()[0].device_kind.lower()
    except Exception:
        return 1
    return 2 if "7" in kind else 1


def eyeformer_forward(x, params):
    B, S, e = x.shape
    assert e == E
    S1 = S + 1

    pe = make_positional_encoding(S1, E)                       # (S1, E)
    cls_row = params["cls_token"] + pe[0:1]                    # (1, E): CLS token after PE
    peT_rest = pe[1:].T                                        # (E, S): PE for tokens 1..S
    xT = jnp.swapaxes(x.astype(jnp.float32), 1, 2)             # (B, E, S)

    # Grid: one step on single-TC chips (v5e/v6e); 2 balanced blocks on v7x so the
    # second TensorCore gets work.  Cap rows/block so VMEM temps stay bounded.
    cores = _tensorcores_per_chip()
    num_blocks = 2 if (cores >= 2 and B >= 2) else 1
    num_blocks = max(num_blocks, -(-B // MAX_ROWS_PER_BLOCK))
    bb = -(-B // num_blocks)
    num_blocks = -(-B // bb)
    b_pad = num_blocks * bb
    if b_pad != B:
        xT = jnp.pad(xT, ((0, b_pad - B), (0, 0), (0, 0)))     # padded rows: safe, discarded

    # Pre-arranged weights (wrapper-side layout plumbing only)
    wq = params["in_proj_w"][0:E]
    wk = params["in_proj_w"][E:2 * E]
    wv = params["in_proj_w"][2 * E:3 * E]
    bq = params["in_proj_b"][:, 0:E]                           # (1, E)
    bk = params["in_proj_b"][:, E:2 * E].T                     # (E, 1) for transposed k path
    bv = params["in_proj_b"][:, 2 * E:3 * E].T                 # (E, 1)
    wqT = wq.T                                                 # (E, E)
    woT = params["out_proj_w"].T                               # (E, E)
    w1T = params["lin1_w"].T                                   # (E, FFN)
    w2 = params["lin2_w"]                                      # (E, FFN) as stored (out, in)
    dwT = params["dec_w"].T                                    # (E, OUT)

    def full(shape):
        return pl.BlockSpec(shape, lambda i: (0,) * len(shape))

    out = pl.pallas_call(
        _encoder_cls_kernel,
        out_shape=jax.ShapeDtypeStruct((b_pad, 1, OUT_DIM), jnp.float32),
        grid_spec=pltpu.PrefetchScalarGridSpec(
            num_scalar_prefetch=0,
            grid=(num_blocks,),
            in_specs=[
                pl.BlockSpec((bb, E, S), lambda i: (i, 0, 0)),     # raw tokens, transposed
                full((E, S)),                                      # positional encoding (1..S)
                full((1, E)),                                      # CLS row (token + pe[0])
                full((E, E)), full((1, E)),                        # q projection
                full((E, E)), full((E, 1)),                        # k projection (transposed)
                full((E, E)), full((E, 1)),                        # v projection (transposed)
                full((E, E)), full((1, E)),                        # attn out_proj
                full((1, E)), full((1, E)),                        # layernorm1
                full((E, FFN_DIM)), full((1, FFN_DIM)),            # linear1
                full((E, FFN_DIM)), full((1, E)),                  # linear2
                full((1, E)), full((1, E)),                        # layernorm2
                full((E, OUT_DIM)), full((1, OUT_DIM)),            # cls decoder
            ],
            out_specs=pl.BlockSpec((bb, 1, OUT_DIM), lambda i: (i, 0, 0)),
        ),
        compiler_params=pltpu.CompilerParams(dimension_semantics=("parallel",)),
    )(xT, peT_rest, cls_row,
      wqT, bq, wk, bk, wv, bv,
      woT, params["out_proj_b"],
      params["ln1_w"], params["ln1_b"],
      w1T, params["lin1_b"], w2, params["lin2_b"],
      params["ln2_w"], params["ln2_b"],
      dwT, params["dec_b"])
    return out[:B, 0, :]                                       # (B, 4)


# ----------------------------------------------------------------------------
# Pure-JAX reference for correctness checking (full layer, all tokens)
# ----------------------------------------------------------------------------
def _ln_ref(x, w, b):
    mu = jnp.mean(x, axis=-1, keepdims=True)
    var = jnp.mean(jnp.square(x - mu), axis=-1, keepdims=True)
    return (x - mu) * jax.lax.rsqrt(var + LN_EPS) * w + b


def reference_forward(x, params):
    B, S, _ = x.shape
    S1 = S + 1
    xs = x * math.sqrt(D_MODEL_ATTR)
    cls = jnp.broadcast_to(params["cls_token"], (B, 1, E))
    h = jnp.concatenate([cls, xs], axis=1) + make_positional_encoding(S1, E)[None]
    qkv = h @ params["in_proj_w"].T + params["in_proj_b"][0]
    q, k, v = qkv[..., 0:E], qkv[..., E:2 * E], qkv[..., 2 * E:3 * E]
    outs = []
    for hh in range(NHEAD):
        sl = slice(hh * HEAD_DIM, (hh + 1) * HEAD_DIM)
        sc = jnp.einsum("bqd,bkd->bqk", q[..., sl] / math.sqrt(HEAD_DIM), k[..., sl])
        outs.append(jnp.einsum("bqk,bkd->bqd", jax.nn.softmax(sc, axis=-1), v[..., sl]))
    attn = jnp.concatenate(outs, axis=-1) @ params["out_proj_w"].T + params["out_proj_b"][0]
    h = _ln_ref(h + attn, params["ln1_w"][0], params["ln1_b"][0])
    ff = jnp.maximum(h @ params["lin1_w"].T + params["lin1_b"][0], 0.0)
    ff = ff @ params["lin2_w"].T + params["lin2_b"][0]
    h = _ln_ref(h + ff, params["ln2_w"][0], params["ln2_b"][0])
    return h[:, 0, :] @ params["dec_w"].T + params["dec_b"][0]


if __name__ == "__main__":
    key = jax.random.PRNGKey(0)
    k_x, k_p = jax.random.split(key)

    B, S = 12, 32                                  # matches the module's sample torch.rand(12, 32, 2)
    x = jax.random.uniform(k_x, (B, S, E), dtype=jnp.float32)
    params = init_params(k_p)

    out = jax.block_until_ready(eyeformer_forward(x, params))
    ref = reference_forward(x, params)
    assert out.shape == (B, OUT_DIM)
    if not bool(jnp.allclose(out, ref, rtol=1e-3, atol=1e-3)):
        raise AssertionError("Pallas kernel output does not match JAX reference")

    print("KERNEL_OK")
</pallas_src>

<mosaic_0001>
module attributes {stable_mosaic.version = 11 : i64} {
  func.func @_encoder_cls_kernel(%arg0: i32, %arg1: memref<12x2x32xf32, #tpu.memory_space<vmem>>, %arg2: memref<2x32xf32, #tpu.memory_space<vmem>>, %arg3: memref<1x2xf32, #tpu.memory_space<vmem>>, %arg4: memref<2x2xf32, #tpu.memory_space<vmem>>, %arg5: memref<1x2xf32, #tpu.memory_space<vmem>>, %arg6: memref<2x2xf32, #tpu.memory_space<vmem>>, %arg7: memref<2x1xf32, #tpu.memory_space<vmem>>, %arg8: memref<2x2xf32, #tpu.memory_space<vmem>>, %arg9: memref<2x1xf32, #tpu.memory_space<vmem>>, %arg10: memref<2x2xf32, #tpu.memory_space<vmem>>, %arg11: memref<1x2xf32, #tpu.memory_space<vmem>>, %arg12: memref<1x2xf32, #tpu.memory_space<vmem>>, %arg13: memref<1x2xf32, #tpu.memory_space<vmem>>, %arg14: memref<2x2048xf32, #tpu.memory_space<vmem>>, %arg15: memref<1x2048xf32, #tpu.memory_space<vmem>>, %arg16: memref<2x2048xf32, #tpu.memory_space<vmem>>, %arg17: memref<1x2xf32, #tpu.memory_space<vmem>>, %arg18: memref<1x2xf32, #tpu.memory_space<vmem>>, %arg19: memref<1x2xf32, #tpu.memory_space<vmem>>, %arg20: memref<2x4xf32, #tpu.memory_space<vmem>>, %arg21: memref<1x4xf32, #tpu.memory_space<vmem>>, %arg22: memref<12x1x4xf32, #tpu.memory_space<vmem>>) attributes {dimension_semantics = [#tpu.dimension_semantics<parallel>], iteration_bounds = array<i64: 1>, scalar_prefetch = 0 : i64, scratch_operands = 0 : i64, tpu.core_type = #tpu.core_type<tc>, window_params = [{transform_indices = @transform_0, window_bounds = array<i64: 12, 2, 32>}, {pipeline_mode = #tpu.pipeline_mode<synchronous>, transform_indices = @transform_1, window_bounds = array<i64: 2, 32>}, {pipeline_mode = #tpu.pipeline_mode<synchronous>, transform_indices = @transform_2, window_bounds = array<i64: 1, 2>}, {pipeline_mode = #tpu.pipeline_mode<synchronous>, transform_indices = @transform_3, window_bounds = array<i64: 2, 2>}, {pipeline_mode = #tpu.pipeline_mode<synchronous>, transform_indices = @transform_4, window_bounds = array<i64: 1, 2>}, {pipeline_mode = #tpu.pipeline_mode<synchronous>, transform_indices = @transform_5, window_bounds = array<i64: 2, 2>}, {pipeline_mode = #tpu.pipeline_mode<synchronous>, transform_indices = @transform_6, window_bounds = array<i64: 2, 1>}, {pipeline_mode = #tpu.pipeline_mode<synchronous>, transform_indices = @transform_7, window_bounds = array<i64: 2, 2>}, {pipeline_mode = #tpu.pipeline_mode<synchronous>, transform_indices = @transform_8, window_bounds = array<i64: 2, 1>}, {pipeline_mode = #tpu.pipeline_mode<synchronous>, transform_indices = @transform_9, window_bounds = array<i64: 2, 2>}, {pipeline_mode = #tpu.pipeline_mode<synchronous>, transform_indices = @transform_10, window_bounds = array<i64: 1, 2>}, {pipeline_mode = #tpu.pipeline_mode<synchronous>, transform_indices = @transform_11, window_bounds = array<i64: 1, 2>}, {pipeline_mode = #tpu.pipeline_mode<synchronous>, transform_indices = @transform_12, window_bounds = array<i64: 1, 2>}, {pipeline_mode = #tpu.pipeline_mode<synchronous>, transform_indices = @transform_13, window_bounds = array<i64: 2, 2048>}, {pipeline_mode = #tpu.pipeline_mode<synchronous>, transform_indices = @transform_14, window_bounds = array<i64: 1, 2048>}, {pipeline_mode = #tpu.pipeline_mode<synchronous>, transform_indices = @transform_15, window_bounds = array<i64: 2, 2048>}, {pipeline_mode = #tpu.pipeline_mode<synchronous>, transform_indices = @transform_16, window_bounds = array<i64: 1, 2>}, {pipeline_mode = #tpu.pipeline_mode<synchronous>, transform_indices = @transform_17, window_bounds = array<i64: 1, 2>}, {pipeline_mode = #tpu.pipeline_mode<synchronous>, transform_indices = @transform_18, window_bounds = array<i64: 1, 2>}, {pipeline_mode = #tpu.pipeline_mode<synchronous>, transform_indices = @transform_19, window_bounds = array<i64: 2, 4>}, {pipeline_mode = #tpu.pipeline_mode<synchronous>, transform_indices = @transform_20, window_bounds = array<i64: 1, 4>}, {transform_indices = @transform_21, window_bounds = array<i64: 12, 1, 4>}]} {
    %c0 = arith.constant 0 : index
    %c0_0 = arith.constant 0 : index
    %c0_1 = arith.constant 0 : index
    %0 = vector.load %arg1[%c0, %c0_0, %c0_1] : memref<12x2x32xf32, #tpu.memory_space<vmem>>, vector<12x2x32xf32>
    %cst = arith.constant 5.65685415 : f32
    %1 = vector.broadcast %cst : f32 to vector<12x2x32xf32>
    %2 = arith.mulf %0, %1 : vector<12x2x32xf32>
    %c0_2 = arith.constant 0 : index
    %c0_3 = arith.constant 0 : index
    %3 = vector.load %arg2[%c0_2, %c0_3] : memref<2x32xf32, #tpu.memory_space<vmem>>, vector<2x32xf32>
    %4 = vector.shape_cast %3 : vector<2x32xf32> to vector<1x2x32xf32>
    %5 = vector.broadcast %4 : vector<1x2x32xf32> to vector<12x2x32xf32>
    %6 = arith.addf %2, %5 : vector<12x2x32xf32>
    %c0_4 = arith.constant 0 : index
    %c0_5 = arith.constant 0 : index
    %7 = vector.load %arg3[%c0_4, %c0_5] : memref<1x2xf32, #tpu.memory_space<vmem>>, vector<1x1xf32>
    %c0_6 = arith.constant 0 : index
    %c1 = arith.constant 1 : index
    %8 = vector.load %arg3[%c0_6, %c1] : memref<1x2xf32, #tpu.memory_space<vmem>>, vector<1x1xf32>
    %c0_7 = arith.constant 0 : index
    %c0_8 = arith.constant 0 : index
    %9 = vector.load %arg6[%c0_7, %c0_8] : memref<2x2xf32, #tpu.memory_space<vmem>>, vector<2x1xf32>
    %10 = vector.extract_strided_slice %6 {offsets = [0, 0, 0], sizes = [12, 1, 32], strides = [1, 1, 1]} : vector<12x2x32xf32> to vector<12x1x32xf32>
    %11 = vector.shape_cast %9 : vector<2x1xf32> to vector<1x2x1xf32>
    %12 = vector.broadcast %11 : vector<1x2x1xf32> to vector<12x2x32xf32>
    %13 = vector.broadcast %10 : vector<12x1x32xf32> to vector<12x2x32xf32>
    %14 = arith.mulf %12, %13 : vector<12x2x32xf32>
    %c0_9 = arith.constant 0 : index
    %c1_10 = arith.constant 1 : index
    %15 = vector.load %arg6[%c0_9, %c1_10] : memref<2x2xf32, #tpu.memory_space<vmem>>, vector<2x1xf32>
    %16 = vector.extract_strided_slice %6 {offsets = [0, 1, 0], sizes = [12, 1, 32], strides = [1, 1, 1]} : vector<12x2x32xf32> to vector<12x1x32xf32>
    %17 = vector.shape_cast %15 : vector<2x1xf32> to vector<1x2x1xf32>
    %18 = vector.broadcast %17 : vector<1x2x1xf32> to vector<12x2x32xf32>
    %19 = vector.broadcast %16 : vector<12x1x32xf32> to vector<12x2x32xf32>
    %20 = arith.mulf %18, %19 : vector<12x2x32xf32>
    %21 = arith.addf %14, %20 : vector<12x2x32xf32>
    %c0_11 = arith.constant 0 : index
    %c0_12 = arith.constant 0 : index
    %22 = vector.load %arg7[%c0_11, %c0_12] : memref<2x1xf32, #tpu.memory_space<vmem>>, vector<2x1xf32>
    %23 = vector.shape_cast %22 : vector<2x1xf32> to vector<1x2x1xf32>
    %24 = vector.broadcast %23 : vector<1x2x1xf32> to vector<12x2x32xf32>
    %25 = arith.addf %21, %24 : vector<12x2x32xf32>
    %c0_13 = arith.constant 0 : index
    %c0_14 = arith.constant 0 : index
    %26 = vector.load %arg8[%c0_13, %c0_14] : memref<2x2xf32, #tpu.memory_space<vmem>>, vector<2x1xf32>
    %27 = vector.extract_strided_slice %6 {offsets = [0, 0, 0], sizes = [12, 1, 32], strides = [1, 1, 1]} : vector<12x2x32xf32> to vector<12x1x32xf32>
    %28 = vector.shape_cast %26 : vector<2x1xf32> to vector<1x2x1xf32>
    %29 = vector.broadcast %28 : vector<1x2x1xf32> to vector<12x2x32xf32>
    %30 = vector.broadcast %27 : vector<12x1x32xf32> to vector<12x2x32xf32>
    %31 = arith.mulf %29, %30 : vector<12x2x32xf32>
    %c0_15 = arith.constant 0 : index
    %c1_16 = arith.constant 1 : index
    %32 = vector.load %arg8[%c0_15, %c1_16] : memref<2x2xf32, #tpu.memory_space<vmem>>, vector<2x1xf32>
    %33 = vector.extract_strided_slice %6 {offsets = [0, 1, 0], sizes = [12, 1, 32], strides = [1, 1, 1]} : vector<12x2x32xf32> to vector<12x1x32xf32>
    %34 = vector.shape_cast %32 : vector<2x1xf32> to vector<1x2x1xf32>
    %35 = vector.broadcast %34 : vector<1x2x1xf32> to vector<12x2x32xf32>
    %36 = vector.broadcast %33 : vector<12x1x32xf32> to vector<12x2x32xf32>
    %37 = arith.mulf %35, %36 : vector<12x2x32xf32>
    %38 = arith.addf %31, %37 : vector<12x2x32xf32>
    %c0_17 = arith.constant 0 : index
    %c0_18 = arith.constant 0 : index
    %39 = vector.load %arg9[%c0_17, %c0_18] : memref<2x1xf32, #tpu.memory_space<vmem>>, vector<2x1xf32>
    %40 = vector.shape_cast %39 : vector<2x1xf32> to vector<1x2x1xf32>
    %41 = vector.broadcast %40 : vector<1x2x1xf32> to vector<12x2x32xf32>
    %42 = arith.addf %38, %41 : vector<12x2x32xf32>
    %c0_19 = arith.constant 0 : index
    %c0_20 = arith.constant 0 : index
    %43 = vector.load %arg6[%c0_19, %c0_20] : memref<2x2xf32, #tpu.memory_space<vmem>>, vector<2x1xf32>
    %44 = vector.broadcast %7 : vector<1x1xf32> to vector<2x1xf32>
    %45 = arith.mulf %43, %44 : vector<2x1xf32>
    %c0_21 = arith.constant 0 : index
    %c1_22 = arith.constant 1 : index
    %46 = vector.load %arg6[%c0_21, %c1_22] : memref<2x2xf32, #tpu.memory_space<vmem>>, vector<2x1xf32>
    %47 = vector.broadcast %8 : vector<1x1xf32> to vector<2x1xf32>
    %48 = arith.mulf %46, %47 : vector<2x1xf32>
    %49 = arith.addf %45, %48 : vector<2x1xf32>
    %c0_23 = arith.constant 0 : index
    %c0_24 = arith.constant 0 : index
    %50 = vector.load %arg7[%c0_23, %c0_24] : memref<2x1xf32, #tpu.memory_space<vmem>>, vector<2x1xf32>
    %51 = arith.addf %49, %50 : vector<2x1xf32>
    %c0_25 = arith.constant 0 : index
    %c0_26 = arith.constant 0 : index
    %52 = vector.load %arg8[%c0_25, %c0_26] : memref<2x2xf32, #tpu.memory_space<vmem>>, vector<2x1xf32>
    %53 = vector.broadcast %7 : vector<1x1xf32> to vector<2x1xf32>
    %54 = arith.mulf %52, %53 : vector<2x1xf32>
    %c0_27 = arith.constant 0 : index
    %c1_28 = arith.constant 1 : index
    %55 = vector.load %arg8[%c0_27, %c1_28] : memref<2x2xf32, #tpu.memory_space<vmem>>, vector<2x1xf32>
    %56 = vector.broadcast %8 : vector<1x1xf32> to vector<2x1xf32>
    %57 = arith.mulf %55, %56 : vector<2x1xf32>
    %58 = arith.addf %54, %57 : vector<2x1xf32>
    %c0_29 = arith.constant 0 : index
    %c0_30 = arith.constant 0 : index
    %59 = vector.load %arg9[%c0_29, %c0_30] : memref<2x1xf32, #tpu.memory_space<vmem>>, vector<2x1xf32>
    %60 = arith.addf %58, %59 : vector<2x1xf32>
    %c0_31 = arith.constant 0 : index
    %c0_32 = arith.constant 0 : index
    %61 = vector.load %arg4[%c0_31, %c0_32] : memref<2x2xf32, #tpu.memory_space<vmem>>, vector<1x2xf32>
    %62 = vector.broadcast %7 : vector<1x1xf32> to vector<1x2xf32>
    %63 = arith.mulf %62, %61 : vector<1x2xf32>
    %c1_33 = arith.constant 1 : index
    %c0_34 = arith.constant 0 : index
    %64 = vector.load %arg4[%c1_33, %c0_34] : memref<2x2xf32, #tpu.memory_space<vmem>>, vector<1x2xf32>
    %65 = vector.broadcast %8 : vector<1x1xf32> to vector<1x2xf32>
    %66 = arith.mulf %65, %64 : vector<1x2xf32>
    %67 = arith.addf %63, %66 : vector<1x2xf32>
    %c0_35 = arith.constant 0 : index
    %c0_36 = arith.constant 0 : index
    %68 = vector.load %arg5[%c0_35, %c0_36] : memref<1x2xf32, #tpu.memory_space<vmem>>, vector<1x2xf32>
    %69 = arith.addf %67, %68 : vector<1x2xf32>
    %70 = vector.extract_strided_slice %69 {offsets = [0, 0], sizes = [1, 1], strides = [1, 1]} : vector<1x2xf32> to vector<1x1xf32>
    %cst_37 = arith.constant 1.000000e+00 : f32
    %71 = vector.broadcast %cst_37 : f32 to vector<1x1xf32>
    %72 = arith.mulf %70, %71 : vector<1x1xf32>
    %73 = vector.extract_strided_slice %25 {offsets = [0, 0, 0], sizes = [12, 1, 32], strides = [1, 1, 1]} : vector<12x2x32xf32> to vector<12x1x32xf32>
    %74 = vector.shape_cast %72 : vector<1x1xf32> to vector<1x1x1xf32>
    %75 = vector.broadcast %74 : vector<1x1x1xf32> to vector<12x1x32xf32>
    %76 = arith.mulf %75, %73 : vector<12x1x32xf32>
    %77 = vector.extract_strided_slice %51 {offsets = [0, 0], sizes = [1, 1], strides = [1, 1]} : vector<2x1xf32> to vector<1x1xf32>
    %78 = arith.mulf %72, %77 : vector<1x1xf32>
    %cst_38 = arith.constant dense<0xFF800000> : vector<12x1xf32>
    %79 = vector.multi_reduction <maximumf>, %76, %cst_38 [2] : vector<12x1x32xf32> to vector<12x1xf32>
    %80 = vector.shape_cast %79 : vector<12x1xf32> to vector<12x1x1xf32>
    %81 = vector.shape_cast %78 : vector<1x1xf32> to vector<1x1x1xf32>
    %82 = vector.broadcast %81 : vector<1x1x1xf32> to vector<12x1x1xf32>
    %83 = arith.maximumf %80, %82 : vector<12x1x1xf32>
    %84 = vector.broadcast %83 : vector<12x1x1xf32> to vector<12x1x32xf32>
    %85 = arith.subf %76, %84 : vector<12x1x32xf32>
    %86 = math.exp %85 : vector<12x1x32xf32>
    %87 = vector.shape_cast %78 : vector<1x1xf32> to vector<1x1x1xf32>
    %88 = vector.broadcast %87 : vector<1x1x1xf32> to vector<12x1x1xf32>
    %89 = arith.subf %88, %83 : vector<12x1x1xf32>
    %90 = math.exp %89 : vector<12x1x1xf32>
    %cst_39 = arith.constant dense<0.000000e+00> : vector<12x1xf32>
    %91 = vector.multi_reduction <add>, %86, %cst_39 [2] : vector<12x1x32xf32> to vector<12x1xf32>
    %92 = vector.shape_cast %91 : vector<12x1xf32> to vector<12x1x1xf32>
    %93 = arith.addf %92, %90 : vector<12x1x1xf32>
    %94 = vector.extract_strided_slice %42 {offsets = [0, 0, 0], sizes = [12, 1, 32], strides = [1, 1, 1]} : vector<12x2x32xf32> to vector<12x1x32xf32>
    %95 = arith.mulf %86, %94 : vector<12x1x32xf32>
    %cst_40 = arith.constant dense<0.000000e+00> : vector<12x1xf32>
    %96 = vector.multi_reduction <add>, %95, %cst_40 [2] : vector<12x1x32xf32> to vector<12x1xf32>
    %97 = vector.shape_cast %96 : vector<12x1xf32> to vector<12x1x1xf32>
    %98 = vector.extract_strided_slice %60 {offsets = [0, 0], sizes = [1, 1], strides = [1, 1]} : vector<2x1xf32> to vector<1x1xf32>
    %99 = vector.shape_cast %98 : vector<1x1xf32> to vector<1x1x1xf32>
    %100 = vector.broadcast %99 : vector<1x1x1xf32> to vector<12x1x1xf32>
    %101 = arith.mulf %90, %100 : vector<12x1x1xf32>
    %102 = arith.addf %97, %101 : vector<12x1x1xf32>
    %103 = arith.divf %102, %93 : vector<12x1x1xf32>
    %104 = vector.extract_strided_slice %69 {offsets = [0, 1], sizes = [1, 1], strides = [1, 1]} : vector<1x2xf32> to vector<1x1xf32>
    %cst_41 = arith.constant 1.000000e+00 : f32
    %105 = vector.broadcast %cst_41 : f32 to vector<1x1xf32>
    %106 = arith.mulf %104, %105 : vector<1x1xf32>
    %107 = vector.extract_strided_slice %25 {offsets = [0, 1, 0], sizes = [12, 1, 32], strides = [1, 1, 1]} : vector<12x2x32xf32> to vector<12x1x32xf32>
    %108 = vector.shape_cast %106 : vector<1x1xf32> to vector<1x1x1xf32>
    %109 = vector.broadcast %108 : vector<1x1x1xf32> to vector<12x1x32xf32>
    %110 = arith.mulf %109, %107 : vector<12x1x32xf32>
    %111 = vector.extract_strided_slice %51 {offsets = [1, 0], sizes = [1, 1], strides = [1, 1]} : vector<2x1xf32> to vector<1x1xf32>
    %112 = arith.mulf %106, %111 : vector<1x1xf32>
    %cst_42 = arith.constant dense<0xFF800000> : vector<12x1xf32>
    %113 = vector.multi_reduction <maximumf>, %110, %cst_42 [2] : vector<12x1x32xf32> to vector<12x1xf32>
    %114 = vector.shape_cast %113 : vector<12x1xf32> to vector<12x1x1xf32>
    %115 = vector.shape_cast %112 : vector<1x1xf32> to vector<1x1x1xf32>
    %116 = vector.broadcast %115 : vector<1x1x1xf32> to vector<12x1x1xf32>
    %117 = arith.maximumf %114, %116 : vector<12x1x1xf32>
    %118 = vector.broadcast %117 : vector<12x1x1xf32> to vector<12x1x32xf32>
    %119 = arith.subf %110, %118 : vector<12x1x32xf32>
    %120 = math.exp %119 : vector<12x1x32xf32>
    %121 = vector.shape_cast %112 : vector<1x1xf32> to vector<1x1x1xf32>
    %122 = vector.broadcast %121 : vector<1x1x1xf32> to vector<12x1x1xf32>
    %123 = arith.subf %122, %117 : vector<12x1x1xf32>
    %124 = math.exp %123 : vector<12x1x1xf32>
    %cst_43 = arith.constant dense<0.000000e+00> : vector<12x1xf32>
    %125 = vector.multi_reduction <add>, %120, %cst_43 [2] : vector<12x1x32xf32> to vector<12x1xf32>
    %126 = vector.shape_cast %125 : vector<12x1xf32> to vector<12x1x1xf32>
    %127 = arith.addf %126, %124 : vector<12x1x1xf32>
    %128 = vector.extract_strided_slice %42 {offsets = [0, 1, 0], sizes = [12, 1, 32], strides = [1, 1, 1]} : vector<12x2x32xf32> to vector<12x1x32xf32>
    %129 = arith.mulf %120, %128 : vector<12x1x32xf32>
    %cst_44 = arith.constant dense<0.000000e+00> : vector<12x1xf32>
    %130 = vector.multi_reduction <add>, %129, %cst_44 [2] : vector<12x1x32xf32> to vector<12x1xf32>
    %131 = vector.shape_cast %130 : vector<12x1xf32> to vector<12x1x1xf32>
    %132 = vector.extract_strided_slice %60 {offsets = [1, 0], sizes = [1, 1], strides = [1, 1]} : vector<2x1xf32> to vector<1x1xf32>
    %133 = vector.shape_cast %132 : vector<1x1xf32> to vector<1x1x1xf32>
    %134 = vector.broadcast %133 : vector<1x1x1xf32> to vector<12x1x1xf32>
    %135 = arith.mulf %124, %134 : vector<12x1x1xf32>
    %136 = arith.addf %131, %135 : vector<12x1x1xf32>
    %137 = arith.divf %136, %127 : vector<12x1x1xf32>
    %c0_45 = arith.constant 0 : index
    %c0_46 = arith.constant 0 : index
    %138 = vector.load %arg10[%c0_45, %c0_46] : memref<2x2xf32, #tpu.memory_space<vmem>>, vector<2x2xf32>
    %c0_47 = arith.constant 0 : index
    %c0_48 = arith.constant 0 : index
    %139 = vector.load %arg11[%c0_47, %c0_48] : memref<1x2xf32, #tpu.memory_space<vmem>>, vector<1x2xf32>
    %140 = vector.extract_strided_slice %138 {offsets = [0, 0], sizes = [1, 2], strides = [1, 1]} : vector<2x2xf32> to vector<1x2xf32>
    %141 = vector.shape_cast %140 : vector<1x2xf32> to vector<1x1x2xf32>
    %142 = vector.broadcast %103 : vector<12x1x1xf32> to vector<12x1x2xf32>
    %143 = vector.broadcast %141 : vector<1x1x2xf32> to vector<12x1x2xf32>
    %144 = arith.mulf %142, %143 : vector<12x1x2xf32>
    %145 = vector.extract_strided_slice %138 {offsets = [1, 0], sizes = [1, 2], strides = [1, 1]} : vector<2x2xf32> to vector<1x2xf32>
    %146 = vector.shape_cast %145 : vector<1x2xf32> to vector<1x1x2xf32>
    %147 = vector.broadcast %137 : vector<12x1x1xf32> to vector<12x1x2xf32>
    %148 = vector.broadcast %146 : vector<1x1x2xf32> to vector<12x1x2xf32>
    %149 = arith.mulf %147, %148 : vector<12x1x2xf32>
    %150 = arith.addf %144, %149 : vector<12x1x2xf32>
    %151 = vector.shape_cast %139 : vector<1x2xf32> to vector<1x1x2xf32>
    %152 = vector.broadcast %151 : vector<1x1x2xf32> to vector<12x1x2xf32>
    %153 = arith.addf %150, %152 : vector<12x1x2xf32>
    %154 = vector.extract_strided_slice %153 {offsets = [0, 0, 0], sizes = [12, 1, 1], strides = [1, 1, 1]} : vector<12x1x2xf32> to vector<12x1x1xf32>
    %155 = vector.shape_cast %7 : vector<1x1xf32> to vector<1x1x1xf32>
    %156 = vector.broadcast %155 : vector<1x1x1xf32> to vector<12x1x1xf32>
    %157 = arith.addf %156, %154 : vector<12x1x1xf32>
    %158 = vector.extract_strided_slice %153 {offsets = [0, 0, 1], sizes = [12, 1, 1], strides = [1, 1, 1]} : vector<12x1x2xf32> to vector<12x1x1xf32>
    %159 = vector.shape_cast %8 : vector<1x1xf32> to vector<1x1x1xf32>
    %160 = vector.broadcast %159 : vector<1x1x1xf32> to vector<12x1x1xf32>
    %161 = arith.addf %160, %158 : vector<12x1x1xf32>
    %c0_49 = arith.constant 0 : index
    %c0_50 = arith.constant 0 : index
    %162 = vector.load %arg12[%c0_49, %c0_50] : memref<1x2xf32, #tpu.memory_space<vmem>>, vector<1x2xf32>
    %c0_51 = arith.constant 0 : index
    %c0_52 = arith.constant 0 : index
    %163 = vector.load %arg13[%c0_51, %c0_52] : memref<1x2xf32, #tpu.memory_space<vmem>>, vector<1x2xf32>
    %164 = arith.addf %157, %161 : vector<12x1x1xf32>
    %cst_53 = arith.constant 5.000000e-01 : f32
    %165 = vector.broadcast %cst_53 : f32 to vector<12x1x1xf32>
    %166 = arith.mulf %165, %164 : vector<12x1x1xf32>
    %167 = arith.subf %157, %166 : vector<12x1x1xf32>
    %168 = arith.subf %161, %166 : vector<12x1x1xf32>
    %169 = arith.mulf %167, %167 : vector<12x1x1xf32>
    %170 = arith.mulf %168, %168 : vector<12x1x1xf32>
    %171 = arith.addf %169, %170 : vector<12x1x1xf32>
    %cst_54 = arith.constant 5.000000e-01 : f32
    %172 = vector.broadcast %cst_54 : f32 to vector<12x1x1xf32>
    %173 = arith.mulf %172, %171 : vector<12x1x1xf32>
    %cst_55 = arith.constant 9.99999974E-6 : f32
    %174 = vector.broadcast %cst_55 : f32 to vector<12x1x1xf32>
    %175 = arith.addf %173, %174 : vector<12x1x1xf32>
    %176 = math.rsqrt %175 : vector<12x1x1xf32>
    %177 = arith.mulf %167, %176 : vector<12x1x1xf32>
    %178 = vector.extract_strided_slice %162 {offsets = [0, 0], sizes = [1, 1], strides = [1, 1]} : vector<1x2xf32> to vector<1x1xf32>
    %179 = vector.shape_cast %178 : vector<1x1xf32> to vector<1x1x1xf32>
    %180 = vector.broadcast %179 : vector<1x1x1xf32> to vector<12x1x1xf32>
    %181 = arith.mulf %177, %180 : vector<12x1x1xf32>
    %182 = vector.extract_strided_slice %163 {offsets = [0, 0], sizes = [1, 1], strides = [1, 1]} : vector<1x2xf32> to vector<1x1xf32>
    %183 = vector.shape_cast %182 : vector<1x1xf32> to vector<1x1x1xf32>
    %184 = vector.broadcast %183 : vector<1x1x1xf32> to vector<12x1x1xf32>
    %185 = arith.addf %181, %184 : vector<12x1x1xf32>
    %186 = arith.mulf %168, %176 : vector<12x1x1xf32>
    %187 = vector.extract_strided_slice %162 {offsets = [0, 1], sizes = [1, 1], strides = [1, 1]} : vector<1x2xf32> to vector<1x1xf32>
    %188 = vector.shape_cast %187 : vector<1x1xf32> to vector<1x1x1xf32>
    %189 = vector.broadcast %188 : vector<1x1x1xf32> to vector<12x1x1xf32>
    %190 = arith.mulf %186, %189 : vector<12x1x1xf32>
    %191 = vector.extract_strided_slice %163 {offsets = [0, 1], sizes = [1, 1], strides = [1, 1]} : vector<1x2xf32> to vector<1x1xf32>
    %192 = vector.shape_cast %191 : vector<1x1xf32> to vector<1x1x1xf32>
    %193 = vector.broadcast %192 : vector<1x1x1xf32> to vector<12x1x1xf32>
    %194 = arith.addf %190, %193 : vector<12x1x1xf32>
    %c0_56 = arith.constant 0 : index
    %c0_57 = arith.constant 0 : index
    %195 = vector.load %arg14[%c0_56, %c0_57] : memref<2x2048xf32, #tpu.memory_space<vmem>>, vector<2x2048xf32>
    %c0_58 = arith.constant 0 : index
    %c0_59 = arith.constant 0 : index
    %196 = vector.load %arg15[%c0_58, %c0_59] : memref<1x2048xf32, #tpu.memory_space<vmem>>, vector<1x2048xf32>
    %197 = vector.extract_strided_slice %195 {offsets = [0, 0], sizes = [1, 2048], strides = [1, 1]} : vector<2x2048xf32> to vector<1x2048xf32>
    %198 = vector.shape_cast %197 : vector<1x2048xf32> to vector<1x1x2048xf32>
    %199 = vector.broadcast %185 : vector<12x1x1xf32> to vector<12x1x2048xf32>
    %200 = vector.broadcast %198 : vector<1x1x2048xf32> to vector<12x1x2048xf32>
    %201 = arith.mulf %199, %200 : vector<12x1x2048xf32>
    %202 = vector.extract_strided_slice %195 {offsets = [1, 0], sizes = [1, 2048], strides = [1, 1]} : vector<2x2048xf32> to vector<1x2048xf32>
    %203 = vector.shape_cast %202 : vector<1x2048xf32> to vector<1x1x2048xf32>
    %204 = vector.broadcast %194 : vector<12x1x1xf32> to vector<12x1x2048xf32>
    %205 = vector.broadcast %203 : vector<1x1x2048xf32> to vector<12x1x2048xf32>
    %206 = arith.mulf %204, %205 : vector<12x1x2048xf32>
    %207 = arith.addf %201, %206 : vector<12x1x2048xf32>
    %208 = vector.shape_cast %196 : vector<1x2048xf32> to vector<1x1x2048xf32>
    %209 = vector.broadcast %208 : vector<1x1x2048xf32> to vector<12x1x2048xf32>
    %210 = arith.addf %207, %209 : vector<12x1x2048xf32>
    %cst_60 = arith.constant 0.000000e+00 : f32
    %211 = vector.broadcast %cst_60 : f32 to vector<12x1x2048xf32>
    %212 = arith.maximumf %210, %211 : vector<12x1x2048xf32>
    %c0_61 = arith.constant 0 : index
    %c0_62 = arith.constant 0 : index
    %213 = vector.load %arg16[%c0_61, %c0_62] : memref<2x2048xf32, #tpu.memory_space<vmem>>, vector<1x2048xf32>
    %214 = vector.shape_cast %213 : vector<1x2048xf32> to vector<1x1x2048xf32>
    %215 = vector.broadcast %214 : vector<1x1x2048xf32> to vector<12x1x2048xf32>
    %216 = arith.mulf %212, %215 : vector<12x1x2048xf32>
    %cst_63 = arith.constant dense<0.000000e+00> : vector<12x1xf32>
    %217 = vector.multi_reduction <add>, %216, %cst_63 [2] : vector<12x1x2048xf32> to vector<12x1xf32>
    %218 = vector.shape_cast %217 : vector<12x1xf32> to vector<12x1x1xf32>
    %c0_64 = arith.constant 0 : index
    %c0_65 = arith.constant 0 : index
    %219 = vector.load %arg17[%c0_64, %c0_65] : memref<1x2xf32, #tpu.memory_space<vmem>>, vector<1x1xf32>
    %220 = vector.shape_cast %219 : vector<1x1xf32> to vector<1x1x1xf32>
    %221 = vector.broadcast %220 : vector<1x1x1xf32> to vector<12x1x1xf32>
    %222 = arith.addf %218, %221 : vector<12x1x1xf32>
    %c1_66 = arith.constant 1 : index
    %c0_67 = arith.constant 0 : index
    %223 = vector.load %arg16[%c1_66, %c0_67] : memref<2x2048xf32, #tpu.memory_space<vmem>>, vector<1x2048xf32>
    %224 = vector.shape_cast %223 : vector<1x2048xf32> to vector<1x1x2048xf32>
    %225 = vector.broadcast %224 : vector<1x1x2048xf32> to vector<12x1x2048xf32>
    %226 = arith.mulf %212, %225 : vector<12x1x2048xf32>
    %cst_68 = arith.constant dense<0.000000e+00> : vector<12x1xf32>
    %227 = vector.multi_reduction <add>, %226, %cst_68 [2] : vector<12x1x2048xf32> to vector<12x1xf32>
    %228 = vector.shape_cast %227 : vector<12x1xf32> to vector<12x1x1xf32>
    %c0_69 = arith.constant 0 : index
    %c1_70 = arith.constant 1 : index
    %229 = vector.load %arg17[%c0_69, %c1_70] : memref<1x2xf32, #tpu.memory_space<vmem>>, vector<1x1xf32>
    %230 = vector.shape_cast %229 : vector<1x1xf32> to vector<1x1x1xf32>
    %231 = vector.broadcast %230 : vector<1x1x1xf32> to vector<12x1x1xf32>
    %232 = arith.addf %228, %231 : vector<12x1x1xf32>
    %233 = arith.addf %185, %222 : vector<12x1x1xf32>
    %234 = arith.addf %194, %232 : vector<12x1x1xf32>
    %c0_71 = arith.constant 0 : index
    %c0_72 = arith.constant 0 : index
    %235 = vector.load %arg18[%c0_71, %c0_72] : memref<1x2xf32, #tpu.memory_space<vmem>>, vector<1x2xf32>
    %c0_73 = arith.constant 0 : index
    %c0_74 = arith.constant 0 : index
    %236 = vector.load %arg19[%c0_73, %c0_74] : memref<1x2xf32, #tpu.memory_space<vmem>>, vector<1x2xf32>
    %237 = arith.addf %233, %234 : vector<12x1x1xf32>
    %cst_75 = arith.constant 5.000000e-01 : f32
    %238 = vector.broadcast %cst_75 : f32 to vector<12x1x1xf32>
    %239 = arith.mulf %238, %237 : vector<12x1x1xf32>
    %240 = arith.subf %233, %239 : vector<12x1x1xf32>
    %241 = arith.subf %234, %239 : vector<12x1x1xf32>
    %242 = arith.mulf %240, %240 : vector<12x1x1xf32>
    %243 = arith.mulf %241, %241 : vector<12x1x1xf32>
    %244 = arith.addf %242, %243 : vector<12x1x1xf32>
    %cst_76 = arith.constant 5.000000e-01 : f32
    %245 = vector.broadcast %cst_76 : f32 to vector<12x1x1xf32>
    %246 = arith.mulf %245, %244 : vector<12x1x1xf32>
    %cst_77 = arith.constant 9.99999974E-6 : f32
    %247 = vector.broadcast %cst_77 : f32 to vector<12x1x1xf32>
    %248 = arith.addf %246, %247 : vector<12x1x1xf32>
    %249 = math.rsqrt %248 : vector<12x1x1xf32>
    %250 = arith.mulf %240, %249 : vector<12x1x1xf32>
    %251 = vector.extract_strided_slice %235 {offsets = [0, 0], sizes = [1, 1], strides = [1, 1]} : vector<1x2xf32> to vector<1x1xf32>
    %252 = vector.shape_cast %251 : vector<1x1xf32> to vector<1x1x1xf32>
    %253 = vector.broadcast %252 : vector<1x1x1xf32> to vector<12x1x1xf32>
    %254 = arith.mulf %250, %253 : vector<12x1x1xf32>
    %255 = vector.extract_strided_slice %236 {offsets = [0, 0], sizes = [1, 1], strides = [1, 1]} : vector<1x2xf32> to vector<1x1xf32>
    %256 = vector.shape_cast %255 : vector<1x1xf32> to vector<1x1x1xf32>
    %257 = vector.broadcast %256 : vector<1x1x1xf32> to vector<12x1x1xf32>
    %258 = arith.addf %254, %257 : vector<12x1x1xf32>
    %259 = arith.mulf %241, %249 : vector<12x1x1xf32>
    %260 = vector.extract_strided_slice %235 {offsets = [0, 1], sizes = [1, 1], strides = [1, 1]} : vector<1x2xf32> to vector<1x1xf32>
    %261 = vector.shape_cast %260 : vector<1x1xf32> to vector<1x1x1xf32>
    %262 = vector.broadcast %261 : vector<1x1x1xf32> to vector<12x1x1xf32>
    %263 = arith.mulf %259, %262 : vector<12x1x1xf32>
    %264 = vector.extract_strided_slice %236 {offsets = [0, 1], sizes = [1, 1], strides = [1, 1]} : vector<1x2xf32> to vector<1x1xf32>
    %265 = vector.shape_cast %264 : vector<1x1xf32> to vector<1x1x1xf32>
    %266 = vector.broadcast %265 : vector<1x1x1xf32> to vector<12x1x1xf32>
    %267 = arith.addf %263, %266 : vector<12x1x1xf32>
    %c0_78 = arith.constant 0 : index
    %c0_79 = arith.constant 0 : index
    %268 = vector.load %arg20[%c0_78, %c0_79] : memref<2x4xf32, #tpu.memory_space<vmem>>, vector<2x4xf32>
    %c0_80 = arith.constant 0 : index
    %c0_81 = arith.constant 0 : index
    %269 = vector.load %arg21[%c0_80, %c0_81] : memref<1x4xf32, #tpu.memory_space<vmem>>, vector<1x4xf32>
    %270 = vector.extract_strided_slice %268 {offsets = [0, 0], sizes = [1, 4], strides = [1, 1]} : vector<2x4xf32> to vector<1x4xf32>
    %271 = vector.shape_cast %270 : vector<1x4xf32> to vector<1x1x4xf32>
    %272 = vector.broadcast %258 : vector<12x1x1xf32> to vector<12x1x4xf32>
    %273 = vector.broadcast %271 : vector<1x1x4xf32> to vector<12x1x4xf32>
    %274 = arith.mulf %272, %273 : vector<12x1x4xf32>
    %275 = vector.extract_strided_slice %268 {offsets = [1, 0], sizes = [1, 4], strides = [1, 1]} : vector<2x4xf32> to vector<1x4xf32>
    %276 = vector.shape_cast %275 : vector<1x4xf32> to vector<1x1x4xf32>
    %277 = vector.broadcast %267 : vector<12x1x1xf32> to vector<12x1x4xf32>
    %278 = vector.broadcast %276 : vector<1x1x4xf32> to vector<12x1x4xf32>
    %279 = arith.mulf %277, %278 : vector<12x1x4xf32>
    %280 = arith.addf %274, %279 : vector<12x1x4xf32>
    %281 = vector.shape_cast %269 : vector<1x4xf32> to vector<1x1x4xf32>
    %282 = vector.broadcast %281 : vector<1x1x4xf32> to vector<12x1x4xf32>
    %283 = arith.addf %280, %282 : vector<12x1x4xf32>
    %c0_82 = arith.constant 0 : index
    %c0_83 = arith.constant 0 : index
    %c0_84 = arith.constant 0 : index
    %284 = vector.load %arg22[%c0_82, %c0_83, %c0_84] : memref<12x1x4xf32, #tpu.memory_space<vmem>>, vector<12x1x4xf32>
    tpu.vector_store %arg22[%c0_82, %c0_83, %c0_84], %283 {strides = array<i32>} : memref<12x1x4xf32, #tpu.memory_space<vmem>>, vector<12x1x4xf32>,
    return
  }
  func.func @transform_0(%arg0: i32) -> (i32, i32, i32) {
    %c0_i32 = arith.constant 0 : i32
    %c0_i32_0 = arith.constant 0 : i32
    %c0_i32_1 = arith.constant 0 : i32
    return %arg0, %c0_i32, %c0_i32_0 : i32, i32, i32
  }
  func.func @transform_1(%arg0: i32) -> (i32, i32) {
    %c0_i32 = arith.constant 0 : i32
    %c0_i32_0 = arith.constant 0 : i32
    %c0_i32_1 = arith.constant 0 : i32
    return %c0_i32, %c0_i32_0 : i32, i32
  }
  func.func @transform_2(%arg0: i32) -> (i32, i32) {
    %c0_i32 = arith.constant 0 : i32
    %c0_i32_0 = arith.constant 0 : i32
    %c0_i32_1 = arith.constant 0 : i32
    return %c0_i32, %c0_i32_0 : i32, i32
  }
  func.func @transform_3(%arg0: i32) -> (i32, i32) {
    %c0_i32 = arith.constant 0 : i32
    %c0_i32_0 = arith.constant 0 : i32
    %c0_i32_1 = arith.constant 0 : i32
    return %c0_i32, %c0_i32_0 : i32, i32
  }
  func.func @transform_4(%arg0: i32) -> (i32, i32) {
    %c0_i32 = arith.constant 0 : i32
    %c0_i32_0 = arith.constant 0 : i32
    %c0_i32_1 = arith.constant 0 : i32
    return %c0_i32, %c0_i32_0 : i32, i32
  }
  func.func @transform_5(%arg0: i32) -> (i32, i32) {
    %c0_i32 = arith.constant 0 : i32
    %c0_i32_0 = arith.constant 0 : i32
    %c0_i32_1 = arith.constant 0 : i32
    return %c0_i32, %c0_i32_0 : i32, i32
  }
  func.func @transform_6(%arg0: i32) -> (i32, i32) {
    %c0_i32 = arith.constant 0 : i32
    %c0_i32_0 = arith.constant 0 : i32
    %c0_i32_1 = arith.constant 0 : i32
    return %c0_i32, %c0_i32_0 : i32, i32
  }
  func.func @transform_7(%arg0: i32) -> (i32, i32) {
    %c0_i32 = arith.constant 0 : i32
    %c0_i32_0 = arith.constant 0 : i32
    %c0_i32_1 = arith.constant 0 : i32
    return %c0_i32, %c0_i32_0 : i32, i32
  }
  func.func @transform_8(%arg0: i32) -> (i32, i32) {
    %c0_i32 = arith.constant 0 : i32
    %c0_i32_0 = arith.constant 0 : i32
    %c0_i32_1 = arith.constant 0 : i32
    return %c0_i32, %c0_i32_0 : i32, i32
  }
  func.func @transform_9(%arg0: i32) -> (i32, i32) {
    %c0_i32 = arith.constant 0 : i32
    %c0_i32_0 = arith.constant 0 : i32
    %c0_i32_1 = arith.constant 0 : i32
    return %c0_i32, %c0_i32_0 : i32, i32
  }
  func.func @transform_10(%arg0: i32) -> (i32, i32) {
    %c0_i32 = arith.constant 0 : i32
    %c0_i32_0 = arith.constant 0 : i32
    %c0_i32_1 = arith.constant 0 : i32
    return %c0_i32, %c0_i32_0 : i32, i32
  }
  func.func @transform_11(%arg0: i32) -> (i32, i32) {
    %c0_i32 = arith.constant 0 : i32
    %c0_i32_0 = arith.constant 0 : i32
    %c0_i32_1 = arith.constant 0 : i32
    return %c0_i32, %c0_i32_0 : i32, i32
  }
  func.func @transform_12(%arg0: i32) -> (i32, i32) {
    %c0_i32 = arith.constant 0 : i32
    %c0_i32_0 = arith.constant 0 : i32
    %c0_i32_1 = arith.constant 0 : i32
    return %c0_i32, %c0_i32_0 : i32, i32
  }
  func.func @transform_13(%arg0: i32) -> (i32, i32) {
    %c0_i32 = arith.constant 0 : i32
    %c0_i32_0 = arith.constant 0 : i32
    %c0_i32_1 = arith.constant 0 : i32
    return %c0_i32, %c0_i32_0 : i32, i32
  }
  func.func @transform_14(%arg0: i32) -> (i32, i32) {
    %c0_i32 = arith.constant 0 : i32
    %c0_i32_0 = arith.constant 0 : i32
    %c0_i32_1 = arith.constant 0 : i32
    return %c0_i32, %c0_i32_0 : i32, i32
  }
  func.func @transform_15(%arg0: i32) -> (i32, i32) {
    %c0_i32 = arith.constant 0 : i32
    %c0_i32_0 = arith.constant 0 : i32
    %c0_i32_1 = arith.constant 0 : i32
    return %c0_i32, %c0_i32_0 : i32, i32
  }
  func.func @transform_16(%arg0: i32) -> (i32, i32) {
    %c0_i32 = arith.constant 0 : i32
    %c0_i32_0 = arith.constant 0 : i32
    %c0_i32_1 = arith.constant 0 : i32
    return %c0_i32, %c0_i32_0 : i32, i32
  }
  func.func @transform_17(%arg0: i32) -> (i32, i32) {
    %c0_i32 = arith.constant 0 : i32
    %c0_i32_0 = arith.constant 0 : i32
    %c0_i32_1 = arith.constant 0 : i32
    return %c0_i32, %c0_i32_0 : i32, i32
  }
  func.func @transform_18(%arg0: i32) -> (i32, i32) {
    %c0_i32 = arith.constant 0 : i32
    %c0_i32_0 = arith.constant 0 : i32
    %c0_i32_1 = arith.constant 0 : i32
    return %c0_i32, %c0_i32_0 : i32, i32
  }
  func.func @transform_19(%arg0: i32) -> (i32, i32) {
    %c0_i32 = arith.constant 0 : i32
    %c0_i32_0 = arith.constant 0 : i32
    %c0_i32_1 = arith.constant 0 : i32
    return %c0_i32, %c0_i32_0 : i32, i32
  }
  func.func @transform_20(%arg0: i32) -> (i32, i32) {
    %c0_i32 = arith.constant 0 : i32
    %c0_i32_0 = arith.constant 0 : i32
    %c0_i32_1 = arith.constant 0 : i32
    return %c0_i32, %c0_i32_0 : i32, i32
  }
  func.func @transform_21(%arg0: i32) -> (i32, i32, i32) {
    %c0_i32 = arith.constant 0 : i32
    %c0_i32_0 = arith.constant 0 : i32
    %c0_i32_1 = arith.constant 0 : i32
    return %arg0, %c0_i32, %c0_i32_0 : i32, i32, i32
  }
}

</mosaic_0001>

<llo_original>
// kernel: tpu_custom_call.1
$region0: #{tpu_custom_call.1}
  #allocation0 [shape = 'u32[]', space=smem, size = 0x4, offset = 0x4, fixed_abs, tag = 'smem constant byte address 0x4 - core index']
  #allocation1 [shape = 'u32[72,128]{1,0:T(1,128)}', space=vmem, size = 0x9000, scoped, tag = 'internal scratch']
  %s0 = inlined_call_operand.hbm [shape: f32[12,2,32], index: 0, kind: input, shape index: {}]
  %s1 = inlined_call_operand.vmem [shape: f32[2,32], index: 1, kind: input, shape index: {}]
  %s2 = inlined_call_operand.vmem [shape: f32[1,2], index: 2, kind: input, shape index: {}]
  %s3 = inlined_call_operand.vmem [shape: f32[2,2], index: 3, kind: input, shape index: {}]
  %s4 = inlined_call_operand.hbm [shape: f32[1,2], index: 4, kind: input, shape index: {}]
  %s5 = inlined_call_operand.vmem [shape: f32[2,2], index: 5, kind: input, shape index: {}]
  %s6 = inlined_call_operand.vmem [shape: f32[2,1], index: 6, kind: input, shape index: {}]
  %s7 = inlined_call_operand.vmem [shape: f32[2,2], index: 7, kind: input, shape index: {}]
  %s8 = inlined_call_operand.vmem [shape: f32[2,1], index: 8, kind: input, shape index: {}]
  %s9 = inlined_call_operand.vmem [shape: f32[2,2], index: 9, kind: input, shape index: {}]
  %s10 = inlined_call_operand.hbm [shape: f32[1,2], index: 10, kind: input, shape index: {}]
  %s11 = inlined_call_operand.vmem [shape: f32[1,2], index: 11, kind: input, shape index: {}]
  %s12 = inlined_call_operand.vmem [shape: f32[1,2], index: 12, kind: input, shape index: {}]
  %s13 = inlined_call_operand.hbm [shape: f32[2,2048], index: 13, kind: input, shape index: {}]
  %s14 = inlined_call_operand.hbm [shape: f32[1,2048], index: 14, kind: input, shape index: {}]
  %s15 = inlined_call_operand.hbm [shape: f32[2,2048], index: 15, kind: input, shape index: {}]
  %s16 = inlined_call_operand.vmem [shape: f32[1,2], index: 16, kind: input, shape index: {}]
  %s17 = inlined_call_operand.vmem [shape: f32[1,2], index: 17, kind: input, shape index: {}]
  %s18 = inlined_call_operand.vmem [shape: f32[1,2], index: 18, kind: input, shape index: {}]
  %s19 = inlined_call_operand.vmem [shape: f32[2,4], index: 19, kind: input, shape index: {}]
  %s20 = inlined_call_operand.vmem [shape: f32[1,4], index: 20, kind: input, shape index: {}]
  %s21 = inlined_call_operand.vmem [shape: f32[12,1,4], index: 21, kind: output, shape index: {}]
  %s22 = sld [smem:[#allocation0]]
  $region118: #{tpu_custom_call.1} parent=0
    _
  %s24 = ssub.s32 1, %s22
  %s25 = scalar_select 0, %s24, %s22
  $region1: #{tpu_custom_call.1} parent=0
    #allocation2 [shape = 'u8[12288]{0}', space=vmem, size = 0x3000, scoped, tag = 'input window, operand 0, single buffered']
    #allocation3 [shape = 's32[1]{0}', space=sflag, size = 0x4, scoped, tag = 'scoped memory for tpu_custom_call.1']
    #allocation4 [shape = 'u8[512]{0}', space=vmem, size = 0x400, scoped, tag = 'input window, operand 4, single buffered']
    #allocation5 [shape = 's32[1]{0}', space=sflag, size = 0x4, scoped, tag = 'scoped memory for tpu_custom_call.1']
    #allocation6 [shape = 'u8[512]{0}', space=vmem, size = 0x400, scoped, tag = 'input window, operand 10, single buffered']
    #allocation7 [shape = 'u8[16384]{0}', space=vmem, size = 0x4000, scoped, tag = 'input window, operand 13, single buffered']
    #allocation8 [shape = 's32[1]{0}', space=sflag, size = 0x4, scoped, tag = 'scoped memory for tpu_custom_call.1']
    #allocation9 [shape = 'u8[8192]{0}', space=vmem, size = 0x2000, scoped, tag = 'input window, operand 14, single buffered']
    #allocation10 [shape = 'u8[16384]{0}', space=vmem, size = 0x4000, scoped, tag = 'input window, operand 15, single buffered']
    #allocation11 [shape = 's32[1]{0}', space=sflag, size = 0x4, scoped, tag = 'scoped memory for tpu_custom_call.1']
    %26 = vsyncpa [#allocation3], 0
    %27 = vsyncpa [#allocation5], 0
    %28 = vsyncpa [#allocation8], 0
    %29 = vsyncpa [#allocation11], 0
    // Predicated region
    $region2: #{tpu_custom_call.1} parent=1 // pred_check
      _
    $region3: #{tpu_custom_call.1} parent=1 // pred_check_branch
      %31 = sbr.rel (0) target = $region5
    $region4: #{tpu_custom_call.1} parent=1 // pred_region
      %33 = vsyncadd [#allocation3], 0
      %s34 = sshll.u32 %s0, 4
      %s35 = int_to_ptr.hbm [resolvable:$true] %s34
      %s36 = sshll.u32 [#allocation2], 4
      %s37 = int_to_ptr.vmem [resolvable:$true] %s36
      %42 = dma.hbm_to_vmem [thread:$0]  %s35, 384, %s37, [#allocation3], 32, 32, 2
    $region5: #{tpu_custom_call.1} parent=1 // pred_fallthru
      _
    // Predicated region
    $region6: #{tpu_custom_call.1} parent=1 // pred_check
      _
    $region7: #{tpu_custom_call.1} parent=1 // pred_check_branch
      %44 = sbr.rel (0) target = $region9
    $region8: #{tpu_custom_call.1} parent=1 // pred_region
      _
    $region9: #{tpu_custom_call.1} parent=1 // pred_fallthru
      _
    // Predicated region
    $region10: #{tpu_custom_call.1} parent=1 // pred_check
      _
    $region11: #{tpu_custom_call.1} parent=1 // pred_check_branch
      %46 = sbr.rel (0) target = $region13
    $region12: #{tpu_custom_call.1} parent=1 // pred_region
      _
    $region13: #{tpu_custom_call.1} parent=1 // pred_fallthru
      _
    // Predicated region
    $region14: #{tpu_custom_call.1} parent=1 // pred_check
      _
    $region15: #{tpu_custom_call.1} parent=1 // pred_check_branch
      %48 = sbr.rel (0) target = $region17
    $region16: #{tpu_custom_call.1} parent=1 // pred_region
      _
    $region17: #{tpu_custom_call.1} parent=1 // pred_fallthru
      _
    // Predicated region
    $region18: #{tpu_custom_call.1} parent=1 // pred_check
      _
    $region19: #{tpu_custom_call.1} parent=1 // pred_check_branch
      %50 = sbr.rel (0) target = $region21
    $region20: #{tpu_custom_call.1} parent=1 // pred_region
      %52 = vsyncadd [#allocation5], 0
      %s54 = sshll.u32 %s4, 4
      %s55 = int_to_ptr.hbm [resolvable:$true] %s54
      %s56 = sshll.u32 [#allocation4], 4
      %s57 = int_to_ptr.vmem [resolvable:$true] %s56
      %59 = dma.hbm_to_vmem [thread:$0]  %s55, 16, %s57, [#allocation5]
    $region21: #{tpu_custom_call.1} parent=1 // pred_fallthru
      _
    // Predicated region
    $region22: #{tpu_custom_call.1} parent=1 // pred_check
      _
    $region23: #{tpu_custom_call.1} parent=1 // pred_check_branch
      %61 = sbr.rel (0) target = $region25
    $region24: #{tpu_custom_call.1} parent=1 // pred_region
      _
    $region25: #{tpu_custom_call.1} parent=1 // pred_fallthru
      _
    // Predicated region
    $region26: #{tpu_custom_call.1} parent=1 // pred_check
      _
    $region27: #{tpu_custom_call.1} parent=1 // pred_check_branch
      %63 = sbr.rel (0) target = $region29
    $region28: #{tpu_custom_call.1} parent=1 // pred_region
      _
    $region29: #{tpu_custom_call.1} parent=1 // pred_fallthru
      _
    // Predicated region
    $region30: #{tpu_custom_call.1} parent=1 // pred_check
      _
    $region31: #{tpu_custom_call.1} parent=1 // pred_check_branch
      %65 = sbr.rel (0) target = $region33
    $region32: #{tpu_custom_call.1} parent=1 // pred_region
      _
    $region33: #{tpu_custom_call.1} parent=1 // pred_fallthru
      _
    // Predicated region
    $region34: #{tpu_custom_call.1} parent=1 // pred_check
      _
    $region35: #{tpu_custom_call.1} parent=1 // pred_check_branch
      %67 = sbr.rel (0) target = $region37
    $region36: #{tpu_custom_call.1} parent=1 // pred_region
      _
    $region37: #{tpu_custom_call.1} parent=1 // pred_fallthru
      _
    // Predicated region
    $region38: #{tpu_custom_call.1} parent=1 // pred_check
      _
    $region39: #{tpu_custom_call.1} parent=1 // pred_check_branch
      %69 = sbr.rel (0) target = $region41
    $region40: #{tpu_custom_call.1} parent=1 // pred_region
      _
    $region41: #{tpu_custom_call.1} parent=1 // pred_fallthru
      _
    // Predicated region
    $region42: #{tpu_custom_call.1} parent=1 // pred_check
      _
    $region43: #{tpu_custom_call.1} parent=1 // pred_check_branch
      %71 = sbr.rel (0) target = $region45
    $region44: #{tpu_custom_call.1} parent=1 // pred_region
      %73 = vsyncadd [#allocation5], 0
      %s75 = sshll.u32 %s10, 4
      %s76 = int_to_ptr.hbm [resolvable:$true] %s75
      %s77 = sshll.u32 [#allocation6], 4
      %s78 = int_to_ptr.vmem [resolvable:$true] %s77
      %80 = dma.hbm_to_vmem [thread:$0]  %s76, 16, %s78, [#allocation5]
    $region45: #{tpu_custom_call.1} parent=1 // pred_fallthru
      _
    // Predicated region
    $region46: #{tpu_custom_call.1} parent=1 // pred_check
      _
    $region47: #{tpu_custom_call.1} parent=1 // pred_check_branch
      %82 = sbr.rel (0) target = $region49
    $region48: #{tpu_custom_call.1} parent=1 // pred_region
      _
    $region49: #{tpu_custom_call.1} parent=1 // pred_fallthru
      _
    // Predicated region
    $region50: #{tpu_custom_call.1} parent=1 // pred_check
      _
    $region51: #{tpu_custom_call.1} parent=1 // pred_check_branch
      %84 = sbr.rel (0) target = $region53
    $region52: #{tpu_custom_call.1} parent=1 // pred_region
      _
    $region53: #{tpu_custom_call.1} parent=1 // pred_fallthru
      _
    // Predicated region
    $region54: #{tpu_custom_call.1} parent=1 // pred_check
      _
    $region55: #{tpu_custom_call.1} parent=1 // pred_check_branch
      %86 = sbr.rel (0) target = $region57
    $region56: #{tpu_custom_call.1} parent=1 // pred_region
      %88 = vsyncadd [#allocation8], 0
      %s90 = sshll.u32 %s13, 4
      %s91 = int_to_ptr.hbm [resolvable:$true] %s90
      %s92 = sshll.u32 [#allocation7], 4
      %s93 = int_to_ptr.vmem [resolvable:$true] %s92
      %95 = dma.hbm_to_vmem [thread:$0]  %s91, 512, %s93, [#allocation8]
    $region57: #{tpu_custom_call.1} parent=1 // pred_fallthru
      _
    // Predicated region
    $region58: #{tpu_custom_call.1} parent=1 // pred_check
      _
    $region59: #{tpu_custom_call.1} parent=1 // pred_check_branch
      %97 = sbr.rel (0) target = $region61
    $region60: #{tpu_custom_call.1} parent=1 // pred_region
      %99 = vsyncadd [#allocation8], 0
      %s101 = sshll.u32 %s14, 4
      %s102 = int_to_ptr.hbm [resolvable:$true] %s101
      %s103 = sshll.u32 [#allocation9], 4
      %s104 = int_to_ptr.vmem [resolvable:$true] %s103
      %106 = dma.hbm_to_vmem [thread:$0]  %s102, 256, %s104, [#allocation8]
    $region61: #{tpu_custom_call.1} parent=1 // pred_fallthru
      _
    // Predicated region
    $region62: #{tpu_custom_call.1} parent=1 // pred_check
      _
    $region63: #{tpu_custom_call.1} parent=1 // pred_check_branch
      %108 = sbr.rel (0) target = $region65
    $region64: #{tpu_custom_call.1} parent=1 // pred_region
      %110 = vsyncadd [#allocation11], 0
      %s112 = sshll.u32 %s15, 4
      %s113 = int_to_ptr.hbm [resolvable:$true] %s112
      %s114 = sshll.u32 [#allocation10], 4
      %s115 = int_to_ptr.vmem [resolvable:$true] %s114
      %117 = dma.hbm_to_vmem [thread:$0]  %s113, 512, %s115, [#allocation11]
    $region65: #{tpu_custom_call.1} parent=1 // pred_fallthru
      _
    // Predicated region
    $region66: #{tpu_custom_call.1} parent=1 // pred_check
      _
    $region67: #{tpu_custom_call.1} parent=1 // pred_check_branch
      %119 = sbr.rel (0) target = $region69
    $region68: #{tpu_custom_call.1} parent=1 // pred_region
      _
    $region69: #{tpu_custom_call.1} parent=1 // pred_fallthru
      _
    // Predicated region
    $region70: #{tpu_custom_call.1} parent=1 // pred_check
      _
    $region71: #{tpu_custom_call.1} parent=1 // pred_check_branch
      %121 = sbr.rel (0) target = $region73
    $region72: #{tpu_custom_call.1} parent=1 // pred_region
      _
    $region73: #{tpu_custom_call.1} parent=1 // pred_fallthru
      _
    // Predicated region
    $region74: #{tpu_custom_call.1} parent=1 // pred_check
      _
    $region75: #{tpu_custom_call.1} parent=1 // pred_check_branch
      %123 = sbr.rel (0) target = $region77
    $region76: #{tpu_custom_call.1} parent=1 // pred_region
      _
    $region77: #{tpu_custom_call.1} parent=1 // pred_fallthru
      _
    // Predicated region
    $region78: #{tpu_custom_call.1} parent=1 // pred_check
      _
    $region79: #{tpu_custom_call.1} parent=1 // pred_check_branch
      %125 = sbr.rel (0) target = $region81
    $region80: #{tpu_custom_call.1} parent=1 // pred_region
      _
    $region81: #{tpu_custom_call.1} parent=1 // pred_fallthru
      _
    // Predicated region
    $region82: #{tpu_custom_call.1} parent=1 // pred_check
      _
    $region83: #{tpu_custom_call.1} parent=1 // pred_check_branch
      %127 = sbr.rel (0) target = $region85
    $region84: #{tpu_custom_call.1} parent=1 // pred_region
      _
    $region85: #{tpu_custom_call.1} parent=1 // pred_fallthru
      _
    // Predicated region
    $region86: #{tpu_custom_call.1} parent=1 // pred_check
      _
    $region87: #{tpu_custom_call.1} parent=1 // pred_check_branch
      %129 = sbr.rel (0) target = $region89
    $region88: #{tpu_custom_call.1} parent=1 // pred_region
      %131 = dma.done [#allocation3], 384
    $region89: #{tpu_custom_call.1} parent=1 // pred_fallthru
      _
    // Predicated region
    $region90: #{tpu_custom_call.1} parent=1 // pred_check
      _
    $region91: #{tpu_custom_call.1} parent=1 // pred_check_branch
      %133 = sbr.rel (0) target = $region93
    $region92: #{tpu_custom_call.1} parent=1 // pred_region
      %135 = dma.done [#allocation5], 16
    $region93: #{tpu_custom_call.1} parent=1 // pred_fallthru
      _
    // Predicated region
    $region94: #{tpu_custom_call.1} parent=1 // pred_check
      _
    $region95: #{tpu_custom_call.1} parent=1 // pred_check_branch
      %137 = sbr.rel (0) target = $region97
    $region96: #{tpu_custom_call.1} parent=1 // pred_region
      %139 = dma.done [#allocation5], 16
    $region97: #{tpu_custom_call.1} parent=1 // pred_fallthru
      _
    // Predicated region
    $region98: #{tpu_custom_call.1} parent=1 // pred_check
      _
    $region99: #{tpu_custom_call.1} parent=1 // pred_check_branch
      %141 = sbr.rel (0) target = $region101
    $region100: #{tpu_custom_call.1} parent=1 // pred_region
      %143 = dma.done [#allocation8], 512
    $region101: #{tpu_custom_call.1} parent=1 // pred_fallthru
      _
    // Predicated region
    $region102: #{tpu_custom_call.1} parent=1 // pred_check
      _
    $region103: #{tpu_custom_call.1} parent=1 // pred_check_branch
      %145 = sbr.rel (0) target = $region105
    $region104: #{tpu_custom_call.1} parent=1 // pred_region
      %147 = dma.done [#allocation8], 256
    $region105: #{tpu_custom_call.1} parent=1 // pred_fallthru
      _
    // Predicated region
    $region106: #{tpu_custom_call.1} parent=1 // pred_check
      _
    $region107: #{tpu_custom_call.1} parent=1 // pred_check_branch
      %149 = sbr.rel (0) target = $region109
    $region108: #{tpu_custom_call.1} parent=1 // pred_region
      %151 = dma.done [#allocation11], 512
    $region109: #{tpu_custom_call.1} parent=1 // pred_fallthru
      _
    %v152 = vld [vmem:[#allocation2] sm:$0x3]
    %v153 = vld [vmem:[#allocation2 + $0x2] sm:$0x3]
    %v154 = vld [vmem:[#allocation2 + $0x4] sm:$0x3]
    %v155 = vld [vmem:[#allocation2 + $0x6] sm:$0x3]
    %v156 = vld [vmem:[#allocation2 + $0x8] sm:$0x3]
    %v157 = vld [vmem:[#allocation2 + $0xa] sm:$0x3]
    %v158 = vld [vmem:[#allocation2 + $0xc] sm:$0x3]
    %v159 = vld [vmem:[#allocation2 + $0xe] sm:$0x3]
    %v160 = vld [vmem:[#allocation2 + $0x10] sm:$0x3]
    %v161 = vld [vmem:[#allocation2 + $0x12] sm:$0x3]
    %v162 = vld [vmem:[#allocation2 + $0x14] sm:$0x3]
    %v163 = vld [vmem:[#allocation2 + $0x16] sm:$0x3]
    %v164 = vmul.f32 %v152, 5.656854
    %v165 = vmul.f32 %v153, 5.656854
    %v166 = vmul.f32 %v154, 5.656854
    %v167 = vmul.f32 %v155, 5.656854
    %v168 = vmul.f32 %v156, 5.656854
    %v169 = vmul.f32 %v157, 5.656854
    %v170 = vmul.f32 %v158, 5.656854
    %v171 = vmul.f32 %v159, 5.656854
    %v172 = vmul.f32 %v160, 5.656854
    %v173 = vmul.f32 %v161, 5.656854
    %v174 = vmul.f32 %v162, 5.656854
    %v175 = vmul.f32 %v163, 5.656854
    %v176 = vld [vmem:[%s1] sm:$0x3]
    %v177 = vadd.f32 %v164, %v176
    %v178 = vadd.f32 %v165, %v176
    %v179 = vadd.f32 %v166, %v176
    %v180 = vadd.f32 %v167, %v176
    %v181 = vadd.f32 %v168, %v176
    %v182 = vadd.f32 %v169, %v176
    %v183 = vadd.f32 %v170, %v176
    %v184 = vadd.f32 %v171, %v176
    %v185 = vadd.f32 %v172, %v176
    %v186 = vadd.f32 %v173, %v176
    %v187 = vadd.f32 %v174, %v176
    %v188 = vadd.f32 %v175, %v176
    %v189 = vld [vmem:[%s2] sm:$0x1]
    %v190 = vld [vmem:[%s5] sm:$0x3]
    %192 = vset.pattern.permute.xlu0 0
    %193 = vperm.xlu0 %192, %v190
    %v194 = vpop.permute.xlu0 %193
    %v196 = vperm.slane %v177, 0
    %v197 = vperm.slane %v178, 0
    %v198 = vperm.slane %v179, 0
    %v199 = vperm.slane %v180, 0
    %v200 = vperm.slane %v181, 0
    %v201 = vperm.slane %v182, 0
    %v202 = vperm.slane %v183, 0
    %v203 = vperm.slane %v184, 0
    %v204 = vperm.slane %v185, 0
    %v205 = vperm.slane %v186, 0
    %v206 = vperm.slane %v187, 0
    %v207 = vperm.slane %v188, 0
    %v208 = vmul.f32 %v194, %v196
    %v209 = vmul.f32 %v194, %v197
    %v210 = vmul.f32 %v194, %v198
    %v211 = vmul.f32 %v194, %v199
    %v212 = vmul.f32 %v194, %v200
    %v213 = vmul.f32 %v194, %v201
    %v214 = vmul.f32 %v194, %v202
    %v215 = vmul.f32 %v194, %v203
    %v216 = vmul.f32 %v194, %v204
    %v217 = vmul.f32 %v194, %v205
    %v218 = vmul.f32 %v194, %v206
    %v219 = vmul.f32 %v194, %v207
    %220 = vset.pattern.permute.xlu0 1
    %221 = vperm.xlu0 %220, %v190
    %v222 = vpop.permute.xlu0 %221
    %v224 = vperm.slane %v177, 1
    %v225 = vperm.slane %v178, 1
    %v226 = vperm.slane %v179, 1
    %v227 = vperm.slane %v180, 1
    %v228 = vperm.slane %v181, 1
    %v229 = vperm.slane %v182, 1
    %v230 = vperm.slane %v183, 1
    %v231 = vperm.slane %v184, 1
    %v232 = vperm.slane %v185, 1
    %v233 = vperm.slane %v186, 1
    %v234 = vperm.slane %v187, 1
    %v235 = vperm.slane %v188, 1
    %v236 = vmul.f32 %v222, %v224
    %v237 = vmul.f32 %v222, %v225
    %v238 = vmul.f32 %v222, %v226
    %v239 = vmul.f32 %v222, %v227
    %v240 = vmul.f32 %v222, %v228
    %v241 = vmul.f32 %v222, %v229
    %v242 = vmul.f32 %v222, %v230
    %v243 = vmul.f32 %v222, %v231
    %v244 = vmul.f32 %v222, %v232
    %v245 = vmul.f32 %v222, %v233
    %v246 = vmul.f32 %v222, %v234
    %v247 = vmul.f32 %v222, %v235
    %v248 = vadd.f32 %v208, %v236
    %v249 = vadd.f32 %v209, %v237
    %v250 = vadd.f32 %v210, %v238
    %v251 = vadd.f32 %v211, %v239
    %v252 = vadd.f32 %v212, %v240
    %v253 = vadd.f32 %v213, %v241
    %v254 = vadd.f32 %v214, %v242
    %v255 = vadd.f32 %v215, %v243
    %v256 = vadd.f32 %v216, %v244
    %v257 = vadd.f32 %v217, %v245
    %v258 = vadd.f32 %v218, %v246
    %v259 = vadd.f32 %v219, %v247
    %v260 = vld [vmem:[%s6] sm:$0x3]
    %262 = vset.pattern.permute.xlu0 0
    %263 = vperm.xlu0 %262, %v260
    %v264 = vpop.permute.xlu0 %263
    %v266 = vadd.f32 %v248, %v264
    %v267 = vadd.f32 %v249, %v264
    %v268 = vadd.f32 %v250, %v264
    %v269 = vadd.f32 %v251, %v264
    %v270 = vadd.f32 %v252, %v264
    %v271 = vadd.f32 %v253, %v264
    %v272 = vadd.f32 %v254, %v264
    %v273 = vadd.f32 %v255, %v264
    %v274 = vadd.f32 %v256, %v264
    %v275 = vadd.f32 %v257, %v264
    %v276 = vadd.f32 %v258, %v264
    %v277 = vadd.f32 %v259, %v264
    %v278 = vld [vmem:[%s7] sm:$0x3]
    %280 = vset.pattern.permute.xlu0 0
    %281 = vperm.xlu0 %280, %v278
    %v282 = vpop.permute.xlu0 %281
    %v284 = vmul.f32 %v282, %v196
    %v285 = vmul.f32 %v282, %v197
    %v286 = vmul.f32 %v282, %v198
    %v287 = vmul.f32 %v282, %v199
    %v288 = vmul.f32 %v282, %v200
    %v289 = vmul.f32 %v282, %v201
    %v290 = vmul.f32 %v282, %v202
    %v291 = vmul.f32 %v282, %v203
    %v292 = vmul.f32 %v282, %v204
    %v293 = vmul.f32 %v282, %v205
    %v294 = vmul.f32 %v282, %v206
    %v295 = vmul.f32 %v282, %v207
    %296 = vset.pattern.permute.xlu0 1
    %297 = vperm.xlu0 %296, %v278
    %v298 = vpop.permute.xlu0 %297
    %v300 = vmul.f32 %v298, %v224
    %v301 = vmul.f32 %v298, %v225
    %v302 = vmul.f32 %v298, %v226
    %v303 = vmul.f32 %v298, %v227
    %v304 = vmul.f32 %v298, %v228
    %v305 = vmul.f32 %v298, %v229
    %v306 = vmul.f32 %v298, %v230
    %v307 = vmul.f32 %v298, %v231
    %v308 = vmul.f32 %v298, %v232
    %v309 = vmul.f32 %v298, %v233
    %v310 = vmul.f32 %v298, %v234
    %v311 = vmul.f32 %v298, %v235
    %v312 = vadd.f32 %v284, %v300
    %v313 = vadd.f32 %v285, %v301
    %v314 = vadd.f32 %v286, %v302
    %v315 = vadd.f32 %v287, %v303
    %v316 = vadd.f32 %v288, %v304
    %v317 = vadd.f32 %v289, %v305
    %v318 = vadd.f32 %v290, %v306
    %v319 = vadd.f32 %v291, %v307
    %v320 = vadd.f32 %v292, %v308
    %v321 = vadd.f32 %v293, %v309
    %v322 = vadd.f32 %v294, %v310
    %v323 = vadd.f32 %v295, %v311
    %v324 = vld [vmem:[%s8] sm:$0x3]
    %326 = vset.pattern.permute.xlu0 0
    %327 = vperm.xlu0 %326, %v324
    %v328 = vpop.permute.xlu0 %327
    %v330 = vadd.f32 %v312, %v328
    %v331 = vadd.f32 %v313, %v328
    %v332 = vadd.f32 %v314, %v328
    %v333 = vadd.f32 %v315, %v328
    %v334 = vadd.f32 %v316, %v328
    %v335 = vadd.f32 %v317, %v328
    %v336 = vadd.f32 %v318, %v328
    %v337 = vadd.f32 %v319, %v328
    %v338 = vadd.f32 %v320, %v328
    %v339 = vadd.f32 %v321, %v328
    %v340 = vadd.f32 %v322, %v328
    %v341 = vadd.f32 %v323, %v328
    %v343 = vperm.slane %v189, 0
    %v345 = vmul.f32 %v190, %v343
    %347 = vrot.lane.b32.xlu0 %v345, 127
    %v348 = vpop.permute.xlu0 %347
    %v350 = vadd.f32 %v345, %v348
    %v351 = vadd.f32 %v350, %v260
    %v352 = vmul.f32 %v278, %v343
    %354 = vrot.lane.b32.xlu0 %v352, 127
    %v355 = vpop.permute.xlu0 %354
    %v357 = vadd.f32 %v352, %v355
    %v358 = vadd.f32 %v357, %v324
    %v359 = vld [vmem:[%s3] sm:$0x1]
    %360 = vset.pattern.permute.xlu0 0
    %361 = vperm.xlu0 %360, %v189
    %v362 = vpop.permute.xlu0 %361
    %v364 = vperm.slane %v362, 0
    %v365 = vmul.f32 %v364, %v359
    %v366 = vld [vmem:[%s3 + $0x1] sm:$0x1]
    %367 = vset.pattern.permute.xlu0 1
    %368 = vperm.xlu0 %367, %v189
    %v369 = vpop.permute.xlu0 %368
    %v371 = vperm.slane %v369, 0
    %v372 = vmul.f32 %v371, %v366
    %v373 = vadd.f32 %v365, %v372
    %v374 = vld [vmem:[#allocation4] sm:$0x1]
    %v375 = vadd.f32 %v373, %v374
    %377 = vset.pattern.permute.xlu0 0
    %378 = vperm.xlu0 %377, %v375
    %v379 = vpop.permute.xlu0 %378
    %v381 = vmul.f32 %v379, %v266
    %v382 = vmul.f32 %v379, %v267
    %v383 = vmul.f32 %v379, %v268
    %v384 = vmul.f32 %v379, %v269
    %v385 = vmul.f32 %v379, %v270
    %v386 = vmul.f32 %v379, %v271
    %v387 = vmul.f32 %v379, %v272
    %v388 = vmul.f32 %v379, %v273
    %v389 = vmul.f32 %v379, %v274
    %v390 = vmul.f32 %v379, %v275
    %v391 = vmul.f32 %v379, %v276
    %v392 = vmul.f32 %v379, %v277
    %v393 = vmul.f32 %v375, %v351
    %vm394 = vcmask 253952
    %v395 = vsel %vm394, %v381, -inf
    %396 = vmax.xlane.f32.xlu0 %v395
    %v397 = vpop.xlane.xlu0 %396
    %v398 = vsel %vm394, %v382, -inf
    %399 = vmax.xlane.f32.xlu0 %v398
    %v400 = vpop.xlane.xlu0 %399
    %v401 = vsel %vm394, %v383, -inf
    %402 = vmax.xlane.f32.xlu0 %v401
    %v403 = vpop.xlane.xlu0 %402
    %v404 = vsel %vm394, %v384, -inf
    %405 = vmax.xlane.f32.xlu0 %v404
    %v406 = vpop.xlane.xlu0 %405
    %v407 = vsel %vm394, %v385, -inf
    %408 = vmax.xlane.f32.xlu0 %v407
    %v409 = vpop.xlane.xlu0 %408
    %v410 = vsel %vm394, %v386, -inf
    %411 = vmax.xlane.f32.xlu0 %v410
    %v412 = vpop.xlane.xlu0 %411
    %v413 = vsel %vm394, %v387, -inf
    %414 = vmax.xlane.f32.xlu0 %v413
    %v415 = vpop.xlane.xlu0 %414
    %v416 = vsel %vm394, %v388, -inf
    %417 = vmax.xlane.f32.xlu0 %v416
    %v418 = vpop.xlane.xlu0 %417
    %v419 = vsel %vm394, %v389, -inf
    %420 = vmax.xlane.f32.xlu0 %v419
    %v421 = vpop.xlane.xlu0 %420
    %v422 = vsel %vm394, %v390, -inf
    %423 = vmax.xlane.f32.xlu0 %v422
    %v424 = vpop.xlane.xlu0 %423
    %v425 = vsel %vm394, %v391, -inf
    %426 = vmax.xlane.f32.xlu0 %v425
    %v427 = vpop.xlane.xlu0 %426
    %v428 = vsel %vm394, %v392, -inf
    %429 = vmax.xlane.f32.xlu0 %v428
    %v430 = vpop.xlane.xlu0 %429
    %v431 = vmax.f32 %v397, %v393
    %v432 = vmax.f32 %v400, %v393
    %v433 = vmax.f32 %v403, %v393
    %v434 = vmax.f32 %v406, %v393
    %v435 = vmax.f32 %v409, %v393
    %v436 = vmax.f32 %v412, %v393
    %v437 = vmax.f32 %v415, %v393
    %v438 = vmax.f32 %v418, %v393
    %v439 = vmax.f32 %v421, %v393
    %v440 = vmax.f32 %v424, %v393
    %v441 = vmax.f32 %v427, %v393
    %v442 = vmax.f32 %v430, %v393
    %444 = vset.pattern.permute.xlu0 0
    %445 = vperm.xlu0 %444, %v431
    %v446 = vpop.permute.xlu0 %445
    %449 = vset.pattern.permute.xlu0 0
    %450 = vperm.xlu0 %449, %v432
    %v451 = vpop.permute.xlu0 %450
    %454 = vset.pattern.permute.xlu0 0
    %455 = vperm.xlu0 %454, %v433
    %v456 = vpop.permute.xlu0 %455
    %459 = vset.pattern.permute.xlu0 0
    %460 = vperm.xlu0 %459, %v434
    %v461 = vpop.permute.xlu0 %460
    %464 = vset.pattern.permute.xlu0 0
    %465 = vperm.xlu0 %464, %v435
    %v466 = vpop.permute.xlu0 %465
    %469 = vset.pattern.permute.xlu0 0
    %470 = vperm.xlu0 %469, %v436
    %v471 = vpop.permute.xlu0 %470
    %474 = vset.pattern.permute.xlu0 0
    %475 = vperm.xlu0 %474, %v437
    %v476 = vpop.permute.xlu0 %475
    %479 = vset.pattern.permute.xlu0 0
    %480 = vperm.xlu0 %479, %v438
    %v481 = vpop.permute.xlu0 %480
    %484 = vset.pattern.permute.xlu0 0
    %485 = vperm.xlu0 %484, %v439
    %v486 = vpop.permute.xlu0 %485
    %489 = vset.pattern.permute.xlu0 0
    %490 = vperm.xlu0 %489, %v440
    %v491 = vpop.permute.xlu0 %490
    %494 = vset.pattern.permute.xlu0 0
    %495 = vperm.xlu0 %494, %v441
    %v496 = vpop.permute.xlu0 %495
    %499 = vset.pattern.permute.xlu0 0
    %500 = vperm.xlu0 %499, %v442
    %v501 = vpop.permute.xlu0 %500
    %v503 = vsub.f32 %v381, %v446
    %v504 = vsub.f32 %v382, %v451
    %v505 = vsub.f32 %v383, %v456
    %v506 = vsub.f32 %v384, %v461
    %v507 = vsub.f32 %v385, %v466
    %v508 = vsub.f32 %v386, %v471
    %v509 = vsub.f32 %v387, %v476
    %v510 = vsub.f32 %v388, %v481
    %v511 = vsub.f32 %v389, %v486
    %v512 = vsub.f32 %v390, %v491
    %v513 = vsub.f32 %v391, %v496
    %v514 = vsub.f32 %v392, %v501
    %v515 = vmul.f32 %v503, 1.442695
    %v516 = vpow.pop %v515
    %v517 = vmul.f32 %v504, 1.442695
    %v518 = vpow.pop %v517
    %v519 = vmul.f32 %v505, 1.442695
    %v520 = vpow.pop %v519
    %v521 = vmul.f32 %v506, 1.442695
    %v522 = vpow.pop %v521
    %v523 = vmul.f32 %v507, 1.442695
    %v524 = vpow.pop %v523
    %v525 = vmul.f32 %v508, 1.442695
    %v526 = vpow.pop %v525
    %v527 = vmul.f32 %v509, 1.442695
    %v528 = vpow.pop %v527
    %v529 = vmul.f32 %v510, 1.442695
    %v530 = vpow.pop %v529
    %v531 = vmul.f32 %v511, 1.442695
    %v532 = vpow.pop %v531
    %v533 = vmul.f32 %v512, 1.442695
    %v534 = vpow.pop %v533
    %v535 = vmul.f32 %v513, 1.442695
    %v536 = vpow.pop %v535
    %v537 = vmul.f32 %v514, 1.442695
    %v538 = vpow.pop %v537
    %v539 = vsub.f32 %v393, %v431
    %v540 = vsub.f32 %v393, %v432
    %v541 = vsub.f32 %v393, %v433
    %v542 = vsub.f32 %v393, %v434
    %v543 = vsub.f32 %v393, %v435
    %v544 = vsub.f32 %v393, %v436
    %v545 = vsub.f32 %v393, %v437
    %v546 = vsub.f32 %v393, %v438
    %v547 = vsub.f32 %v393, %v439
    %v548 = vsub.f32 %v393, %v440
    %v549 = vsub.f32 %v393, %v441
    %v550 = vsub.f32 %v393, %v442
    %v551 = vmul.f32 %v539, 1.442695
    %v552 = vpow.pop %v551
    %v553 = vmul.f32 %v540, 1.442695
    %v554 = vpow.pop %v553
    %v555 = vmul.f32 %v541, 1.442695
    %v556 = vpow.pop %v555
    %v557 = vmul.f32 %v542, 1.442695
    %v558 = vpow.pop %v557
    %v559 = vmul.f32 %v543, 1.442695
    %v560 = vpow.pop %v559
    %v561 = vmul.f32 %v544, 1.442695
    %v562 = vpow.pop %v561
    %v563 = vmul.f32 %v545, 1.442695
    %v564 = vpow.pop %v563
    %v565 = vmul.f32 %v546, 1.442695
    %v566 = vpow.pop %v565
    %v567 = vmul.f32 %v547, 1.442695
    %v568 = vpow.pop %v567
    %v569 = vmul.f32 %v548, 1.442695
    %v570 = vpow.pop %v569
    %v571 = vmul.f32 %v549, 1.442695
    %v572 = vpow.pop %v571
    %v573 = vmul.f32 %v550, 1.442695
    %v574 = vpow.pop %v573
    %v575 = vsel %vm394, %v516, 0.0
    %576 = vadd.xlane.f32.xlu0 %v575
    %v577 = vpop.xlane.xlu0 %576
    %v578 = vsel %vm394, %v518, 0.0
    %579 = vadd.xlane.f32.xlu0 %v578
    %v580 = vpop.xlane.xlu0 %579
    %v581 = vsel %vm394, %v520, 0.0
    %582 = vadd.xlane.f32.xlu0 %v581
    %v583 = vpop.xlane.xlu0 %582
    %v584 = vsel %vm394, %v522, 0.0
    %585 = vadd.xlane.f32.xlu0 %v584
    %v586 = vpop.xlane.xlu0 %585
    %v587 = vsel %vm394, %v524, 0.0
    %588 = vadd.xlane.f32.xlu0 %v587
    %v589 = vpop.xlane.xlu0 %588
    %v590 = vsel %vm394, %v526, 0.0
    %591 = vadd.xlane.f32.xlu0 %v590
    %v592 = vpop.xlane.xlu0 %591
    %v593 = vsel %vm394, %v528, 0.0
    %594 = vadd.xlane.f32.xlu0 %v593
    %v595 = vpop.xlane.xlu0 %594
    %v596 = vsel %vm394, %v530, 0.0
    %597 = vadd.xlane.f32.xlu0 %v596
    %v598 = vpop.xlane.xlu0 %597
    %v599 = vsel %vm394, %v532, 0.0
    %600 = vadd.xlane.f32.xlu0 %v599
    %v601 = vpop.xlane.xlu0 %600
    %v602 = vsel %vm394, %v534, 0.0
    %603 = vadd.xlane.f32.xlu0 %v602
    %v604 = vpop.xlane.xlu0 %603
    %v605 = vsel %vm394, %v536, 0.0
    %606 = vadd.xlane.f32.xlu0 %v605
    %v607 = vpop.xlane.xlu0 %606
    %v608 = vsel %vm394, %v538, 0.0
    %609 = vadd.xlane.f32.xlu0 %v608
    %v610 = vpop.xlane.xlu0 %609
    %v611 = vadd.f32 %v577, %v552
    %v612 = vadd.f32 %v580, %v554
    %v613 = vadd.f32 %v583, %v556
    %v614 = vadd.f32 %v586, %v558
    %v615 = vadd.f32 %v589, %v560
    %v616 = vadd.f32 %v592, %v562
    %v617 = vadd.f32 %v595, %v564
    %v618 = vadd.f32 %v598, %v566
    %v619 = vadd.f32 %v601, %v568
    %v620 = vadd.f32 %v604, %v570
    %v621 = vadd.f32 %v607, %v572
    %v622 = vadd.f32 %v610, %v574
    %v623 = vmul.f32 %v516, %v330
    %v624 = vmul.f32 %v518, %v331
    %v625 = vmul.f32 %v520, %v332
    %v626 = vmul.f32 %v522, %v333
    %v627 = vmul.f32 %v524, %v334
    %v628 = vmul.f32 %v526, %v335
    %v629 = vmul.f32 %v528, %v336
    %v630 = vmul.f32 %v530, %v337
    %v631 = vmul.f32 %v532, %v338
    %v632 = vmul.f32 %v534, %v339
    %v633 = vmul.f32 %v536, %v340
    %v634 = vmul.f32 %v538, %v341
    %v635 = vsel %vm394, %v623, 0.0
    %636 = vadd.xlane.f32.xlu0 %v635
    %v637 = vpop.xlane.xlu0 %636
    %v638 = vsel %vm394, %v624, 0.0
    %639 = vadd.xlane.f32.xlu0 %v638
    %v640 = vpop.xlane.xlu0 %639
    %v641 = vsel %vm394, %v625, 0.0
    %642 = vadd.xlane.f32.xlu0 %v641
    %v643 = vpop.xlane.xlu0 %642
    %v644 = vsel %vm394, %v626, 0.0
    %645 = vadd.xlane.f32.xlu0 %v644
    %v646 = vpop.xlane.xlu0 %645
    %v647 = vsel %vm394, %v627, 0.0
    %648 = vadd.xlane.f32.xlu0 %v647
    %v649 = vpop.xlane.xlu0 %648
    %v650 = vsel %vm394, %v628, 0.0
    %651 = vadd.xlane.f32.xlu0 %v650
    %v652 = vpop.xlane.xlu0 %651
    %v653 = vsel %vm394, %v629, 0.0
    %654 = vadd.xlane.f32.xlu0 %v653
    %v655 = vpop.xlane.xlu0 %654
    %v656 = vsel %vm394, %v630, 0.0
    %657 = vadd.xlane.f32.xlu0 %v656
    %v658 = vpop.xlane.xlu0 %657
    %v659 = vsel %vm394, %v631, 0.0
    %660 = vadd.xlane.f32.xlu0 %v659
    %v661 = vpop.xlane.xlu0 %660
    %v662 = vsel %vm394, %v632, 0.0
    %663 = vadd.xlane.f32.xlu0 %v662
    %v664 = vpop.xlane.xlu0 %663
    %v665 = vsel %vm394, %v633, 0.0
    %666 = vadd.xlane.f32.xlu0 %v665
    %v667 = vpop.xlane.xlu0 %666
    %v668 = vsel %vm394, %v634, 0.0
    %669 = vadd.xlane.f32.xlu0 %v668
    %v670 = vpop.xlane.xlu0 %669
    %v671 = vmul.f32 %v552, %v358
    %v672 = vmul.f32 %v554, %v358
    %v673 = vmul.f32 %v556, %v358
    %v674 = vmul.f32 %v558, %v358
    %v675 = vmul.f32 %v560, %v358
    %v676 = vmul.f32 %v562, %v358
    %v677 = vmul.f32 %v564, %v358
    %v678 = vmul.f32 %v566, %v358
    %v679 = vmul.f32 %v568, %v358
    %v680 = vmul.f32 %v570, %v358
    %v681 = vmul.f32 %v572, %v358
    %v682 = vmul.f32 %v574, %v358
    %v683 = vadd.f32 %v637, %v671
    %v684 = vadd.f32 %v640, %v672
    %v685 = vadd.f32 %v643, %v673
    %v686 = vadd.f32 %v646, %v674
    %v687 = vadd.f32 %v649, %v675
    %v688 = vadd.f32 %v652, %v676
    %v689 = vadd.f32 %v655, %v677
    %v690 = vadd.f32 %v658, %v678
    %v691 = vadd.f32 %v661, %v679
    %v692 = vadd.f32 %v664, %v680
    %v693 = vadd.f32 %v667, %v681
    %v694 = vadd.f32 %v670, %v682
    %v695 = vrcp.pop %v611
    %v696 = vmul.f32 %v611, %v695
    %v697 = vsub.f32 1.0, %v696
    %v698 = vmul.f32 %v695, %v697
    %v699 = vadd.f32 %v695, %v698
    %vm700 = vweird.f32 %v611
    %vm701 = vweird.f32 %v695
    %vm702 = vmor %vm700, %vm701
    %v703 = vsel %vm702, %v695, %v699
    %v704 = vand.u32 2147483647, %v611
    %vm705 = vcmp.eq.f32.partialorder %v704, 8.507059e+37
    %v706 = vand.u32 %v611, 2147483648
    %v707 = vor.u32 1.1754944e-38, %v706
    %v708 = vsel %vm705, %v707, %v703
    %v709 = vmul.f32 %v683, %v708
    %v710 = vrcp.pop %v612
    %v711 = vmul.f32 %v612, %v710
    %v712 = vsub.f32 1.0, %v711
    %v713 = vmul.f32 %v710, %v712
    %v714 = vadd.f32 %v710, %v713
    %vm715 = vweird.f32 %v612
    %vm716 = vweird.f32 %v710
    %vm717 = vmor %vm715, %vm716
    %v718 = vsel %vm717, %v710, %v714
    %v719 = vand.u32 2147483647, %v612
    %vm720 = vcmp.eq.f32.partialorder %v719, 8.507059e+37
    %v721 = vand.u32 %v612, 2147483648
    %v722 = vor.u32 1.1754944e-38, %v721
    %v723 = vsel %vm720, %v722, %v718
    %v724 = vmul.f32 %v684, %v723
    %v725 = vrcp.pop %v613
    %v726 = vmul.f32 %v613, %v725
    %v727 = vsub.f32 1.0, %v726
    %v728 = vmul.f32 %v725, %v727
    %v729 = vadd.f32 %v725, %v728
    %vm730 = vweird.f32 %v613
    %vm731 = vweird.f32 %v725
    %vm732 = vmor %vm730, %vm731
    %v733 = vsel %vm732, %v725, %v729
    %v734 = vand.u32 2147483647, %v613
    %vm735 = vcmp.eq.f32.partialorder %v734, 8.507059e+37
    %v736 = vand.u32 %v613, 2147483648
    %v737 = vor.u32 1.1754944e-38, %v736
    %v738 = vsel %vm735, %v737, %v733
    %v739 = vmul.f32 %v685, %v738
    %v740 = vrcp.pop %v614
    %v741 = vmul.f32 %v614, %v740
    %v742 = vsub.f32 1.0, %v741
    %v743 = vmul.f32 %v740, %v742
    %v744 = vadd.f32 %v740, %v743
    %vm745 = vweird.f32 %v614
    %vm746 = vweird.f32 %v740
    %vm747 = vmor %vm745, %vm746
    %v748 = vsel %vm747, %v740, %v744
    %v749 = vand.u32 2147483647, %v614
    %vm750 = vcmp.eq.f32.partialorder %v749, 8.507059e+37
    %v751 = vand.u32 %v614, 2147483648
    %v752 = vor.u32 1.1754944e-38, %v751
    %v753 = vsel %vm750, %v752, %v748
    %v754 = vmul.f32 %v686, %v753
    %v755 = vrcp.pop %v615
    %v756 = vmul.f32 %v615, %v755
    %v757 = vsub.f32 1.0, %v756
    %v758 = vmul.f32 %v755, %v757
    %v759 = vadd.f32 %v755, %v758
    %vm760 = vweird.f32 %v615
    %vm761 = vweird.f32 %v755
    %vm762 = vmor %vm760, %vm761
    %v763 = vsel %vm762, %v755, %v759
    %v764 = vand.u32 2147483647, %v615
    %vm765 = vcmp.eq.f32.partialorder %v764, 8.507059e+37
    %v766 = vand.u32 %v615, 2147483648
    %v767 = vor.u32 1.1754944e-38, %v766
    %v768 = vsel %vm765, %v767, %v763
    %v769 = vmul.f32 %v687, %v768
    %v770 = vrcp.pop %v616
    %v771 = vmul.f32 %v616, %v770
    %v772 = vsub.f32 1.0, %v771
    %v773 = vmul.f32 %v770, %v772
    %v774 = vadd.f32 %v770, %v773
    %vm775 = vweird.f32 %v616
    %vm776 = vweird.f32 %v770
    %vm777 = vmor %vm775, %vm776
    %v778 = vsel %vm777, %v770, %v774
    %v779 = vand.u32 2147483647, %v616
    %vm780 = vcmp.eq.f32.partialorder %v779, 8.507059e+37
    %v781 = vand.u32 %v616, 2147483648
    %v782 = vor.u32 1.1754944e-38, %v781
    %v783 = vsel %vm780, %v782, %v778
    %v784 = vmul.f32 %v688, %v783
    %v785 = vrcp.pop %v617
    %v786 = vmul.f32 %v617, %v785
    %v787 = vsub.f32 1.0, %v786
    %v788 = vmul.f32 %v785, %v787
    %v789 = vadd.f32 %v785, %v788
    %vm790 = vweird.f32 %v617
    %vm791 = vweird.f32 %v785
    %vm792 = vmor %vm790, %vm791
    %v793 = vsel %vm792, %v785, %v789
    %v794 = vand.u32 2147483647, %v617
    %vm795 = vcmp.eq.f32.partialorder %v794, 8.507059e+37
    %v796 = vand.u32 %v617, 2147483648
    %v797 = vor.u32 1.1754944e-38, %v796
    %v798 = vsel %vm795, %v797, %v793
    %v799 = vmul.f32 %v689, %v798
    %v800 = vrcp.pop %v618
    %v801 = vmul.f32 %v618, %v800
    %v802 = vsub.f32 1.0, %v801
    %v803 = vmul.f32 %v800, %v802
    %v804 = vadd.f32 %v800, %v803
    %vm805 = vweird.f32 %v618
    %vm806 = vweird.f32 %v800
    %vm807 = vmor %vm805, %vm806
    %v808 = vsel %vm807, %v800, %v804
    %v809 = vand.u32 2147483647, %v618
    %vm810 = vcmp.eq.f32.partialorder %v809, 8.507059e+37
    %v811 = vand.u32 %v618, 2147483648
    %v812 = vor.u32 1.1754944e-38, %v811
    %v813 = vsel %vm810, %v812, %v808
    %v814 = vmul.f32 %v690, %v813
    %v815 = vrcp.pop %v619
    %v816 = vmul.f32 %v619, %v815
    %v817 = vsub.f32 1.0, %v816
    %v818 = vmul.f32 %v815, %v817
    %v819 = vadd.f32 %v815, %v818
    %vm820 = vweird.f32 %v619
    %vm821 = vweird.f32 %v815
    %vm822 = vmor %vm820, %vm821
    %v823 = vsel %vm822, %v815, %v819
    %v824 = vand.u32 2147483647, %v619
    %vm825 = vcmp.eq.f32.partialorder %v824, 8.507059e+37
    %v826 = vand.u32 %v619, 2147483648
    %v827 = vor.u32 1.1754944e-38, %v826
    %v828 = vsel %vm825, %v827, %v823
    %v829 = vmul.f32 %v691, %v828
    %v830 = vrcp.pop %v620
    %v831 = vmul.f32 %v620, %v830
    %v832 = vsub.f32 1.0, %v831
    %v833 = vmul.f32 %v830, %v832
    %v834 = vadd.f32 %v830, %v833
    %vm835 = vweird.f32 %v620
    %vm836 = vweird.f32 %v830
    %vm837 = vmor %vm835, %vm836
    %v838 = vsel %vm837, %v830, %v834
    %v839 = vand.u32 2147483647, %v620
    %vm840 = vcmp.eq.f32.partialorder %v839, 8.507059e+37
    %v841 = vand.u32 %v620, 2147483648
    %v842 = vor.u32 1.1754944e-38, %v841
    %v843 = vsel %vm840, %v842, %v838
    %v844 = vmul.f32 %v692, %v843
    %v845 = vrcp.pop %v621
    %v846 = vmul.f32 %v621, %v845
    %v847 = vsub.f32 1.0, %v846
    %v848 = vmul.f32 %v845, %v847
    %v849 = vadd.f32 %v845, %v848
    %vm850 = vweird.f32 %v621
    %vm851 = vweird.f32 %v845
    %vm852 = vmor %vm850, %vm851
    %v853 = vsel %vm852, %v845, %v849
    %v854 = vand.u32 2147483647, %v621
    %vm855 = vcmp.eq.f32.partialorder %v854, 8.507059e+37
    %v856 = vand.u32 %v621, 2147483648
    %v857 = vor.u32 1.1754944e-38, %v856
    %v858 = vsel %vm855, %v857, %v853
    %v859 = vmul.f32 %v693, %v858
    %v860 = vrcp.pop %v622
    %v861 = vmul.f32 %v622, %v860
    %v862 = vsub.f32 1.0, %v861
    %v863 = vmul.f32 %v860, %v862
    %v864 = vadd.f32 %v860, %v863
    %vm865 = vweird.f32 %v622
    %vm866 = vweird.f32 %v860
    %vm867 = vmor %vm865, %vm866
    %v868 = vsel %vm867, %v860, %v864
    %v869 = vand.u32 2147483647, %v622
    %vm870 = vcmp.eq.f32.partialorder %v869, 8.507059e+37
    %v871 = vand.u32 %v622, 2147483648
    %v872 = vor.u32 1.1754944e-38, %v871
    %v873 = vsel %vm870, %v872, %v868
    %v874 = vmul.f32 %v694, %v873
    %875 = vset.pattern.permute.xlu0 1
    %876 = vperm.xlu0 %875, %v375
    %v877 = vpop.permute.xlu0 %876
    %v891 = vrot.slane %v266, 1
    %v892 = vrot.slane %v267, 1
    %v893 = vrot.slane %v268, 1
    %v894 = vrot.slane %v269, 1
    %v895 = vrot.slane %v270, 1
    %v896 = vrot.slane %v271, 1
    %v897 = vrot.slane %v272, 1
    %v898 = vrot.slane %v273, 1
    %v899 = vrot.slane %v274, 1
    %v900 = vrot.slane %v275, 1
    %v901 = vrot.slane %v276, 1
    %v902 = vrot.slane %v277, 1
    %v915 = vmul.f32 %v877, %v891
    %v916 = vmul.f32 %v877, %v892
    %v917 = vmul.f32 %v877, %v893
    %v918 = vmul.f32 %v877, %v894
    %v919 = vmul.f32 %v877, %v895
    %v920 = vmul.f32 %v877, %v896
    %v921 = vmul.f32 %v877, %v897
    %v922 = vmul.f32 %v877, %v898
    %v923 = vmul.f32 %v877, %v899
    %v924 = vmul.f32 %v877, %v900
    %v925 = vmul.f32 %v877, %v901
    %v926 = vmul.f32 %v877, %v902
    %v928 = vrot.slane %v351, 1
    %929 = vrot.lane.b32.xlu0 %v928, 1
    %v930 = vpop.permute.xlu0 %929
    %v932 = vmul.f32 %v375, %v930
    %v933 = vsel %vm394, %v915, -inf
    %934 = vmax.xlane.f32.xlu0 %v933
    %v935 = vpop.xlane.xlu0 %934
    %v936 = vsel %vm394, %v916, -inf
    %937 = vmax.xlane.f32.xlu0 %v936
    %v938 = vpop.xlane.xlu0 %937
    %v939 = vsel %vm394, %v917, -inf
    %940 = vmax.xlane.f32.xlu0 %v939
    %v941 = vpop.xlane.xlu0 %940
    %v942 = vsel %vm394, %v918, -inf
    %943 = vmax.xlane.f32.xlu0 %v942
    %v944 = vpop.xlane.xlu0 %943
    %v945 = vsel %vm394, %v919, -inf
    %946 = vmax.xlane.f32.xlu0 %v945
    %v947 = vpop.xlane.xlu0 %946
    %v948 = vsel %vm394, %v920, -inf
    %949 = vmax.xlane.f32.xlu0 %v948
    %v950 = vpop.xlane.xlu0 %949
    %v951 = vsel %vm394, %v921, -inf
    %952 = vmax.xlane.f32.xlu0 %v951
    %v953 = vpop.xlane.xlu0 %952
    %v954 = vsel %vm394, %v922, -inf
    %955 = vmax.xlane.f32.xlu0 %v954
    %v956 = vpop.xlane.xlu0 %955
    %v957 = vsel %vm394, %v923, -inf
    %958 = vmax.xlane.f32.xlu0 %v957
    %v959 = vpop.xlane.xlu0 %958
    %v960 = vsel %vm394, %v924, -inf
    %961 = vmax.xlane.f32.xlu0 %v960
    %v962 = vpop.xlane.xlu0 %961
    %v963 = vsel %vm394, %v925, -inf
    %964 = vmax.xlane.f32.xlu0 %v963
    %v965 = vpop.xlane.xlu0 %964
    %v966 = vsel %vm394, %v926, -inf
    %967 = vmax.xlane.f32.xlu0 %v966
    %v968 = vpop.xlane.xlu0 %967
    %v969 = vmax.f32 %v935, %v932
    %v970 = vmax.f32 %v938, %v932
    %v971 = vmax.f32 %v941, %v932
    %v972 = vmax.f32 %v944, %v932
    %v973 = vmax.f32 %v947, %v932
    %v974 = vmax.f32 %v950, %v932
    %v975 = vmax.f32 %v953, %v932
    %v976 = vmax.f32 %v956, %v932
    %v977 = vmax.f32 %v959, %v932
    %v978 = vmax.f32 %v962, %v932
    %v979 = vmax.f32 %v965, %v932
    %v980 = vmax.f32 %v968, %v932
    %982 = vset.pattern.permute.xlu0 1
    %983 = vperm.xlu0 %982, %v969
    %v984 = vpop.permute.xlu0 %983
    %987 = vset.pattern.permute.xlu0 1
    %988 = vperm.xlu0 %987, %v970
    %v989 = vpop.permute.xlu0 %988
    %992 = vset.pattern.permute.xlu0 1
    %993 = vperm.xlu0 %992, %v971
    %v994 = vpop.permute.xlu0 %993
    %997 = vset.pattern.permute.xlu0 1
    %998 = vperm.xlu0 %997, %v972
    %v999 = vpop.permute.xlu0 %998
    %1002 = vset.pattern.permute.xlu0 1
    %1003 = vperm.xlu0 %1002, %v973
    %v1004 = vpop.permute.xlu0 %1003
    %1007 = vset.pattern.permute.xlu0 1
    %1008 = vperm.xlu0 %1007, %v974
    %v1009 = vpop.permute.xlu0 %1008
    %1012 = vset.pattern.permute.xlu0 1
    %1013 = vperm.xlu0 %1012, %v975
    %v1014 = vpop.permute.xlu0 %1013
    %1017 = vset.pattern.permute.xlu0 1
    %1018 = vperm.xlu0 %1017, %v976
    %v1019 = vpop.permute.xlu0 %1018
    %1022 = vset.pattern.permute.xlu0 1
    %1023 = vperm.xlu0 %1022, %v977
    %v1024 = vpop.permute.xlu0 %1023
    %1027 = vset.pattern.permute.xlu0 1
    %1028 = vperm.xlu0 %1027, %v978
    %v1029 = vpop.permute.xlu0 %1028
    %1032 = vset.pattern.permute.xlu0 1
    %1033 = vperm.xlu0 %1032, %v979
    %v1034 = vpop.permute.xlu0 %1033
    %1037 = vset.pattern.permute.xlu0 1
    %1038 = vperm.xlu0 %1037, %v980
    %v1039 = vpop.permute.xlu0 %1038
    %v1041 = vsub.f32 %v915, %v984
    %v1042 = vsub.f32 %v916, %v989
    %v1043 = vsub.f32 %v917, %v994
    %v1044 = vsub.f32 %v918, %v999
    %v1045 = vsub.f32 %v919, %v1004
    %v1046 = vsub.f32 %v920, %v1009
    %v1047 = vsub.f32 %v921, %v1014
    %v1048 = vsub.f32 %v922, %v1019
    %v1049 = vsub.f32 %v923, %v1024
    %v1050 = vsub.f32 %v924, %v1029
    %v1051 = vsub.f32 %v925, %v1034
    %v1052 = vsub.f32 %v926, %v1039
    %v1053 = vmul.f32 %v1041, 1.442695
    %v1054 = vpow.pop %v1053
    %v1055 = vmul.f32 %v1042, 1.442695
    %v1056 = vpow.pop %v1055
    %v1057 = vmul.f32 %v1043, 1.442695
    %v1058 = vpow.pop %v1057
    %v1059 = vmul.f32 %v1044, 1.442695
    %v1060 = vpow.pop %v1059
    %v1061 = vmul.f32 %v1045, 1.442695
    %v1062 = vpow.pop %v1061
    %v1063 = vmul.f32 %v1046, 1.442695
    %v1064 = vpow.pop %v1063
    %v1065 = vmul.f32 %v1047, 1.442695
    %v1066 = vpow.pop %v1065
    %v1067 = vmul.f32 %v1048, 1.442695
    %v1068 = vpow.pop %v1067
    %v1069 = vmul.f32 %v1049, 1.442695
    %v1070 = vpow.pop %v1069
    %v1071 = vmul.f32 %v1050, 1.442695
    %v1072 = vpow.pop %v1071
    %v1073 = vmul.f32 %v1051, 1.442695
    %v1074 = vpow.pop %v1073
    %v1075 = vmul.f32 %v1052, 1.442695
    %v1076 = vpow.pop %v1075
    %v1077 = vsub.f32 %v932, %v969
    %v1078 = vsub.f32 %v932, %v970
    %v1079 = vsub.f32 %v932, %v971
    %v1080 = vsub.f32 %v932, %v972
    %v1081 = vsub.f32 %v932, %v973
    %v1082 = vsub.f32 %v932, %v974
    %v1083 = vsub.f32 %v932, %v975
    %v1084 = vsub.f32 %v932, %v976
    %v1085 = vsub.f32 %v932, %v977
    %v1086 = vsub.f32 %v932, %v978
    %v1087 = vsub.f32 %v932, %v979
    %v1088 = vsub.f32 %v932, %v980
    %v1089 = vmul.f32 %v1077, 1.442695
    %v1090 = vpow.pop %v1089
    %v1091 = vmul.f32 %v1078, 1.442695
    %v1092 = vpow.pop %v1091
    %v1093 = vmul.f32 %v1079, 1.442695
    %v1094 = vpow.pop %v1093
    %v1095 = vmul.f32 %v1080, 1.442695
    %v1096 = vpow.pop %v1095
    %v1097 = vmul.f32 %v1081, 1.442695
    %v1098 = vpow.pop %v1097
    %v1099 = vmul.f32 %v1082, 1.442695
    %v1100 = vpow.pop %v1099
    %v1101 = vmul.f32 %v1083, 1.442695
    %v1102 = vpow.pop %v1101
    %v1103 = vmul.f32 %v1084, 1.442695
    %v1104 = vpow.pop %v1103
    %v1105 = vmul.f32 %v1085, 1.442695
    %v1106 = vpow.pop %v1105
    %v1107 = vmul.f32 %v1086, 1.442695
    %v1108 = vpow.pop %v1107
    %v1109 = vmul.f32 %v1087, 1.442695
    %v1110 = vpow.pop %v1109
    %v1111 = vmul.f32 %v1088, 1.442695
    %v1112 = vpow.pop %v1111
    %v1113 = vsel %vm394, %v1054, 0.0
    %1114 = vadd.xlane.f32.xlu0 %v1113
    %v1115 = vpop.xlane.xlu0 %1114
    %v1116 = vsel %vm394, %v1056, 0.0
    %1117 = vadd.xlane.f32.xlu0 %v1116
    %v1118 = vpop.xlane.xlu0 %1117
    %v1119 = vsel %vm394, %v1058, 0.0
    %1120 = vadd.xlane.f32.xlu0 %v1119
    %v1121 = vpop.xlane.xlu0 %1120
    %v1122 = vsel %vm394, %v1060, 0.0
    %1123 = vadd.xlane.f32.xlu0 %v1122
    %v1124 = vpop.xlane.xlu0 %1123
    %v1125 = vsel %vm394, %v1062, 0.0
    %1126 = vadd.xlane.f32.xlu0 %v1125
    %v1127 = vpop.xlane.xlu0 %1126
    %v1128 = vsel %vm394, %v1064, 0.0
    %1129 = vadd.xlane.f32.xlu0 %v1128
    %v1130 = vpop.xlane.xlu0 %1129
    %v1131 = vsel %vm394, %v1066, 0.0
    %1132 = vadd.xlane.f32.xlu0 %v1131
    %v1133 = vpop.xlane.xlu0 %1132
    %v1134 = vsel %vm394, %v1068, 0.0
    %1135 = vadd.xlane.f32.xlu0 %v1134
    %v1136 = vpop.xlane.xlu0 %1135
    %v1137 = vsel %vm394, %v1070, 0.0
    %1138 = vadd.xlane.f32.xlu0 %v1137
    %v1139 = vpop.xlane.xlu0 %1138
    %v1140 = vsel %vm394, %v1072, 0.0
    %1141 = vadd.xlane.f32.xlu0 %v1140
    %v1142 = vpop.xlane.xlu0 %1141
    %v1143 = vsel %vm394, %v1074, 0.0
    %1144 = vadd.xlane.f32.xlu0 %v1143
    %v1145 = vpop.xlane.xlu0 %1144
    %v1146 = vsel %vm394, %v1076, 0.0
    %1147 = vadd.xlane.f32.xlu0 %v1146
    %v1148 = vpop.xlane.xlu0 %1147
    %v1149 = vadd.f32 %v1115, %v1090
    %v1150 = vadd.f32 %v1118, %v1092
    %v1151 = vadd.f32 %v1121, %v1094
    %v1152 = vadd.f32 %v1124, %v1096
    %v1153 = vadd.f32 %v1127, %v1098
    %v1154 = vadd.f32 %v1130, %v1100
    %v1155 = vadd.f32 %v1133, %v1102
    %v1156 = vadd.f32 %v1136, %v1104
    %v1157 = vadd.f32 %v1139, %v1106
    %v1158 = vadd.f32 %v1142, %v1108
    %v1159 = vadd.f32 %v1145, %v1110
    %v1160 = vadd.f32 %v1148, %v1112
    %v1173 = vrot.slane %v330, 1
    %v1174 = vrot.slane %v331, 1
    %v1175 = vrot.slane %v332, 1
    %v1176 = vrot.slane %v333, 1
    %v1177 = vrot.slane %v334, 1
    %v1178 = vrot.slane %v335, 1
    %v1179 = vrot.slane %v336, 1
    %v1180 = vrot.slane %v337, 1
    %v1181 = vrot.slane %v338, 1
    %v1182 = vrot.slane %v339, 1
    %v1183 = vrot.slane %v340, 1
    %v1184 = vrot.slane %v341, 1
    %v1197 = vmul.f32 %v1054, %v1173
    %v1198 = vmul.f32 %v1056, %v1174
    %v1199 = vmul.f32 %v1058, %v1175
    %v1200 = vmul.f32 %v1060, %v1176
    %v1201 = vmul.f32 %v1062, %v1177
    %v1202 = vmul.f32 %v1064, %v1178
    %v1203 = vmul.f32 %v1066, %v1179
    %v1204 = vmul.f32 %v1068, %v1180
    %v1205 = vmul.f32 %v1070, %v1181
    %v1206 = vmul.f32 %v1072, %v1182
    %v1207 = vmul.f32 %v1074, %v1183
    %v1208 = vmul.f32 %v1076, %v1184
    %v1209 = vsel %vm394, %v1197, 0.0
    %1210 = vadd.xlane.f32.xlu0 %v1209
    %v1211 = vpop.xlane.xlu0 %1210
    %v1212 = vsel %vm394, %v1198, 0.0
    %1213 = vadd.xlane.f32.xlu0 %v1212
    %v1214 = vpop.xlane.xlu0 %1213
    %v1215 = vsel %vm394, %v1199, 0.0
    %1216 = vadd.xlane.f32.xlu0 %v1215
    %v1217 = vpop.xlane.xlu0 %1216
    %v1218 = vsel %vm394, %v1200, 0.0
    %1219 = vadd.xlane.f32.xlu0 %v1218
    %v1220 = vpop.xlane.xlu0 %1219
    %v1221 = vsel %vm394, %v1201, 0.0
    %1222 = vadd.xlane.f32.xlu0 %v1221
    %v1223 = vpop.xlane.xlu0 %1222
    %v1224 = vsel %vm394, %v1202, 0.0
    %1225 = vadd.xlane.f32.xlu0 %v1224
    %v1226 = vpop.xlane.xlu0 %1225
    %v1227 = vsel %vm394, %v1203, 0.0
    %1228 = vadd.xlane.f32.xlu0 %v1227
    %v1229 = vpop.xlane.xlu0 %1228
    %v1230 = vsel %vm394, %v1204, 0.0
    %1231 = vadd.xlane.f32.xlu0 %v1230
    %v1232 = vpop.xlane.xlu0 %1231
    %v1233 = vsel %vm394, %v1205, 0.0
    %1234 = vadd.xlane.f32.xlu0 %v1233
    %v1235 = vpop.xlane.xlu0 %1234
    %v1236 = vsel %vm394, %v1206, 0.0
    %1237 = vadd.xlane.f32.xlu0 %v1236
    %v1238 = vpop.xlane.xlu0 %1237
    %v1239 = vsel %vm394, %v1207, 0.0
    %1240 = vadd.xlane.f32.xlu0 %v1239
    %v1241 = vpop.xlane.xlu0 %1240
    %v1242 = vsel %vm394, %v1208, 0.0
    %1243 = vadd.xlane.f32.xlu0 %v1242
    %v1244 = vpop.xlane.xlu0 %1243
    %v1246 = vrot.slane %v358, 1
    %1247 = vrot.lane.b32.xlu0 %v1246, 1
    %v1248 = vpop.permute.xlu0 %1247
    %v1250 = vmul.f32 %v1090, %v1248
    %v1251 = vmul.f32 %v1092, %v1248
    %v1252 = vmul.f32 %v1094, %v1248
    %v1253 = vmul.f32 %v1096, %v1248
    %v1254 = vmul.f32 %v1098, %v1248
    %v1255 = vmul.f32 %v1100, %v1248
    %v1256 = vmul.f32 %v1102, %v1248
    %v1257 = vmul.f32 %v1104, %v1248
    %v1258 = vmul.f32 %v1106, %v1248
    %v1259 = vmul.f32 %v1108, %v1248
    %v1260 = vmul.f32 %v1110, %v1248
    %v1261 = vmul.f32 %v1112, %v1248
    %v1262 = vadd.f32 %v1211, %v1250
    %v1263 = vadd.f32 %v1214, %v1251
    %v1264 = vadd.f32 %v1217, %v1252
    %v1265 = vadd.f32 %v1220, %v1253
    %v1266 = vadd.f32 %v1223, %v1254
    %v1267 = vadd.f32 %v1226, %v1255
    %v1268 = vadd.f32 %v1229, %v1256
    %v1269 = vadd.f32 %v1232, %v1257
    %v1270 = vadd.f32 %v1235, %v1258
    %v1271 = vadd.f32 %v1238, %v1259
    %v1272 = vadd.f32 %v1241, %v1260
    %v1273 = vadd.f32 %v1244, %v1261
    %v1274 = vrcp.pop %v1149
    %v1275 = vmul.f32 %v1149, %v1274
    %v1276 = vsub.f32 1.0, %v1275
    %v1277 = vmul.f32 %v1274, %v1276
    %v1278 = vadd.f32 %v1274, %v1277
    %vm1279 = vweird.f32 %v1149
    %vm1280 = vweird.f32 %v1274
    %vm1281 = vmor %vm1279, %vm1280
    %v1282 = vsel %vm1281, %v1274, %v1278
    %v1283 = vand.u32 2147483647, %v1149
    %vm1284 = vcmp.eq.f32.partialorder %v1283, 8.507059e+37
    %v1285 = vand.u32 %v1149, 2147483648
    %v1286 = vor.u32 1.1754944e-38, %v1285
    %v1287 = vsel %vm1284, %v1286, %v1282
    %v1288 = vmul.f32 %v1262, %v1287
    %v1289 = vrcp.pop %v1150
    %v1290 = vmul.f32 %v1150, %v1289
    %v1291 = vsub.f32 1.0, %v1290
    %v1292 = vmul.f32 %v1289, %v1291
    %v1293 = vadd.f32 %v1289, %v1292
    %vm1294 = vweird.f32 %v1150
    %vm1295 = vweird.f32 %v1289
    %vm1296 = vmor %vm1294, %vm1295
    %v1297 = vsel %vm1296, %v1289, %v1293
    %v1298 = vand.u32 2147483647, %v1150
    %vm1299 = vcmp.eq.f32.partialorder %v1298, 8.507059e+37
    %v1300 = vand.u32 %v1150, 2147483648
    %v1301 = vor.u32 1.1754944e-38, %v1300
    %v1302 = vsel %vm1299, %v1301, %v1297
    %v1303 = vmul.f32 %v1263, %v1302
    %v1304 = vrcp.pop %v1151
    %v1305 = vmul.f32 %v1151, %v1304
    %v1306 = vsub.f32 1.0, %v1305
    %v1307 = vmul.f32 %v1304, %v1306
    %v1308 = vadd.f32 %v1304, %v1307
    %vm1309 = vweird.f32 %v1151
    %vm1310 = vweird.f32 %v1304
    %vm1311 = vmor %vm1309, %vm1310
    %v1312 = vsel %vm1311, %v1304, %v1308
    %v1313 = vand.u32 2147483647, %v1151
    %vm1314 = vcmp.eq.f32.partialorder %v1313, 8.507059e+37
    %v1315 = vand.u32 %v1151, 2147483648
    %v1316 = vor.u32 1.1754944e-38, %v1315
    %v1317 = vsel %vm1314, %v1316, %v1312
    %v1318 = vmul.f32 %v1264, %v1317
    %v1319 = vrcp.pop %v1152
    %v1320 = vmul.f32 %v1152, %v1319
    %v1321 = vsub.f32 1.0, %v1320
    %v1322 = vmul.f32 %v1319, %v1321
    %v1323 = vadd.f32 %v1319, %v1322
    %vm1324 = vweird.f32 %v1152
    %vm1325 = vweird.f32 %v1319
    %vm1326 = vmor %vm1324, %vm1325
    %v1327 = vsel %vm1326, %v1319, %v1323
    %v1328 = vand.u32 2147483647, %v1152
    %vm1329 = vcmp.eq.f32.partialorder %v1328, 8.507059e+37
    %v1330 = vand.u32 %v1152, 2147483648
    %v1331 = vor.u32 1.1754944e-38, %v1330
    %v1332 = vsel %vm1329, %v1331, %v1327
    %v1333 = vmul.f32 %v1265, %v1332
    %v1334 = vrcp.pop %v1153
    %v1335 = vmul.f32 %v1153, %v1334
    %v1336 = vsub.f32 1.0, %v1335
    %v1337 = vmul.f32 %v1334, %v1336
    %v1338 = vadd.f32 %v1334, %v1337
    %vm1339 = vweird.f32 %v1153
    %vm1340 = vweird.f32 %v1334
    %vm1341 = vmor %vm1339, %vm1340
    %v1342 = vsel %vm1341, %v1334, %v1338
    %v1343 = vand.u32 2147483647, %v1153
    %vm1344 = vcmp.eq.f32.partialorder %v1343, 8.507059e+37
    %v1345 = vand.u32 %v1153, 2147483648
    %v1346 = vor.u32 1.1754944e-38, %v1345
    %v1347 = vsel %vm1344, %v1346, %v1342
    %v1348 = vmul.f32 %v1266, %v1347
    %v1349 = vrcp.pop %v1154
    %v1350 = vmul.f32 %v1154, %v1349
    %v1351 = vsub.f32 1.0, %v1350
    %v1352 = vmul.f32 %v1349, %v1351
    %v1353 = vadd.f32 %v1349, %v1352
    %vm1354 = vweird.f32 %v1154
    %vm1355 = vweird.f32 %v1349
    %vm1356 = vmor %vm1354, %vm1355
    %v1357 = vsel %vm1356, %v1349, %v1353
    %v1358 = vand.u32 2147483647, %v1154
    %vm1359 = vcmp.eq.f32.partialorder %v1358, 8.507059e+37
    %v1360 = vand.u32 %v1154, 2147483648
    %v1361 = vor.u32 1.1754944e-38, %v1360
    %v1362 = vsel %vm1359, %v1361, %v1357
    %v1363 = vmul.f32 %v1267, %v1362
    %v1364 = vrcp.pop %v1155
    %v1365 = vmul.f32 %v1155, %v1364
    %v1366 = vsub.f32 1.0, %v1365
    %v1367 = vmul.f32 %v1364, %v1366
    %v1368 = vadd.f32 %v1364, %v1367
    %vm1369 = vweird.f32 %v1155
    %vm1370 = vweird.f32 %v1364
    %vm1371 = vmor %vm1369, %vm1370
    %v1372 = vsel %vm1371, %v1364, %v1368
    %v1373 = vand.u32 2147483647, %v1155
    %vm1374 = vcmp.eq.f32.partialorder %v1373, 8.507059e+37
    %v1375 = vand.u32 %v1155, 2147483648
    %v1376 = vor.u32 1.1754944e-38, %v1375
    %v1377 = vsel %vm1374, %v1376, %v1372
    %v1378 = vmul.f32 %v1268, %v1377
    %v1379 = vrcp.pop %v1156
    %v1380 = vmul.f32 %v1156, %v1379
    %v1381 = vsub.f32 1.0, %v1380
    %v1382 = vmul.f32 %v1379, %v1381
    %v1383 = vadd.f32 %v1379, %v1382
    %vm1384 = vweird.f32 %v1156
    %vm1385 = vweird.f32 %v1379
    %vm1386 = vmor %vm1384, %vm1385
    %v1387 = vsel %vm1386, %v1379, %v1383
    %v1388 = vand.u32 2147483647, %v1156
    %vm1389 = vcmp.eq.f32.partialorder %v1388, 8.507059e+37
    %v1390 = vand.u32 %v1156, 2147483648
    %v1391 = vor.u32 1.1754944e-38, %v1390
    %v1392 = vsel %vm1389, %v1391, %v1387
    %v1393 = vmul.f32 %v1269, %v1392
    %v1394 = vrcp.pop %v1157
    %v1395 = vmul.f32 %v1157, %v1394
    %v1396 = vsub.f32 1.0, %v1395
    %v1397 = vmul.f32 %v1394, %v1396
    %v1398 = vadd.f32 %v1394, %v1397
    %vm1399 = vweird.f32 %v1157
    %vm1400 = vweird.f32 %v1394
    %vm1401 = vmor %vm1399, %vm1400
    %v1402 = vsel %vm1401, %v1394, %v1398
    %v1403 = vand.u32 2147483647, %v1157
    %vm1404 = vcmp.eq.f32.partialorder %v1403, 8.507059e+37
    %v1405 = vand.u32 %v1157, 2147483648
    %v1406 = vor.u32 1.1754944e-38, %v1405
    %v1407 = vsel %vm1404, %v1406, %v1402
    %v1408 = vmul.f32 %v1270, %v1407
    %v1409 = vrcp.pop %v1158
    %v1410 = vmul.f32 %v1158, %v1409
    %v1411 = vsub.f32 1.0, %v1410
    %v1412 = vmul.f32 %v1409, %v1411
    %v1413 = vadd.f32 %v1409, %v1412
    %vm1414 = vweird.f32 %v1158
    %vm1415 = vweird.f32 %v1409
    %vm1416 = vmor %vm1414, %vm1415
    %v1417 = vsel %vm1416, %v1409, %v1413
    %v1418 = vand.u32 2147483647, %v1158
    %vm1419 = vcmp.eq.f32.partialorder %v1418, 8.507059e+37
    %v1420 = vand.u32 %v1158, 2147483648
    %v1421 = vor.u32 1.1754944e-38, %v1420
    %v1422 = vsel %vm1419, %v1421, %v1417
    %v1423 = vmul.f32 %v1271, %v1422
    %v1424 = vrcp.pop %v1159
    %v1425 = vmul.f32 %v1159, %v1424
    %v1426 = vsub.f32 1.0, %v1425
    %v1427 = vmul.f32 %v1424, %v1426
    %v1428 = vadd.f32 %v1424, %v1427
    %vm1429 = vweird.f32 %v1159
    %vm1430 = vweird.f32 %v1424
    %vm1431 = vmor %vm1429, %vm1430
    %v1432 = vsel %vm1431, %v1424, %v1428
    %v1433 = vand.u32 2147483647, %v1159
    %vm1434 = vcmp.eq.f32.partialorder %v1433, 8.507059e+37
    %v1435 = vand.u32 %v1159, 2147483648
    %v1436 = vor.u32 1.1754944e-38, %v1435
    %v1437 = vsel %vm1434, %v1436, %v1432
    %v1438 = vmul.f32 %v1272, %v1437
    %v1439 = vrcp.pop %v1160
    %v1440 = vmul.f32 %v1160, %v1439
    %v1441 = vsub.f32 1.0, %v1440
    %v1442 = vmul.f32 %v1439, %v1441
    %v1443 = vadd.f32 %v1439, %v1442
    %vm1444 = vweird.f32 %v1160
    %vm1445 = vweird.f32 %v1439
    %vm1446 = vmor %vm1444, %vm1445
    %v1447 = vsel %vm1446, %v1439, %v1443
    %v1448 = vand.u32 2147483647, %v1160
    %vm1449 = vcmp.eq.f32.partialorder %v1448, 8.507059e+37
    %v1450 = vand.u32 %v1160, 2147483648
    %v1451 = vor.u32 1.1754944e-38, %v1450
    %v1452 = vsel %vm1449, %v1451, %v1447
    %v1453 = vmul.f32 %v1273, %v1452
    %v1454 = vld [vmem:[%s9] sm:$0x3]
    %v1455 = vld [vmem:[#allocation6] sm:$0x1]
    %1457 = vset.pattern.permute.xlu0 0
    %1458 = vperm.xlu0 %1457, %v709
    %v1459 = vpop.permute.xlu0 %1458
    %1462 = vset.pattern.permute.xlu0 0
    %1463 = vperm.xlu0 %1462, %v724
    %v1464 = vpop.permute.xlu0 %1463
    %1467 = vset.pattern.permute.xlu0 0
    %1468 = vperm.xlu0 %1467, %v739
    %v1469 = vpop.permute.xlu0 %1468
    %1472 = vset.pattern.permute.xlu0 0
    %1473 = vperm.xlu0 %1472, %v754
    %v1474 = vpop.permute.xlu0 %1473
    %1477 = vset.pattern.permute.xlu0 0
    %1478 = vperm.xlu0 %1477, %v769
    %v1479 = vpop.permute.xlu0 %1478
    %1482 = vset.pattern.permute.xlu0 0
    %1483 = vperm.xlu0 %1482, %v784
    %v1484 = vpop.permute.xlu0 %1483
    %1487 = vset.pattern.permute.xlu0 0
    %1488 = vperm.xlu0 %1487, %v799
    %v1489 = vpop.permute.xlu0 %1488
    %1492 = vset.pattern.permute.xlu0 0
    %1493 = vperm.xlu0 %1492, %v814
    %v1494 = vpop.permute.xlu0 %1493
    %1497 = vset.pattern.permute.xlu0 0
    %1498 = vperm.xlu0 %1497, %v829
    %v1499 = vpop.permute.xlu0 %1498
    %1502 = vset.pattern.permute.xlu0 0
    %1503 = vperm.xlu0 %1502, %v844
    %v1504 = vpop.permute.xlu0 %1503
    %1507 = vset.pattern.permute.xlu0 0
    %1508 = vperm.xlu0 %1507, %v859
    %v1509 = vpop.permute.xlu0 %1508
    %1512 = vset.pattern.permute.xlu0 0
    %1513 = vperm.xlu0 %1512, %v874
    %v1514 = vpop.permute.xlu0 %1513
    %v1516 = vmul.f32 %v1459, %v1454
    %v1517 = vmul.f32 %v1464, %v1454
    %v1518 = vmul.f32 %v1469, %v1454
    %v1519 = vmul.f32 %v1474, %v1454
    %v1520 = vmul.f32 %v1479, %v1454
    %v1521 = vmul.f32 %v1484, %v1454
    %v1522 = vmul.f32 %v1489, %v1454
    %v1523 = vmul.f32 %v1494, %v1454
    %v1524 = vmul.f32 %v1499, %v1454
    %v1525 = vmul.f32 %v1504, %v1454
    %v1526 = vmul.f32 %v1509, %v1454
    %v1527 = vmul.f32 %v1514, %v1454
    %1529 = vset.pattern.permute.xlu0 1
    %1530 = vperm.xlu0 %1529, %v1288
    %v1531 = vpop.permute.xlu0 %1530
    %1534 = vset.pattern.permute.xlu0 1
    %1535 = vperm.xlu0 %1534, %v1303
    %v1536 = vpop.permute.xlu0 %1535
    %1539 = vset.pattern.permute.xlu0 1
    %1540 = vperm.xlu0 %1539, %v1318
    %v1541 = vpop.permute.xlu0 %1540
    %1544 = vset.pattern.permute.xlu0 1
    %1545 = vperm.xlu0 %1544, %v1333
    %v1546 = vpop.permute.xlu0 %1545
    %1549 = vset.pattern.permute.xlu0 1
    %1550 = vperm.xlu0 %1549, %v1348
    %v1551 = vpop.permute.xlu0 %1550
    %1554 = vset.pattern.permute.xlu0 1
    %1555 = vperm.xlu0 %1554, %v1363
    %v1556 = vpop.permute.xlu0 %1555
    %1559 = vset.pattern.permute.xlu0 1
    %1560 = vperm.xlu0 %1559, %v1378
    %v1561 = vpop.permute.xlu0 %1560
    %1564 = vset.pattern.permute.xlu0 1
    %1565 = vperm.xlu0 %1564, %v1393
    %v1566 = vpop.permute.xlu0 %1565
    %1569 = vset.pattern.permute.xlu0 1
    %1570 = vperm.xlu0 %1569, %v1408
    %v1571 = vpop.permute.xlu0 %1570
    %1574 = vset.pattern.permute.xlu0 1
    %1575 = vperm.xlu0 %1574, %v1423
    %v1576 = vpop.permute.xlu0 %1575
    %1579 = vset.pattern.permute.xlu0 1
    %1580 = vperm.xlu0 %1579, %v1438
    %v1581 = vpop.permute.xlu0 %1580
    %1584 = vset.pattern.permute.xlu0 1
    %1585 = vperm.xlu0 %1584, %v1453
    %v1586 = vpop.permute.xlu0 %1585
    %v1589 = vrot.slane %v1454, 1
    %v1591 = vmul.f32 %v1531, %v1589
    %v1592 = vmul.f32 %v1536, %v1589
    %v1593 = vmul.f32 %v1541, %v1589
    %v1594 = vmul.f32 %v1546, %v1589
    %v1595 = vmul.f32 %v1551, %v1589
    %v1596 = vmul.f32 %v1556, %v1589
    %v1597 = vmul.f32 %v1561, %v1589
    %v1598 = vmul.f32 %v1566, %v1589
    %v1599 = vmul.f32 %v1571, %v1589
    %v1600 = vmul.f32 %v1576, %v1589
    %v1601 = vmul.f32 %v1581, %v1589
    %v1602 = vmul.f32 %v1586, %v1589
    %v1603 = vadd.f32 %v1516, %v1591
    %v1604 = vadd.f32 %v1517, %v1592
    %v1605 = vadd.f32 %v1518, %v1593
    %v1606 = vadd.f32 %v1519, %v1594
    %v1607 = vadd.f32 %v1520, %v1595
    %v1608 = vadd.f32 %v1521, %v1596
    %v1609 = vadd.f32 %v1522, %v1597
    %v1610 = vadd.f32 %v1523, %v1598
    %v1611 = vadd.f32 %v1524, %v1599
    %v1612 = vadd.f32 %v1525, %v1600
    %v1613 = vadd.f32 %v1526, %v1601
    %v1614 = vadd.f32 %v1527, %v1602
    %v1615 = vadd.f32 %v1603, %v1455
    %v1616 = vadd.f32 %v1604, %v1455
    %v1617 = vadd.f32 %v1605, %v1455
    %v1618 = vadd.f32 %v1606, %v1455
    %v1619 = vadd.f32 %v1607, %v1455
    %v1620 = vadd.f32 %v1608, %v1455
    %v1621 = vadd.f32 %v1609, %v1455
    %v1622 = vadd.f32 %v1610, %v1455
    %v1623 = vadd.f32 %v1611, %v1455
    %v1624 = vadd.f32 %v1612, %v1455
    %v1625 = vadd.f32 %v1613, %v1455
    %v1626 = vadd.f32 %v1614, %v1455
    %v1627 = vadd.f32 %v189, %v1615
    %v1628 = vadd.f32 %v189, %v1616
    %v1629 = vadd.f32 %v189, %v1617
    %v1630 = vadd.f32 %v189, %v1618
    %v1631 = vadd.f32 %v189, %v1619
    %v1632 = vadd.f32 %v189, %v1620
    %v1633 = vadd.f32 %v189, %v1621
    %v1634 = vadd.f32 %v189, %v1622
    %v1635 = vadd.f32 %v189, %v1623
    %v1636 = vadd.f32 %v189, %v1624
    %v1637 = vadd.f32 %v189, %v1625
    %v1638 = vadd.f32 %v189, %v1626
    %v1639 = vld [vmem:[%s11] sm:$0x1]
    %v1640 = vld [vmem:[%s12] sm:$0x1]
    %1653 = vrot.lane.b32.xlu0 %v1627, 127
    %v1654 = vpop.permute.xlu0 %1653
    %1655 = vrot.lane.b32.xlu0 %v1628, 127
    %v1656 = vpop.permute.xlu0 %1655
    %1657 = vrot.lane.b32.xlu0 %v1629, 127
    %v1658 = vpop.permute.xlu0 %1657
    %1659 = vrot.lane.b32.xlu0 %v1630, 127
    %v1660 = vpop.permute.xlu0 %1659
    %1661 = vrot.lane.b32.xlu0 %v1631, 127
    %v1662 = vpop.permute.xlu0 %1661
    %1663 = vrot.lane.b32.xlu0 %v1632, 127
    %v1664 = vpop.permute.xlu0 %1663
    %1665 = vrot.lane.b32.xlu0 %v1633, 127
    %v1666 = vpop.permute.xlu0 %1665
    %1667 = vrot.lane.b32.xlu0 %v1634, 127
    %v1668 = vpop.permute.xlu0 %1667
    %1669 = vrot.lane.b32.xlu0 %v1635, 127
    %v1670 = vpop.permute.xlu0 %1669
    %1671 = vrot.lane.b32.xlu0 %v1636, 127
    %v1672 = vpop.permute.xlu0 %1671
    %1673 = vrot.lane.b32.xlu0 %v1637, 127
    %v1674 = vpop.permute.xlu0 %1673
    %1675 = vrot.lane.b32.xlu0 %v1638, 127
    %v1676 = vpop.permute.xlu0 %1675
    %v1689 = vadd.f32 %v1627, %v1654
    %v1690 = vadd.f32 %v1628, %v1656
    %v1691 = vadd.f32 %v1629, %v1658
    %v1692 = vadd.f32 %v1630, %v1660
    %v1693 = vadd.f32 %v1631, %v1662
    %v1694 = vadd.f32 %v1632, %v1664
    %v1695 = vadd.f32 %v1633, %v1666
    %v1696 = vadd.f32 %v1634, %v1668
    %v1697 = vadd.f32 %v1635, %v1670
    %v1698 = vadd.f32 %v1636, %v1672
    %v1699 = vadd.f32 %v1637, %v1674
    %v1700 = vadd.f32 %v1638, %v1676
    %v1701 = vmul.f32 %v1689, 0.5
    %v1702 = vmul.f32 %v1690, 0.5
    %v1703 = vmul.f32 %v1691, 0.5
    %v1704 = vmul.f32 %v1692, 0.5
    %v1705 = vmul.f32 %v1693, 0.5
    %v1706 = vmul.f32 %v1694, 0.5
    %v1707 = vmul.f32 %v1695, 0.5
    %v1708 = vmul.f32 %v1696, 0.5
    %v1709 = vmul.f32 %v1697, 0.5
    %v1710 = vmul.f32 %v1698, 0.5
    %v1711 = vmul.f32 %v1699, 0.5
    %v1712 = vmul.f32 %v1700, 0.5
    %v1713 = vsub.f32 %v1627, %v1701
    %v1714 = vsub.f32 %v1628, %v1702
    %v1715 = vsub.f32 %v1629, %v1703
    %v1716 = vsub.f32 %v1630, %v1704
    %v1717 = vsub.f32 %v1631, %v1705
    %v1718 = vsub.f32 %v1632, %v1706
    %v1719 = vsub.f32 %v1633, %v1707
    %v1720 = vsub.f32 %v1634, %v1708
    %v1721 = vsub.f32 %v1635, %v1709
    %v1722 = vsub.f32 %v1636, %v1710
    %v1723 = vsub.f32 %v1637, %v1711
    %v1724 = vsub.f32 %v1638, %v1712
    %1737 = vrot.lane.b32.xlu0 %v1701, 1
    %v1738 = vpop.permute.xlu0 %1737
    %1739 = vrot.lane.b32.xlu0 %v1702, 1
    %v1740 = vpop.permute.xlu0 %1739
    %1741 = vrot.lane.b32.xlu0 %v1703, 1
    %v1742 = vpop.permute.xlu0 %1741
    %1743 = vrot.lane.b32.xlu0 %v1704, 1
    %v1744 = vpop.permute.xlu0 %1743
    %1745 = vrot.lane.b32.xlu0 %v1705, 1
    %v1746 = vpop.permute.xlu0 %1745
    %1747 = vrot.lane.b32.xlu0 %v1706, 1
    %v1748 = vpop.permute.xlu0 %1747
    %1749 = vrot.lane.b32.xlu0 %v1707, 1
    %v1750 = vpop.permute.xlu0 %1749
    %1751 = vrot.lane.b32.xlu0 %v1708, 1
    %v1752 = vpop.permute.xlu0 %1751
    %1753 = vrot.lane.b32.xlu0 %v1709, 1
    %v1754 = vpop.permute.xlu0 %1753
    %1755 = vrot.lane.b32.xlu0 %v1710, 1
    %v1756 = vpop.permute.xlu0 %1755
    %1757 = vrot.lane.b32.xlu0 %v1711, 1
    %v1758 = vpop.permute.xlu0 %1757
    %1759 = vrot.lane.b32.xlu0 %v1712, 1
    %v1760 = vpop.permute.xlu0 %1759
    %v1773 = vsub.f32 %v1627, %v1738
    %v1774 = vsub.f32 %v1628, %v1740
    %v1775 = vsub.f32 %v1629, %v1742
    %v1776 = vsub.f32 %v1630, %v1744
    %v1777 = vsub.f32 %v1631, %v1746
    %v1778 = vsub.f32 %v1632, %v1748
    %v1779 = vsub.f32 %v1633, %v1750
    %v1780 = vsub.f32 %v1634, %v1752
    %v1781 = vsub.f32 %v1635, %v1754
    %v1782 = vsub.f32 %v1636, %v1756
    %v1783 = vsub.f32 %v1637, %v1758
    %v1784 = vsub.f32 %v1638, %v1760
    %v1785 = vmul.f32 %v1713, %v1713
    %v1786 = vmul.f32 %v1714, %v1714
    %v1787 = vmul.f32 %v1715, %v1715
    %v1788 = vmul.f32 %v1716, %v1716
    %v1789 = vmul.f32 %v1717, %v1717
    %v1790 = vmul.f32 %v1718, %v1718
    %v1791 = vmul.f32 %v1719, %v1719
    %v1792 = vmul.f32 %v1720, %v1720
    %v1793 = vmul.f32 %v1721, %v1721
    %v1794 = vmul.f32 %v1722, %v1722
    %v1795 = vmul.f32 %v1723, %v1723
    %v1796 = vmul.f32 %v1724, %v1724
    %v1797 = vmul.f32 %v1773, %v1773
    %v1798 = vmul.f32 %v1774, %v1774
    %v1799 = vmul.f32 %v1775, %v1775
    %v1800 = vmul.f32 %v1776, %v1776
    %v1801 = vmul.f32 %v1777, %v1777
    %v1802 = vmul.f32 %v1778, %v1778
    %v1803 = vmul.f32 %v1779, %v1779
    %v1804 = vmul.f32 %v1780, %v1780
    %v1805 = vmul.f32 %v1781, %v1781
    %v1806 = vmul.f32 %v1782, %v1782
    %v1807 = vmul.f32 %v1783, %v1783
    %v1808 = vmul.f32 %v1784, %v1784
    %1821 = vrot.lane.b32.xlu0 %v1797, 127
    %v1822 = vpop.permute.xlu0 %1821
    %1823 = vrot.lane.b32.xlu0 %v1798, 127
    %v1824 = vpop.permute.xlu0 %1823
    %1825 = vrot.lane.b32.xlu0 %v1799, 127
    %v1826 = vpop.permute.xlu0 %1825
    %1827 = vrot.lane.b32.xlu0 %v1800, 127
    %v1828 = vpop.permute.xlu0 %1827
    %1829 = vrot.lane.b32.xlu0 %v1801, 127
    %v1830 = vpop.permute.xlu0 %1829
    %1831 = vrot.lane.b32.xlu0 %v1802, 127
    %v1832 = vpop.permute.xlu0 %1831
    %1833 = vrot.lane.b32.xlu0 %v1803, 127
    %v1834 = vpop.permute.xlu0 %1833
    %1835 = vrot.lane.b32.xlu0 %v1804, 127
    %v1836 = vpop.permute.xlu0 %1835
    %1837 = vrot.lane.b32.xlu0 %v1805, 127
    %v1838 = vpop.permute.xlu0 %1837
    %1839 = vrot.lane.b32.xlu0 %v1806, 127
    %v1840 = vpop.permute.xlu0 %1839
    %1841 = vrot.lane.b32.xlu0 %v1807, 127
    %v1842 = vpop.permute.xlu0 %1841
    %1843 = vrot.lane.b32.xlu0 %v1808, 127
    %v1844 = vpop.permute.xlu0 %1843
    %v1857 = vadd.f32 %v1785, %v1822
    %v1858 = vadd.f32 %v1786, %v1824
    %v1859 = vadd.f32 %v1787, %v1826
    %v1860 = vadd.f32 %v1788, %v1828
    %v1861 = vadd.f32 %v1789, %v1830
    %v1862 = vadd.f32 %v1790, %v1832
    %v1863 = vadd.f32 %v1791, %v1834
    %v1864 = vadd.f32 %v1792, %v1836
    %v1865 = vadd.f32 %v1793, %v1838
    %v1866 = vadd.f32 %v1794, %v1840
    %v1867 = vadd.f32 %v1795, %v1842
    %v1868 = vadd.f32 %v1796, %v1844
    %v1869 = vmul.f32 %v1857, 0.5
    %v1870 = vmul.f32 %v1858, 0.5
    %v1871 = vmul.f32 %v1859, 0.5
    %v1872 = vmul.f32 %v1860, 0.5
    %v1873 = vmul.f32 %v1861, 0.5
    %v1874 = vmul.f32 %v1862, 0.5
    %v1875 = vmul.f32 %v1863, 0.5
    %v1876 = vmul.f32 %v1864, 0.5
    %v1877 = vmul.f32 %v1865, 0.5
    %v1878 = vmul.f32 %v1866, 0.5
    %v1879 = vmul.f32 %v1867, 0.5
    %v1880 = vmul.f32 %v1868, 0.5
    %v1881 = vadd.f32 %v1869, 1e-05
    %v1882 = vadd.f32 %v1870, 1e-05
    %v1883 = vadd.f32 %v1871, 1e-05
    %v1884 = vadd.f32 %v1872, 1e-05
    %v1885 = vadd.f32 %v1873, 1e-05
    %v1886 = vadd.f32 %v1874, 1e-05
    %v1887 = vadd.f32 %v1875, 1e-05
    %v1888 = vadd.f32 %v1876, 1e-05
    %v1889 = vadd.f32 %v1877, 1e-05
    %v1890 = vadd.f32 %v1878, 1e-05
    %v1891 = vadd.f32 %v1879, 1e-05
    %v1892 = vadd.f32 %v1880, 1e-05
    %v1893 = vrsqrt.pop %v1881
    %v1894 = vmul.f32 %v1893, %v1881
    %v1895 = vmul.f32 %v1894, %v1893
    %v1896 = vmul.f32 0.5, %v1895
    %v1897 = vsub.f32 1.5, %v1896
    %v1898 = vmul.f32 %v1893, %v1897
    %vm1899 = vweird.f32 %v1881
    %vm1900 = vweird.f32 %v1893
    %vm1901 = vmor %vm1899, %vm1900
    %v1902 = vsel %vm1901, %v1893, %v1898
    %v1903 = vrsqrt.pop %v1882
    %v1904 = vmul.f32 %v1903, %v1882
    %v1905 = vmul.f32 %v1904, %v1903
    %v1906 = vmul.f32 0.5, %v1905
    %v1907 = vsub.f32 1.5, %v1906
    %v1908 = vmul.f32 %v1903, %v1907
    %vm1909 = vweird.f32 %v1882
    %vm1910 = vweird.f32 %v1903
    %vm1911 = vmor %vm1909, %vm1910
    %v1912 = vsel %vm1911, %v1903, %v1908
    %v1913 = vrsqrt.pop %v1883
    %v1914 = vmul.f32 %v1913, %v1883
    %v1915 = vmul.f32 %v1914, %v1913
    %v1916 = vmul.f32 0.5, %v1915
    %v1917 = vsub.f32 1.5, %v1916
    %v1918 = vmul.f32 %v1913, %v1917
    %vm1919 = vweird.f32 %v1883
    %vm1920 = vweird.f32 %v1913
    %vm1921 = vmor %vm1919, %vm1920
    %v1922 = vsel %vm1921, %v1913, %v1918
    %v1923 = vrsqrt.pop %v1884
    %v1924 = vmul.f32 %v1923, %v1884
    %v1925 = vmul.f32 %v1924, %v1923
    %v1926 = vmul.f32 0.5, %v1925
    %v1927 = vsub.f32 1.5, %v1926
    %v1928 = vmul.f32 %v1923, %v1927
    %vm1929 = vweird.f32 %v1884
    %vm1930 = vweird.f32 %v1923
    %vm1931 = vmor %vm1929, %vm1930
    %v1932 = vsel %vm1931, %v1923, %v1928
    %v1933 = vrsqrt.pop %v1885
    %v1934 = vmul.f32 %v1933, %v1885
    %v1935 = vmul.f32 %v1934, %v1933
    %v1936 = vmul.f32 0.5, %v1935
    %v1937 = vsub.f32 1.5, %v1936
    %v1938 = vmul.f32 %v1933, %v1937
    %vm1939 = vweird.f32 %v1885
    %vm1940 = vweird.f32 %v1933
    %vm1941 = vmor %vm1939, %vm1940
    %v1942 = vsel %vm1941, %v1933, %v1938
    %v1943 = vrsqrt.pop %v1886
    %v1944 = vmul.f32 %v1943, %v1886
    %v1945 = vmul.f32 %v1944, %v1943
    %v1946 = vmul.f32 0.5, %v1945
    %v1947 = vsub.f32 1.5, %v1946
    %v1948 = vmul.f32 %v1943, %v1947
    %vm1949 = vweird.f32 %v1886
    %vm1950 = vweird.f32 %v1943
    %vm1951 = vmor %vm1949, %vm1950
    %v1952 = vsel %vm1951, %v1943, %v1948
    %v1953 = vrsqrt.pop %v1887
    %v1954 = vmul.f32 %v1953, %v1887
    %v1955 = vmul.f32 %v1954, %v1953
    %v1956 = vmul.f32 0.5, %v1955
    %v1957 = vsub.f32 1.5, %v1956
    %v1958 = vmul.f32 %v1953, %v1957
    %vm1959 = vweird.f32 %v1887
    %vm1960 = vweird.f32 %v1953
    %vm1961 = vmor %vm1959, %vm1960
    %v1962 = vsel %vm1961, %v1953, %v1958
    %v1963 = vrsqrt.pop %v1888
    %v1964 = vmul.f32 %v1963, %v1888
    %v1965 = vmul.f32 %v1964, %v1963
    %v1966 = vmul.f32 0.5, %v1965
    %v1967 = vsub.f32 1.5, %v1966
    %v1968 = vmul.f32 %v1963, %v1967
    %vm1969 = vweird.f32 %v1888
    %vm1970 = vweird.f32 %v1963
    %vm1971 = vmor %vm1969, %vm1970
    %v1972 = vsel %vm1971, %v1963, %v1968
    %v1973 = vrsqrt.pop %v1889
    %v1974 = vmul.f32 %v1973, %v1889
    %v1975 = vmul.f32 %v1974, %v1973
    %v1976 = vmul.f32 0.5, %v1975
    %v1977 = vsub.f32 1.5, %v1976
    %v1978 = vmul.f32 %v1973, %v1977
    %vm1979 = vweird.f32 %v1889
    %vm1980 = vweird.f32 %v1973
    %vm1981 = vmor %vm1979, %vm1980
    %v1982 = vsel %vm1981, %v1973, %v1978
    %v1983 = vrsqrt.pop %v1890
    %v1984 = vmul.f32 %v1983, %v1890
    %v1985 = vmul.f32 %v1984, %v1983
    %v1986 = vmul.f32 0.5, %v1985
    %v1987 = vsub.f32 1.5, %v1986
    %v1988 = vmul.f32 %v1983, %v1987
    %vm1989 = vweird.f32 %v1890
    %vm1990 = vweird.f32 %v1983
    %vm1991 = vmor %vm1989, %vm1990
    %v1992 = vsel %vm1991, %v1983, %v1988
    %v1993 = vrsqrt.pop %v1891
    %v1994 = vmul.f32 %v1993, %v1891
    %v1995 = vmul.f32 %v1994, %v1993
    %v1996 = vmul.f32 0.5, %v1995
    %v1997 = vsub.f32 1.5, %v1996
    %v1998 = vmul.f32 %v1993, %v1997
    %vm1999 = vweird.f32 %v1891
    %vm2000 = vweird.f32 %v1993
    %vm2001 = vmor %vm1999, %vm2000
    %v2002 = vsel %vm2001, %v1993, %v1998
    %v2003 = vrsqrt.pop %v1892
    %v2004 = vmul.f32 %v2003, %v1892
    %v2005 = vmul.f32 %v2004, %v2003
    %v2006 = vmul.f32 0.5, %v2005
    %v2007 = vsub.f32 1.5, %v2006
    %v2008 = vmul.f32 %v2003, %v2007
    %vm2009 = vweird.f32 %v1892
    %vm2010 = vweird.f32 %v2003
    %vm2011 = vmor %vm2009, %vm2010
    %v2012 = vsel %vm2011, %v2003, %v2008
    %v2013 = vmul.f32 %v1713, %v1902
    %v2014 = vmul.f32 %v1714, %v1912
    %v2015 = vmul.f32 %v1715, %v1922
    %v2016 = vmul.f32 %v1716, %v1932
    %v2017 = vmul.f32 %v1717, %v1942
    %v2018 = vmul.f32 %v1718, %v1952
    %v2019 = vmul.f32 %v1719, %v1962
    %v2020 = vmul.f32 %v1720, %v1972
    %v2021 = vmul.f32 %v1721, %v1982
    %v2022 = vmul.f32 %v1722, %v1992
    %v2023 = vmul.f32 %v1723, %v2002
    %v2024 = vmul.f32 %v1724, %v2012
    %v2025 = vmul.f32 %v2013, %v1639
    %v2026 = vmul.f32 %v2014, %v1639
    %v2027 = vmul.f32 %v2015, %v1639
    %v2028 = vmul.f32 %v2016, %v1639
    %v2029 = vmul.f32 %v2017, %v1639
    %v2030 = vmul.f32 %v2018, %v1639
    %v2031 = vmul.f32 %v2019, %v1639
    %v2032 = vmul.f32 %v2020, %v1639
    %v2033 = vmul.f32 %v2021, %v1639
    %v2034 = vmul.f32 %v2022, %v1639
    %v2035 = vmul.f32 %v2023, %v1639
    %v2036 = vmul.f32 %v2024, %v1639
    %v2037 = vadd.f32 %v2025, %v1640
    %v2038 = vadd.f32 %v2026, %v1640
    %v2039 = vadd.f32 %v2027, %v1640
    %v2040 = vadd.f32 %v2028, %v1640
    %v2041 = vadd.f32 %v2029, %v1640
    %v2042 = vadd.f32 %v2030, %v1640
    %v2043 = vadd.f32 %v2031, %v1640
    %v2044 = vadd.f32 %v2032, %v1640
    %v2045 = vadd.f32 %v2033, %v1640
    %v2046 = vadd.f32 %v2034, %v1640
    %v2047 = vadd.f32 %v2035, %v1640
    %v2048 = vadd.f32 %v2036, %v1640
    %2061 = vrot.lane.b32.xlu0 %v1902, 1
    %v2062 = vpop.permute.xlu0 %2061
    %2063 = vrot.lane.b32.xlu0 %v1912, 1
    %v2064 = vpop.permute.xlu0 %2063
    %2065 = vrot.lane.b32.xlu0 %v1922, 1
    %v2066 = vpop.permute.xlu0 %2065
    %2067 = vrot.lane.b32.xlu0 %v1932, 1
    %v2068 = vpop.permute.xlu0 %2067
    %2069 = vrot.lane.b32.xlu0 %v1942, 1
    %v2070 = vpop.permute.xlu0 %2069
    %2071 = vrot.lane.b32.xlu0 %v1952, 1
    %v2072 = vpop.permute.xlu0 %2071
    %2073 = vrot.lane.b32.xlu0 %v1962, 1
    %v2074 = vpop.permute.xlu0 %2073
    %2075 = vrot.lane.b32.xlu0 %v1972, 1
    %v2076 = vpop.permute.xlu0 %2075
    %2077 = vrot.lane.b32.xlu0 %v1982, 1
    %v2078 = vpop.permute.xlu0 %2077
    %2079 = vrot.lane.b32.xlu0 %v1992, 1
    %v2080 = vpop.permute.xlu0 %2079
    %2081 = vrot.lane.b32.xlu0 %v2002, 1
    %v2082 = vpop.permute.xlu0 %2081
    %2083 = vrot.lane.b32.xlu0 %v2012, 1
    %v2084 = vpop.permute.xlu0 %2083
    %v2097 = vmul.f32 %v1773, %v2062
    %v2098 = vmul.f32 %v1774, %v2064
    %v2099 = vmul.f32 %v1775, %v2066
    %v2100 = vmul.f32 %v1776, %v2068
    %v2101 = vmul.f32 %v1777, %v2070
    %v2102 = vmul.f32 %v1778, %v2072
    %v2103 = vmul.f32 %v1779, %v2074
    %v2104 = vmul.f32 %v1780, %v2076
    %v2105 = vmul.f32 %v1781, %v2078
    %v2106 = vmul.f32 %v1782, %v2080
    %v2107 = vmul.f32 %v1783, %v2082
    %v2108 = vmul.f32 %v1784, %v2084
    %v2109 = vmul.f32 %v2097, %v1639
    %v2110 = vmul.f32 %v2098, %v1639
    %v2111 = vmul.f32 %v2099, %v1639
    %v2112 = vmul.f32 %v2100, %v1639
    %v2113 = vmul.f32 %v2101, %v1639
    %v2114 = vmul.f32 %v2102, %v1639
    %v2115 = vmul.f32 %v2103, %v1639
    %v2116 = vmul.f32 %v2104, %v1639
    %v2117 = vmul.f32 %v2105, %v1639
    %v2118 = vmul.f32 %v2106, %v1639
    %v2119 = vmul.f32 %v2107, %v1639
    %v2120 = vmul.f32 %v2108, %v1639
    %v2121 = vadd.f32 %v2109, %v1640
    %v2122 = vadd.f32 %v2110, %v1640
    %v2123 = vadd.f32 %v2111, %v1640
    %v2124 = vadd.f32 %v2112, %v1640
    %v2125 = vadd.f32 %v2113, %v1640
    %v2126 = vadd.f32 %v2114, %v1640
    %v2127 = vadd.f32 %v2115, %v1640
    %v2128 = vadd.f32 %v2116, %v1640
    %v2129 = vadd.f32 %v2117, %v1640
    %v2130 = vadd.f32 %v2118, %v1640
    %v2131 = vadd.f32 %v2119, %v1640
    %v2132 = vadd.f32 %v2120, %v1640
    %v2133 = vld [vmem:[#allocation7] sm:$0xff]
    %v2134 = vld [vmem:[#allocation7 + $0x8] sm:$0xff]
    %v2135 = vld [vmem:[#allocation7 + $0x10] sm:$0xff]
    %v2136 = vld [vmem:[#allocation7 + $0x18] sm:$0xff]
    %v2137 = vld [vmem:[#allocation9] sm:$0xff]
    %v2138 = vld [vmem:[#allocation9 + $0x8] sm:$0xff]
    %2140 = vset.pattern.permute.xlu0 0
    %2141 = vperm.xlu0 %2140, %v2037
    %v2142 = vpop.permute.xlu0 %2141
    %v2144 = vperm.slane %v2142, 0
    %2146 = vset.pattern.permute.xlu0 0
    %2147 = vperm.xlu0 %2146, %v2038
    %v2148 = vpop.permute.xlu0 %2147
    %v2150 = vperm.slane %v2148, 0
    %2152 = vset.pattern.permute.xlu0 0
    %2153 = vperm.xlu0 %2152, %v2039
    %v2154 = vpop.permute.xlu0 %2153
    %v2156 = vperm.slane %v2154, 0
    %2158 = vset.pattern.permute.xlu0 0
    %2159 = vperm.xlu0 %2158, %v2040
    %v2160 = vpop.permute.xlu0 %2159
    %v2162 = vperm.slane %v2160, 0
    %2164 = vset.pattern.permute.xlu0 0
    %2165 = vperm.xlu0 %2164, %v2041
    %v2166 = vpop.permute.xlu0 %2165
    %v2168 = vperm.slane %v2166, 0
    %2170 = vset.pattern.permute.xlu0 0
    %2171 = vperm.xlu0 %2170, %v2042
    %v2172 = vpop.permute.xlu0 %2171
    %v2174 = vperm.slane %v2172, 0
    %2176 = vset.pattern.permute.xlu0 0
    %2177 = vperm.xlu0 %2176, %v2043
    %v2178 = vpop.permute.xlu0 %2177
    %v2180 = vperm.slane %v2178, 0
    %2182 = vset.pattern.permute.xlu0 0
    %2183 = vperm.xlu0 %2182, %v2044
    %v2184 = vpop.permute.xlu0 %2183
    %v2186 = vperm.slane %v2184, 0
    %2188 = vset.pattern.permute.xlu0 0
    %2189 = vperm.xlu0 %2188, %v2045
    %v2190 = vpop.permute.xlu0 %2189
    %v2192 = vperm.slane %v2190, 0
    %2194 = vset.pattern.permute.xlu0 0
    %2195 = vperm.xlu0 %2194, %v2046
    %v2196 = vpop.permute.xlu0 %2195
    %v2198 = vperm.slane %v2196, 0
    %2200 = vset.pattern.permute.xlu0 0
    %2201 = vperm.xlu0 %2200, %v2047
    %v2202 = vpop.permute.xlu0 %2201
    %v2204 = vperm.slane %v2202, 0
    %2206 = vset.pattern.permute.xlu0 0
    %2207 = vperm.xlu0 %2206, %v2048
    %v2208 = vpop.permute.xlu0 %2207
    %v2210 = vperm.slane %v2208, 0
    %v2211 = vmul.f32 %v2144, %v2133
    %v2212 = vmul.f32 %v2144, %v2134
    %v2213 = vmul.f32 %v2144, %v2135
    %v2214 = vmul.f32 %v2144, %v2136
    %v2215 = vmul.f32 %v2150, %v2133
    %v2216 = vmul.f32 %v2150, %v2134
    %v2217 = vmul.f32 %v2150, %v2135
    %v2218 = vmul.f32 %v2150, %v2136
    %v2219 = vmul.f32 %v2156, %v2133
    %v2220 = vmul.f32 %v2156, %v2134
    %v2221 = vmul.f32 %v2156, %v2135
    %v2222 = vmul.f32 %v2156, %v2136
    %v2223 = vmul.f32 %v2162, %v2133
    %v2224 = vmul.f32 %v2162, %v2134
    %v2225 = vmul.f32 %v2162, %v2135
    %v2226 = vmul.f32 %v2162, %v2136
    %v2227 = vmul.f32 %v2168, %v2133
    %v2228 = vmul.f32 %v2168, %v2134
    %v2229 = vmul.f32 %v2168, %v2135
    %v2230 = vmul.f32 %v2168, %v2136
    %v2231 = vmul.f32 %v2174, %v2133
    %v2232 = vmul.f32 %v2174, %v2134
    %v2233 = vmul.f32 %v2174, %v2135
    %v2234 = vmul.f32 %v2174, %v2136
    %v2235 = vmul.f32 %v2180, %v2133
    %v2236 = vmul.f32 %v2180, %v2134
    %v2237 = vmul.f32 %v2180, %v2135
    %v2238 = vmul.f32 %v2180, %v2136
    %v2239 = vmul.f32 %v2186, %v2133
    %v2240 = vmul.f32 %v2186, %v2134
    %v2241 = vmul.f32 %v2186, %v2135
    %v2242 = vmul.f32 %v2186, %v2136
    %v2243 = vmul.f32 %v2192, %v2133
    %v2244 = vmul.f32 %v2192, %v2134
    %v2245 = vmul.f32 %v2192, %v2135
    %v2246 = vmul.f32 %v2192, %v2136
    %v2247 = vmul.f32 %v2198, %v2133
    %v2248 = vmul.f32 %v2198, %v2134
    %v2249 = vmul.f32 %v2198, %v2135
    %v2250 = vmul.f32 %v2198, %v2136
    %v2251 = vmul.f32 %v2204, %v2133
    %v2252 = vmul.f32 %v2204, %v2134
    %v2253 = vmul.f32 %v2204, %v2135
    %v2254 = vmul.f32 %v2204, %v2136
    %v2255 = vmul.f32 %v2210, %v2133
    %v2256 = vmul.f32 %v2210, %v2134
    %v2257 = vmul.f32 %v2210, %v2135
    %v2258 = vmul.f32 %v2210, %v2136
    %2260 = vset.pattern.permute.xlu0 1
    %2261 = vperm.xlu0 %2260, %v2121
    %v2262 = vpop.permute.xlu0 %2261
    %v2264 = vperm.slane %v2262, 0
    %2266 = vset.pattern.permute.xlu0 1
    %2267 = vperm.xlu0 %2266, %v2122
    %v2268 = vpop.permute.xlu0 %2267
    %v2270 = vperm.slane %v2268, 0
    %2272 = vset.pattern.permute.xlu0 1
    %2273 = vperm.xlu0 %2272, %v2123
    %v2274 = vpop.permute.xlu0 %2273
    %v2276 = vperm.slane %v2274, 0
    %2278 = vset.pattern.permute.xlu0 1
    %2279 = vperm.xlu0 %2278, %v2124
    %v2280 = vpop.permute.xlu0 %2279
    %v2282 = vperm.slane %v2280, 0
    %2284 = vset.pattern.permute.xlu0 1
    %2285 = vperm.xlu0 %2284, %v2125
    %v2286 = vpop.permute.xlu0 %2285
    %v2288 = vperm.slane %v2286, 0
    %2290 = vset.pattern.permute.xlu0 1
    %2291 = vperm.xlu0 %2290, %v2126
    %v2292 = vpop.permute.xlu0 %2291
    %v2294 = vperm.slane %v2292, 0
    %2296 = vset.pattern.permute.xlu0 1
    %2297 = vperm.xlu0 %2296, %v2127
    %v2298 = vpop.permute.xlu0 %2297
    %v2300 = vperm.slane %v2298, 0
    %2302 = vset.pattern.permute.xlu0 1
    %2303 = vperm.xlu0 %2302, %v2128
    %v2304 = vpop.permute.xlu0 %2303
    %v2306 = vperm.slane %v2304, 0
    %2308 = vset.pattern.permute.xlu0 1
    %2309 = vperm.xlu0 %2308, %v2129
    %v2310 = vpop.permute.xlu0 %2309
    %v2312 = vperm.slane %v2310, 0
    %2314 = vset.pattern.permute.xlu0 1
    %2315 = vperm.xlu0 %2314, %v2130
    %v2316 = vpop.permute.xlu0 %2315
    %v2318 = vperm.slane %v2316, 0
    %2320 = vset.pattern.permute.xlu0 1
    %2321 = vperm.xlu0 %2320, %v2131
    %v2322 = vpop.permute.xlu0 %2321
    %v2324 = vperm.slane %v2322, 0
    %2326 = vset.pattern.permute.xlu0 1
    %2327 = vperm.xlu0 %2326, %v2132
    %v2328 = vpop.permute.xlu0 %2327
    %v2330 = vperm.slane %v2328, 0
    %v2331 = vmul.f32 %v2264, %v2133
    %v2332 = vmul.f32 %v2264, %v2134
    %v2333 = vmul.f32 %v2264, %v2135
    %v2334 = vmul.f32 %v2264, %v2136
    %v2335 = vmul.f32 %v2270, %v2133
    %v2336 = vmul.f32 %v2270, %v2134
    %v2337 = vmul.f32 %v2270, %v2135
    %v2338 = vmul.f32 %v2270, %v2136
    %v2339 = vmul.f32 %v2276, %v2133
    %v2340 = vmul.f32 %v2276, %v2134
    %v2341 = vmul.f32 %v2276, %v2135
    %v2342 = vmul.f32 %v2276, %v2136
    %v2343 = vmul.f32 %v2282, %v2133
    %v2344 = vmul.f32 %v2282, %v2134
    %v2345 = vmul.f32 %v2282, %v2135
    %v2346 = vmul.f32 %v2282, %v2136
    %v2347 = vmul.f32 %v2288, %v2133
    %v2348 = vmul.f32 %v2288, %v2134
    %v2349 = vmul.f32 %v2288, %v2135
    %v2350 = vmul.f32 %v2288, %v2136
    %v2351 = vmul.f32 %v2294, %v2133
    %v2352 = vmul.f32 %v2294, %v2134
    %v2353 = vmul.f32 %v2294, %v2135
    %v2354 = vmul.f32 %v2294, %v2136
    %v2355 = vmul.f32 %v2300, %v2133
    %v2356 = vmul.f32 %v2300, %v2134
    %v2357 = vmul.f32 %v2300, %v2135
    %v2358 = vmul.f32 %v2300, %v2136
    %v2359 = vmul.f32 %v2306, %v2133
    %v2360 = vmul.f32 %v2306, %v2134
    %v2361 = vmul.f32 %v2306, %v2135
    %v2362 = vmul.f32 %v2306, %v2136
    %v2363 = vmul.f32 %v2312, %v2133
    %v2364 = vmul.f32 %v2312, %v2134
    %v2365 = vmul.f32 %v2312, %v2135
    %v2366 = vmul.f32 %v2312, %v2136
    %v2367 = vmul.f32 %v2318, %v2133
    %v2368 = vmul.f32 %v2318, %v2134
    %v2369 = vmul.f32 %v2318, %v2135
    %v2370 = vmul.f32 %v2318, %v2136
    %v2371 = vmul.f32 %v2324, %v2133
    %v2372 = vmul.f32 %v2324, %v2134
    %v2373 = vmul.f32 %v2324, %v2135
    %v2374 = vmul.f32 %v2324, %v2136
    %v2375 = vmul.f32 %v2330, %v2133
    %v2376 = vmul.f32 %v2330, %v2134
    %v2377 = vmul.f32 %v2330, %v2135
    %v2378 = vmul.f32 %v2330, %v2136
    %v2427 = vrot.slane %v2331, 7
    %v2428 = vrot.slane %v2427, 2
    %v2429 = vrot.slane %v2332, 7
    %v2430 = vrot.slane %v2429, 2
    %v2431 = vrot.slane %v2333, 7
    %v2432 = vrot.slane %v2431, 2
    %v2433 = vrot.slane %v2334, 7
    %v2434 = vrot.slane %v2433, 2
    %v2435 = vrot.slane %v2335, 7
    %v2436 = vrot.slane %v2435, 2
    %v2437 = vrot.slane %v2336, 7
    %v2438 = vrot.slane %v2437, 2
    %v2439 = vrot.slane %v2337, 7
    %v2440 = vrot.slane %v2439, 2
    %v2441 = vrot.slane %v2338, 7
    %v2442 = vrot.slane %v2441, 2
    %v2443 = vrot.slane %v2339, 7
    %v2444 = vrot.slane %v2443, 2
    %v2445 = vrot.slane %v2340, 7
    %v2446 = vrot.slane %v2445, 2
    %v2447 = vrot.slane %v2341, 7
    %v2448 = vrot.slane %v2447, 2
    %v2449 = vrot.slane %v2342, 7
    %v2450 = vrot.slane %v2449, 2
    %v2451 = vrot.slane %v2343, 7
    %v2452 = vrot.slane %v2451, 2
    %v2453 = vrot.slane %v2344, 7
    %v2454 = vrot.slane %v2453, 2
    %v2455 = vrot.slane %v2345, 7
    %v2456 = vrot.slane %v2455, 2
    %v2457 = vrot.slane %v2346, 7
    %v2458 = vrot.slane %v2457, 2
    %v2459 = vrot.slane %v2347, 7
    %v2460 = vrot.slane %v2459, 2
    %v2461 = vrot.slane %v2348, 7
    %v2462 = vrot.slane %v2461, 2
    %v2463 = vrot.slane %v2349, 7
    %v2464 = vrot.slane %v2463, 2
    %v2465 = vrot.slane %v2350, 7
    %v2466 = vrot.slane %v2465, 2
    %v2467 = vrot.slane %v2351, 7
    %v2468 = vrot.slane %v2467, 2
    %v2469 = vrot.slane %v2352, 7
    %v2470 = vrot.slane %v2469, 2
    %v2471 = vrot.slane %v2353, 7
    %v2472 = vrot.slane %v2471, 2
    %v2473 = vrot.slane %v2354, 7
    %v2474 = vrot.slane %v2473, 2
    %v2475 = vrot.slane %v2355, 7
    %v2476 = vrot.slane %v2475, 2
    %v2477 = vrot.slane %v2356, 7
    %v2478 = vrot.slane %v2477, 2
    %v2479 = vrot.slane %v2357, 7
    %v2480 = vrot.slane %v2479, 2
    %v2481 = vrot.slane %v2358, 7
    %v2482 = vrot.slane %v2481, 2
    %v2483 = vrot.slane %v2359, 7
    %v2484 = vrot.slane %v2483, 2
    %v2485 = vrot.slane %v2360, 7
    %v2486 = vrot.slane %v2485, 2
    %v2487 = vrot.slane %v2361, 7
    %v2488 = vrot.slane %v2487, 2
    %v2489 = vrot.slane %v2362, 7
    %v2490 = vrot.slane %v2489, 2
    %v2491 = vrot.slane %v2363, 7
    %v2492 = vrot.slane %v2491, 2
    %v2493 = vrot.slane %v2364, 7
    %v2494 = vrot.slane %v2493, 2
    %v2495 = vrot.slane %v2365, 7
    %v2496 = vrot.slane %v2495, 2
    %v2497 = vrot.slane %v2366, 7
    %v2498 = vrot.slane %v2497, 2
    %v2499 = vrot.slane %v2367, 7
    %v2500 = vrot.slane %v2499, 2
    %v2501 = vrot.slane %v2368, 7
    %v2502 = vrot.slane %v2501, 2
    %v2503 = vrot.slane %v2369, 7
    %v2504 = vrot.slane %v2503, 2
    %v2505 = vrot.slane %v2370, 7
    %v2506 = vrot.slane %v2505, 2
    %v2507 = vrot.slane %v2371, 7
    %v2508 = vrot.slane %v2507, 2
    %v2509 = vrot.slane %v2372, 7
    %v2510 = vrot.slane %v2509, 2
    %v2511 = vrot.slane %v2373, 7
    %v2512 = vrot.slane %v2511, 2
    %v2513 = vrot.slane %v2374, 7
    %v2514 = vrot.slane %v2513, 2
    %v2515 = vrot.slane %v2375, 7
    %v2516 = vrot.slane %v2515, 2
    %v2517 = vrot.slane %v2376, 7
    %v2518 = vrot.slane %v2517, 2
    %v2519 = vrot.slane %v2377, 7
    %v2520 = vrot.slane %v2519, 2
    %v2521 = vrot.slane %v2378, 7
    %v2522 = vrot.slane %v2521, 2
    %v2571 = vadd.f32 %v2211, %v2428
    %v2572 = vadd.f32 %v2212, %v2430
    %v2573 = vadd.f32 %v2213, %v2432
    %v2574 = vadd.f32 %v2214, %v2434
    %v2575 = vadd.f32 %v2215, %v2436
    %v2576 = vadd.f32 %v2216, %v2438
    %v2577 = vadd.f32 %v2217, %v2440
    %v2578 = vadd.f32 %v2218, %v2442
    %v2579 = vadd.f32 %v2219, %v2444
    %v2580 = vadd.f32 %v2220, %v2446
    %v2581 = vadd.f32 %v2221, %v2448
    %v2582 = vadd.f32 %v2222, %v2450
    %v2583 = vadd.f32 %v2223, %v2452
    %v2584 = vadd.f32 %v2224, %v2454
    %v2585 = vadd.f32 %v2225, %v2456
    %v2586 = vadd.f32 %v2226, %v2458
    %v2587 = vadd.f32 %v2227, %v2460
    %v2588 = vadd.f32 %v2228, %v2462
    %v2589 = vadd.f32 %v2229, %v2464
    %v2590 = vadd.f32 %v2230, %v2466
    %v2591 = vadd.f32 %v2231, %v2468
    %v2592 = vadd.f32 %v2232, %v2470
    %v2593 = vadd.f32 %v2233, %v2472
    %v2594 = vadd.f32 %v2234, %v2474
    %v2595 = vadd.f32 %v2235, %v2476
    %v2596 = vadd.f32 %v2236, %v2478
    %v2597 = vadd.f32 %v2237, %v2480
    %v2598 = vadd.f32 %v2238, %v2482
    %v2599 = vadd.f32 %v2239, %v2484
    %v2600 = vadd.f32 %v2240, %v2486
    %v2601 = vadd.f32 %v2241, %v2488
    %v2602 = vadd.f32 %v2242, %v2490
    %v2603 = vadd.f32 %v2243, %v2492
    %v2604 = vadd.f32 %v2244, %v2494
    %v2605 = vadd.f32 %v2245, %v2496
    %v2606 = vadd.f32 %v2246, %v2498
    %v2607 = vadd.f32 %v2247, %v2500
    %v2608 = vadd.f32 %v2248, %v2502
    %v2609 = vadd.f32 %v2249, %v2504
    %v2610 = vadd.f32 %v2250, %v2506
    %v2611 = vadd.f32 %v2251, %v2508
    %v2612 = vadd.f32 %v2252, %v2510
    %v2613 = vadd.f32 %v2253, %v2512
    %v2614 = vadd.f32 %v2254, %v2514
    %v2615 = vadd.f32 %v2255, %v2516
    %v2616 = vadd.f32 %v2256, %v2518
    %v2617 = vadd.f32 %v2257, %v2520
    %v2618 = vadd.f32 %v2258, %v2522
    %v2622 = vunpack.c.l.s4 857870592
    %v2623 = vunpack.c.0.s8 %v2622
    %v2624 = vperm.slane %v2137, %v2623
    %v2626 = vunpack.c.l.s4 2003195204
    %v2627 = vunpack.c.0.s8 %v2626
    %v2628 = vperm.slane %v2137, %v2627
    %v2630 = vunpack.c.l.s4 857870592
    %v2631 = vunpack.c.0.s8 %v2630
    %v2632 = vperm.slane %v2138, %v2631
    %v2634 = vunpack.c.l.s4 2003195204
    %v2635 = vunpack.c.0.s8 %v2634
    %v2636 = vperm.slane %v2138, %v2635
    %v2641 = vadd.f32 %v2571, %v2624
    %v2642 = vadd.f32 %v2572, %v2628
    %v2643 = vadd.f32 %v2573, %v2632
    %v2644 = vadd.f32 %v2574, %v2636
    %v2645 = vadd.f32 %v2575, %v2624
    %v2646 = vadd.f32 %v2576, %v2628
    %v2647 = vadd.f32 %v2577, %v2632
    %v2648 = vadd.f32 %v2578, %v2636
    %v2649 = vadd.f32 %v2579, %v2624
    %v2650 = vadd.f32 %v2580, %v2628
    %v2651 = vadd.f32 %v2581, %v2632
    %v2652 = vadd.f32 %v2582, %v2636
    %v2653 = vadd.f32 %v2583, %v2624
    %v2654 = vadd.f32 %v2584, %v2628
    %v2655 = vadd.f32 %v2585, %v2632
    %v2656 = vadd.f32 %v2586, %v2636
    %v2657 = vadd.f32 %v2587, %v2624
    %v2658 = vadd.f32 %v2588, %v2628
    %v2659 = vadd.f32 %v2589, %v2632
    %v2660 = vadd.f32 %v2590, %v2636
    %v2661 = vadd.f32 %v2591, %v2624
    %v2662 = vadd.f32 %v2592, %v2628
    %v2663 = vadd.f32 %v2593, %v2632
    %v2664 = vadd.f32 %v2594, %v2636
    %v2665 = vadd.f32 %v2595, %v2624
    %v2666 = vadd.f32 %v2596, %v2628
    %v2667 = vadd.f32 %v2597, %v2632
    %v2668 = vadd.f32 %v2598, %v2636
    %v2669 = vadd.f32 %v2599, %v2624
    %v2670 = vadd.f32 %v2600, %v2628
    %v2671 = vadd.f32 %v2601, %v2632
    %v2672 = vadd.f32 %v2602, %v2636
    %v2673 = vadd.f32 %v2603, %v2624
    %v2674 = vadd.f32 %v2604, %v2628
    %v2675 = vadd.f32 %v2605, %v2632
    %v2676 = vadd.f32 %v2606, %v2636
    %v2677 = vadd.f32 %v2607, %v2624
    %v2678 = vadd.f32 %v2608, %v2628
    %v2679 = vadd.f32 %v2609, %v2632
    %v2680 = vadd.f32 %v2610, %v2636
    %v2681 = vadd.f32 %v2611, %v2624
    %v2682 = vadd.f32 %v2612, %v2628
    %v2683 = vadd.f32 %v2613, %v2632
    %v2684 = vadd.f32 %v2614, %v2636
    %v2685 = vadd.f32 %v2615, %v2624
    %v2686 = vadd.f32 %v2616, %v2628
    %v2687 = vadd.f32 %v2617, %v2632
    %v2688 = vadd.f32 %v2618, %v2636
    %v2689 = vmax.f32 %v2641, 0.0
    %v2690 = vmax.f32 %v2642, 0.0
    %v2691 = vmax.f32 %v2643, 0.0
    %v2692 = vmax.f32 %v2644, 0.0
    %v2693 = vmax.f32 %v2645, 0.0
    %v2694 = vmax.f32 %v2646, 0.0
    %v2695 = vmax.f32 %v2647, 0.0
    %v2696 = vmax.f32 %v2648, 0.0
    %v2697 = vmax.f32 %v2649, 0.0
    %v2698 = vmax.f32 %v2650, 0.0
    %v2699 = vmax.f32 %v2651, 0.0
    %v2700 = vmax.f32 %v2652, 0.0
    %v2701 = vmax.f32 %v2653, 0.0
    %v2702 = vmax.f32 %v2654, 0.0
    %v2703 = vmax.f32 %v2655, 0.0
    %v2704 = vmax.f32 %v2656, 0.0
    %v2705 = vmax.f32 %v2657, 0.0
    %v2706 = vmax.f32 %v2658, 0.0
    %v2707 = vmax.f32 %v2659, 0.0
    %v2708 = vmax.f32 %v2660, 0.0
    %v2709 = vmax.f32 %v2661, 0.0
    %v2710 = vmax.f32 %v2662, 0.0
    %v2711 = vmax.f32 %v2663, 0.0
    %v2712 = vmax.f32 %v2664, 0.0
    %v2713 = vmax.f32 %v2665, 0.0
    %v2714 = vmax.f32 %v2666, 0.0
    %v2715 = vmax.f32 %v2667, 0.0
    %v2716 = vmax.f32 %v2668, 0.0
    %v2717 = vmax.f32 %v2669, 0.0
    %v2718 = vmax.f32 %v2670, 0.0
    %v2719 = vmax.f32 %v2671, 0.0
    %v2720 = vmax.f32 %v2672, 0.0
    %v2721 = vmax.f32 %v2673, 0.0
    %v2722 = vmax.f32 %v2674, 0.0
    %v2723 = vmax.f32 %v2675, 0.0
    %v2724 = vmax.f32 %v2676, 0.0
    %v2725 = vmax.f32 %v2677, 0.0
    %v2726 = vmax.f32 %v2678, 0.0
    %v2727 = vmax.f32 %v2679, 0.0
    %v2728 = vmax.f32 %v2680, 0.0
    %v2729 = vmax.f32 %v2681, 0.0
    %v2730 = vmax.f32 %v2682, 0.0
    %v2731 = vmax.f32 %v2683, 0.0
    %v2732 = vmax.f32 %v2684, 0.0
    %v2733 = vmax.f32 %v2685, 0.0
    %v2734 = vmax.f32 %v2686, 0.0
    %v2735 = vmax.f32 %v2687, 0.0
    %v2736 = vmax.f32 %v2688, 0.0
    %v2737 = vld [vmem:[#allocation10] ss:$2 sm:$0xff]
    %s2738 = scalar_lea.vmem [#allocation10], 16
    %v2739 = vld [vmem:[%s2738] ss:$2 sm:$0xff]
    %v2743 = vunpack.c.l.s4 857870592
    %v2744 = vunpack.c.0.s8 %v2743
    %v2745 = vperm.slane %v2737, %v2744
    %v2747 = vunpack.c.l.s4 2003195204
    %v2748 = vunpack.c.0.s8 %v2747
    %v2749 = vperm.slane %v2737, %v2748
    %v2751 = vunpack.c.l.s4 857870592
    %v2752 = vunpack.c.0.s8 %v2751
    %v2753 = vperm.slane %v2739, %v2752
    %v2755 = vunpack.c.l.s4 2003195204
    %v2756 = vunpack.c.0.s8 %v2755
    %v2757 = vperm.slane %v2739, %v2756
    %v2762 = vmul.f32 %v2689, %v2745
    %v2763 = vmul.f32 %v2690, %v2749
    %v2764 = vmul.f32 %v2691, %v2753
    %v2765 = vmul.f32 %v2692, %v2757
    %v2766 = vmul.f32 %v2693, %v2745
    %v2767 = vmul.f32 %v2694, %v2749
    %v2768 = vmul.f32 %v2695, %v2753
    %v2769 = vmul.f32 %v2696, %v2757
    %v2770 = vmul.f32 %v2697, %v2745
    %v2771 = vmul.f32 %v2698, %v2749
    %v2772 = vmul.f32 %v2699, %v2753
    %v2773 = vmul.f32 %v2700, %v2757
    %v2774 = vmul.f32 %v2701, %v2745
    %v2775 = vmul.f32 %v2702, %v2749
    %v2776 = vmul.f32 %v2703, %v2753
    %v2777 = vmul.f32 %v2704, %v2757
    %v2778 = vmul.f32 %v2705, %v2745
    %v2779 = vmul.f32 %v2706, %v2749
    %v2780 = vmul.f32 %v2707, %v2753
    %v2781 = vmul.f32 %v2708, %v2757
    %v2782 = vmul.f32 %v2709, %v2745
    %v2783 = vmul.f32 %v2710, %v2749
    %v2784 = vmul.f32 %v2711, %v2753
    %v2785 = vmul.f32 %v2712, %v2757
    %v2786 = vmul.f32 %v2713, %v2745
    %v2787 = vmul.f32 %v2714, %v2749
    %v2788 = vmul.f32 %v2715, %v2753
    %v2789 = vmul.f32 %v2716, %v2757
    %v2790 = vmul.f32 %v2717, %v2745
    %v2791 = vmul.f32 %v2718, %v2749
    %v2792 = vmul.f32 %v2719, %v2753
    %v2793 = vmul.f32 %v2720, %v2757
    %v2794 = vmul.f32 %v2721, %v2745
    %v2795 = vmul.f32 %v2722, %v2749
    %v2796 = vmul.f32 %v2723, %v2753
    %v2797 = vmul.f32 %v2724, %v2757
    %v2798 = vmul.f32 %v2725, %v2745
    %v2799 = vmul.f32 %v2726, %v2749
    %v2800 = vmul.f32 %v2727, %v2753
    %v2801 = vmul.f32 %v2728, %v2757
    %v2802 = vmul.f32 %v2729, %v2745
    %v2803 = vmul.f32 %v2730, %v2749
    %v2804 = vmul.f32 %v2731, %v2753
    %v2805 = vmul.f32 %v2732, %v2757
    %v2806 = vmul.f32 %v2733, %v2745
    %v2807 = vmul.f32 %v2734, %v2749
    %v2808 = vmul.f32 %v2735, %v2753
    %v2809 = vmul.f32 %v2736, %v2757
    %v2858 = vperm.slane %v2762, 0
    %v2859 = vperm.slane %v2762, 2
    %v2860 = vperm.slane %v2762, 4
    %v2861 = vperm.slane %v2762, 6
    %v2862 = vperm.slane %v2763, 0
    %v2863 = vperm.slane %v2763, 2
    %v2864 = vperm.slane %v2763, 4
    %v2865 = vperm.slane %v2763, 6
    %v2866 = vperm.slane %v2764, 0
    %v2867 = vperm.slane %v2764, 2
    %v2868 = vperm.slane %v2764, 4
    %v2869 = vperm.slane %v2764, 6
    %v2870 = vperm.slane %v2765, 0
    %v2871 = vperm.slane %v2765, 2
    %v2872 = vperm.slane %v2765, 4
    %v2873 = vperm.slane %v2765, 6
    %v2874 = vperm.slane %v2766, 0
    %v2875 = vperm.slane %v2766, 2
    %v2876 = vperm.slane %v2766, 4
    %v2877 = vperm.slane %v2766, 6
    %v2878 = vperm.slane %v2767, 0
    %v2879 = vperm.slane %v2767, 2
    %v2880 = vperm.slane %v2767, 4
    %v2881 = vperm.slane %v2767, 6
    %v2882 = vperm.slane %v2768, 0
    %v2883 = vperm.slane %v2768, 2
    %v2884 = vperm.slane %v2768, 4
    %v2885 = vperm.slane %v2768, 6
    %v2886 = vperm.slane %v2769, 0
    %v2887 = vperm.slane %v2769, 2
    %v2888 = vperm.slane %v2769, 4
    %v2889 = vperm.slane %v2769, 6
    %v2890 = vperm.slane %v2770, 0
    %v2891 = vperm.slane %v2770, 2
    %v2892 = vperm.slane %v2770, 4
    %v2893 = vperm.slane %v2770, 6
    %v2894 = vperm.slane %v2771, 0
    %v2895 = vperm.slane %v2771, 2
    %v2896 = vperm.slane %v2771, 4
    %v2897 = vperm.slane %v2771, 6
    %v2898 = vperm.slane %v2772, 0
    %v2899 = vperm.slane %v2772, 2
    %v2900 = vperm.slane %v2772, 4
    %v2901 = vperm.slane %v2772, 6
    %v2902 = vperm.slane %v2773, 0
    %v2903 = vperm.slane %v2773, 2
    %v2904 = vperm.slane %v2773, 4
    %v2905 = vperm.slane %v2773, 6
    %v2906 = vperm.slane %v2774, 0
    %v2907 = vperm.slane %v2774, 2
    %v2908 = vperm.slane %v2774, 4
    %v2909 = vperm.slane %v2774, 6
    %v2910 = vperm.slane %v2775, 0
    %v2911 = vperm.slane %v2775, 2
    %v2912 = vperm.slane %v2775, 4
    %v2913 = vperm.slane %v2775, 6
    %v2914 = vperm.slane %v2776, 0
    %v2915 = vperm.slane %v2776, 2
    %v2916 = vperm.slane %v2776, 4
    %v2917 = vperm.slane %v2776, 6
    %v2918 = vperm.slane %v2777, 0
    %v2919 = vperm.slane %v2777, 2
    %v2920 = vperm.slane %v2777, 4
    %v2921 = vperm.slane %v2777, 6
    %v2922 = vperm.slane %v2778, 0
    %v2923 = vperm.slane %v2778, 2
    %v2924 = vperm.slane %v2778, 4
    %v2925 = vperm.slane %v2778, 6
    %v2926 = vperm.slane %v2779, 0
    %v2927 = vperm.slane %v2779, 2
    %v2928 = vperm.slane %v2779, 4
    %v2929 = vperm.slane %v2779, 6
    %v2930 = vperm.slane %v2780, 0
    %v2931 = vperm.slane %v2780, 2
    %v2932 = vperm.slane %v2780, 4
    %v2933 = vperm.slane %v2780, 6
    %v2934 = vperm.slane %v2781, 0
    %v2935 = vperm.slane %v2781, 2
    %v2936 = vperm.slane %v2781, 4
    %v2937 = vperm.slane %v2781, 6
    %v2938 = vperm.slane %v2782, 0
    %v2939 = vperm.slane %v2782, 2
    %v2940 = vperm.slane %v2782, 4
    %v2941 = vperm.slane %v2782, 6
    %v2942 = vperm.slane %v2783, 0
    %v2943 = vperm.slane %v2783, 2
    %v2944 = vperm.slane %v2783, 4
    %v2945 = vperm.slane %v2783, 6
    %v2946 = vperm.slane %v2784, 0
    %v2947 = vperm.slane %v2784, 2
    %v2948 = vperm.slane %v2784, 4
    %v2949 = vperm.slane %v2784, 6
    %v2950 = vperm.slane %v2785, 0
    %v2951 = vperm.slane %v2785, 2
    %v2952 = vperm.slane %v2785, 4
    %v2953 = vperm.slane %v2785, 6
    %v2954 = vperm.slane %v2786, 0
    %v2955 = vperm.slane %v2786, 2
    %v2956 = vperm.slane %v2786, 4
    %v2957 = vperm.slane %v2786, 6
    %v2958 = vperm.slane %v2787, 0
    %v2959 = vperm.slane %v2787, 2
    %v2960 = vperm.slane %v2787, 4
    %v2961 = vperm.slane %v2787, 6
    %v2962 = vperm.slane %v2788, 0
    %v2963 = vperm.slane %v2788, 2
    %v2964 = vperm.slane %v2788, 4
    %v2965 = vperm.slane %v2788, 6
    %v2966 = vperm.slane %v2789, 0
    %v2967 = vperm.slane %v2789, 2
    %v2968 = vperm.slane %v2789, 4
    %v2969 = vperm.slane %v2789, 6
    %v2970 = vperm.slane %v2790, 0
    %v2971 = vperm.slane %v2790, 2
    %v2972 = vperm.slane %v2790, 4
    %v2973 = vperm.slane %v2790, 6
    %v2974 = vperm.slane %v2791, 0
    %v2975 = vperm.slane %v2791, 2
    %v2976 = vperm.slane %v2791, 4
    %v2977 = vperm.slane %v2791, 6
    %v2978 = vperm.slane %v2792, 0
    %v2979 = vperm.slane %v2792, 2
    %v2980 = vperm.slane %v2792, 4
    %v2981 = vperm.slane %v2792, 6
    %v2982 = vperm.slane %v2793, 0
    %v2983 = vperm.slane %v2793, 2
    %v2984 = vperm.slane %v2793, 4
    %v2985 = vperm.slane %v2793, 6
    %v2986 = vperm.slane %v2794, 0
    %v2987 = vperm.slane %v2794, 2
    %v2988 = vperm.slane %v2794, 4
    %v2989 = vperm.slane %v2794, 6
    %v2990 = vperm.slane %v2795, 0
    %v2991 = vperm.slane %v2795, 2
    %v2992 = vperm.slane %v2795, 4
    %v2993 = vperm.slane %v2795, 6
    %v2994 = vperm.slane %v2796, 0
    %v2995 = vperm.slane %v2796, 2
    %v2996 = vperm.slane %v2796, 4
    %v2997 = vperm.slane %v2796, 6
    %v2998 = vperm.slane %v2797, 0
    %v2999 = vperm.slane %v2797, 2
    %v3000 = vperm.slane %v2797, 4
    %v3001 = vperm.slane %v2797, 6
    %v3002 = vperm.slane %v2798, 0
    %v3003 = vperm.slane %v2798, 2
    %v3004 = vperm.slane %v2798, 4
    %v3005 = vperm.slane %v2798, 6
    %v3006 = vperm.slane %v2799, 0
    %v3007 = vperm.slane %v2799, 2
    %v3008 = vperm.slane %v2799, 4
    %v3009 = vperm.slane %v2799, 6
    %v3010 = vperm.slane %v2800, 0
    %v3011 = vperm.slane %v2800, 2
    %v3012 = vperm.slane %v2800, 4
    %v3013 = vperm.slane %v2800, 6
    %v3014 = vperm.slane %v2801, 0
    %v3015 = vperm.slane %v2801, 2
    %v3016 = vperm.slane %v2801, 4
    %v3017 = vperm.slane %v2801, 6
    %v3018 = vperm.slane %v2802, 0
    %v3019 = vperm.slane %v2802, 2
    %v3020 = vperm.slane %v2802, 4
    %v3021 = vperm.slane %v2802, 6
    %v3022 = vperm.slane %v2803, 0
    %v3023 = vperm.slane %v2803, 2
    %v3024 = vperm.slane %v2803, 4
    %v3025 = vperm.slane %v2803, 6
    %v3026 = vperm.slane %v2804, 0
    %v3027 = vperm.slane %v2804, 2
    %v3028 = vperm.slane %v2804, 4
    %v3029 = vperm.slane %v2804, 6
    %v3030 = vperm.slane %v2805, 0
    %v3031 = vperm.slane %v2805, 2
    %v3032 = vperm.slane %v2805, 4
    %v3033 = vperm.slane %v2805, 6
    %v3034 = vperm.slane %v2806, 0
    %v3035 = vperm.slane %v2806, 2
    %v3036 = vperm.slane %v2806, 4
    %v3037 = vperm.slane %v2806, 6
    %v3038 = vperm.slane %v2807, 0
    %v3039 = vperm.slane %v2807, 2
    %v3040 = vperm.slane %v2807, 4
    %v3041 = vperm.slane %v2807, 6
    %v3042 = vperm.slane %v2808, 0
    %v3043 = vperm.slane %v2808, 2
    %v3044 = vperm.slane %v2808, 4
    %v3045 = vperm.slane %v2808, 6
    %v3046 = vperm.slane %v2809, 0
    %v3047 = vperm.slane %v2809, 2
    %v3048 = vperm.slane %v2809, 4
    %v3049 = vperm.slane %v2809, 6
    %vm3242 = vcmask 1040384
    %v3243 = vsel %vm3242, %v2858, 0.0
    %v3244 = vsel %vm3242, %v2859, 0.0
    %v3245 = vadd.f32 %v3243, %v3244
    %v3246 = vsel %vm3242, %v2860, 0.0
    %v3247 = vadd.f32 %v3245, %v3246
    %v3248 = vsel %vm3242, %v2861, 0.0
    %v3249 = vadd.f32 %v3247, %v3248
    %v3250 = vsel %vm3242, %v2862, 0.0
    %v3251 = vadd.f32 %v3249, %v3250
    %v3252 = vsel %vm3242, %v2863, 0.0
    %v3253 = vadd.f32 %v3251, %v3252
    %v3254 = vsel %vm3242, %v2864, 0.0
    %v3255 = vadd.f32 %v3253, %v3254
    %v3256 = vsel %vm3242, %v2865, 0.0
    %v3257 = vadd.f32 %v3255, %v3256
    %v3258 = vsel %vm3242, %v2866, 0.0
    %v3259 = vadd.f32 %v3257, %v3258
    %v3260 = vsel %vm3242, %v2867, 0.0
    %v3261 = vadd.f32 %v3259, %v3260
    %v3262 = vsel %vm3242, %v2868, 0.0
    %v3263 = vadd.f32 %v3261, %v3262
    %v3264 = vsel %vm3242, %v2869, 0.0
    %v3265 = vadd.f32 %v3263, %v3264
    %v3266 = vsel %vm3242, %v2870, 0.0
    %v3267 = vadd.f32 %v3265, %v3266
    %v3268 = vsel %vm3242, %v2871, 0.0
    %v3269 = vadd.f32 %v3267, %v3268
    %v3270 = vsel %vm3242, %v2872, 0.0
    %v3271 = vadd.f32 %v3269, %v3270
    %v3272 = vsel %vm3242, %v2873, 0.0
    %v3273 = vadd.f32 %v3271, %v3272
    %3274 = vadd.xlane.f32.xlu0 %v3273
    %v3275 = vpop.xlane.xlu0 %3274
    %v3276 = vsel %vm3242, %v2874, 0.0
    %v3277 = vsel %vm3242, %v2875, 0.0
    %v3278 = vadd.f32 %v3276, %v3277
    %v3279 = vsel %vm3242, %v2876, 0.0
    %v3280 = vadd.f32 %v3278, %v3279
    %v3281 = vsel %vm3242, %v2877, 0.0
    %v3282 = vadd.f32 %v3280, %v3281
    %v3283 = vsel %vm3242, %v2878, 0.0
    %v3284 = vadd.f32 %v3282, %v3283
    %v3285 = vsel %vm3242, %v2879, 0.0
    %v3286 = vadd.f32 %v3284, %v3285
    %v3287 = vsel %vm3242, %v2880, 0.0
    %v3288 = vadd.f32 %v3286, %v3287
    %v3289 = vsel %vm3242, %v2881, 0.0
    %v3290 = vadd.f32 %v3288, %v3289
    %v3291 = vsel %vm3242, %v2882, 0.0
    %v3292 = vadd.f32 %v3290, %v3291
    %v3293 = vsel %vm3242, %v2883, 0.0
    %v3294 = vadd.f32 %v3292, %v3293
    %v3295 = vsel %vm3242, %v2884, 0.0
    %v3296 = vadd.f32 %v3294, %v3295
    %v3297 = vsel %vm3242, %v2885, 0.0
    %v3298 = vadd.f32 %v3296, %v3297
    %v3299 = vsel %vm3242, %v2886, 0.0
    %v3300 = vadd.f32 %v3298, %v3299
    %v3301 = vsel %vm3242, %v2887, 0.0
    %v3302 = vadd.f32 %v3300, %v3301
    %v3303 = vsel %vm3242, %v2888, 0.0
    %v3304 = vadd.f32 %v3302, %v3303
    %v3305 = vsel %vm3242, %v2889, 0.0
    %v3306 = vadd.f32 %v3304, %v3305
    %3307 = vadd.xlane.f32.xlu0 %v3306
    %v3308 = vpop.xlane.xlu0 %3307
    %v3309 = vsel %vm3242, %v2890, 0.0
    %v3310 = vsel %vm3242, %v2891, 0.0
    %v3311 = vadd.f32 %v3309, %v3310
    %v3312 = vsel %vm3242, %v2892, 0.0
    %v3313 = vadd.f32 %v3311, %v3312
    %v3314 = vsel %vm3242, %v2893, 0.0
    %v3315 = vadd.f32 %v3313, %v3314
    %v3316 = vsel %vm3242, %v2894, 0.0
    %v3317 = vadd.f32 %v3315, %v3316
    %v3318 = vsel %vm3242, %v2895, 0.0
    %v3319 = vadd.f32 %v3317, %v3318
    %v3320 = vsel %vm3242, %v2896, 0.0
    %v3321 = vadd.f32 %v3319, %v3320
    %v3322 = vsel %vm3242, %v2897, 0.0
    %v3323 = vadd.f32 %v3321, %v3322
    %v3324 = vsel %vm3242, %v2898, 0.0
    %v3325 = vadd.f32 %v3323, %v3324
    %v3326 = vsel %vm3242, %v2899, 0.0
    %v3327 = vadd.f32 %v3325, %v3326
    %v3328 = vsel %vm3242, %v2900, 0.0
    %v3329 = vadd.f32 %v3327, %v3328
    %v3330 = vsel %vm3242, %v2901, 0.0
    %v3331 = vadd.f32 %v3329, %v3330
    %v3332 = vsel %vm3242, %v2902, 0.0
    %v3333 = vadd.f32 %v3331, %v3332
    %v3334 = vsel %vm3242, %v2903, 0.0
    %v3335 = vadd.f32 %v3333, %v3334
    %v3336 = vsel %vm3242, %v2904, 0.0
    %v3337 = vadd.f32 %v3335, %v3336
    %v3338 = vsel %vm3242, %v2905, 0.0
    %v3339 = vadd.f32 %v3337, %v3338
    %3340 = vadd.xlane.f32.xlu0 %v3339
    %v3341 = vpop.xlane.xlu0 %3340
    %v3342 = vsel %vm3242, %v2906, 0.0
    %v3343 = vsel %vm3242, %v2907, 0.0
    %v3344 = vadd.f32 %v3342, %v3343
    %v3345 = vsel %vm3242, %v2908, 0.0
    %v3346 = vadd.f32 %v3344, %v3345
    %v3347 = vsel %vm3242, %v2909, 0.0
    %v3348 = vadd.f32 %v3346, %v3347
    %v3349 = vsel %vm3242, %v2910, 0.0
    %v3350 = vadd.f32 %v3348, %v3349
    %v3351 = vsel %vm3242, %v2911, 0.0
    %v3352 = vadd.f32 %v3350, %v3351
    %v3353 = vsel %vm3242, %v2912, 0.0
    %v3354 = vadd.f32 %v3352, %v3353
    %v3355 = vsel %vm3242, %v2913, 0.0
    %v3356 = vadd.f32 %v3354, %v3355
    %v3357 = vsel %vm3242, %v2914, 0.0
    %v3358 = vadd.f32 %v3356, %v3357
    %v3359 = vsel %vm3242, %v2915, 0.0
    %v3360 = vadd.f32 %v3358, %v3359
    %v3361 = vsel %vm3242, %v2916, 0.0
    %v3362 = vadd.f32 %v3360, %v3361
    %v3363 = vsel %vm3242, %v2917, 0.0
    %v3364 = vadd.f32 %v3362, %v3363
    %v3365 = vsel %vm3242, %v2918, 0.0
    %v3366 = vadd.f32 %v3364, %v3365
    %v3367 = vsel %vm3242, %v2919, 0.0
    %v3368 = vadd.f32 %v3366, %v3367
    %v3369 = vsel %vm3242, %v2920, 0.0
    %v3370 = vadd.f32 %v3368, %v3369
    %v3371 = vsel %vm3242, %v2921, 0.0
    %v3372 = vadd.f32 %v3370, %v3371
    %3373 = vadd.xlane.f32.xlu0 %v3372
    %v3374 = vpop.xlane.xlu0 %3373
    %v3375 = vsel %vm3242, %v2922, 0.0
    %v3376 = vsel %vm3242, %v2923, 0.0
    %v3377 = vadd.f32 %v3375, %v3376
    %v3378 = vsel %vm3242, %v2924, 0.0
    %v3379 = vadd.f32 %v3377, %v3378
    %v3380 = vsel %vm3242, %v2925, 0.0
    %v3381 = vadd.f32 %v3379, %v3380
    %v3382 = vsel %vm3242, %v2926, 0.0
    %v3383 = vadd.f32 %v3381, %v3382
    %v3384 = vsel %vm3242, %v2927, 0.0
    %v3385 = vadd.f32 %v3383, %v3384
    %v3386 = vsel %vm3242, %v2928, 0.0
    %v3387 = vadd.f32 %v3385, %v3386
    %v3388 = vsel %vm3242, %v2929, 0.0
    %v3389 = vadd.f32 %v3387, %v3388
    %v3390 = vsel %vm3242, %v2930, 0.0
    %v3391 = vadd.f32 %v3389, %v3390
    %v3392 = vsel %vm3242, %v2931, 0.0
    %v3393 = vadd.f32 %v3391, %v3392
    %v3394 = vsel %vm3242, %v2932, 0.0
    %v3395 = vadd.f32 %v3393, %v3394
    %v3396 = vsel %vm3242, %v2933, 0.0
    %v3397 = vadd.f32 %v3395, %v3396
    %v3398 = vsel %vm3242, %v2934, 0.0
    %v3399 = vadd.f32 %v3397, %v3398
    %v3400 = vsel %vm3242, %v2935, 0.0
    %v3401 = vadd.f32 %v3399, %v3400
    %v3402 = vsel %vm3242, %v2936, 0.0
    %v3403 = vadd.f32 %v3401, %v3402
    %v3404 = vsel %vm3242, %v2937, 0.0
    %v3405 = vadd.f32 %v3403, %v3404
    %3406 = vadd.xlane.f32.xlu0 %v3405
    %v3407 = vpop.xlane.xlu0 %3406
    %v3408 = vsel %vm3242, %v2938, 0.0
    %v3409 = vsel %vm3242, %v2939, 0.0
    %v3410 = vadd.f32 %v3408, %v3409
    %v3411 = vsel %vm3242, %v2940, 0.0
    %v3412 = vadd.f32 %v3410, %v3411
    %v3413 = vsel %vm3242, %v2941, 0.0
    %v3414 = vadd.f32 %v3412, %v3413
    %v3415 = vsel %vm3242, %v2942, 0.0
    %v3416 = vadd.f32 %v3414, %v3415
    %v3417 = vsel %vm3242, %v2943, 0.0
    %v3418 = vadd.f32 %v3416, %v3417
    %v3419 = vsel %vm3242, %v2944, 0.0
    %v3420 = vadd.f32 %v3418, %v3419
    %v3421 = vsel %vm3242, %v2945, 0.0
    %v3422 = vadd.f32 %v3420, %v3421
    %v3423 = vsel %vm3242, %v2946, 0.0
    %v3424 = vadd.f32 %v3422, %v3423
    %v3425 = vsel %vm3242, %v2947, 0.0
    %v3426 = vadd.f32 %v3424, %v3425
    %v3427 = vsel %vm3242, %v2948, 0.0
    %v3428 = vadd.f32 %v3426, %v3427
    %v3429 = vsel %vm3242, %v2949, 0.0
    %v3430 = vadd.f32 %v3428, %v3429
    %v3431 = vsel %vm3242, %v2950, 0.0
    %v3432 = vadd.f32 %v3430, %v3431
    %v3433 = vsel %vm3242, %v2951, 0.0
    %v3434 = vadd.f32 %v3432, %v3433
    %v3435 = vsel %vm3242, %v2952, 0.0
    %v3436 = vadd.f32 %v3434, %v3435
    %v3437 = vsel %vm3242, %v2953, 0.0
    %v3438 = vadd.f32 %v3436, %v3437
    %3439 = vadd.xlane.f32.xlu0 %v3438
    %v3440 = vpop.xlane.xlu0 %3439
    %v3441 = vsel %vm3242, %v2954, 0.0
    %v3442 = vsel %vm3242, %v2955, 0.0
    %v3443 = vadd.f32 %v3441, %v3442
    %v3444 = vsel %vm3242, %v2956, 0.0
    %v3445 = vadd.f32 %v3443, %v3444
    %v3446 = vsel %vm3242, %v2957, 0.0
    %v3447 = vadd.f32 %v3445, %v3446
    %v3448 = vsel %vm3242, %v2958, 0.0
    %v3449 = vadd.f32 %v3447, %v3448
    %v3450 = vsel %vm3242, %v2959, 0.0
    %v3451 = vadd.f32 %v3449, %v3450
    %v3452 = vsel %vm3242, %v2960, 0.0
    %v3453 = vadd.f32 %v3451, %v3452
    %v3454 = vsel %vm3242, %v2961, 0.0
    %v3455 = vadd.f32 %v3453, %v3454
    %v3456 = vsel %vm3242, %v2962, 0.0
    %v3457 = vadd.f32 %v3455, %v3456
    %v3458 = vsel %vm3242, %v2963, 0.0
    %v3459 = vadd.f32 %v3457, %v3458
    %v3460 = vsel %vm3242, %v2964, 0.0
    %v3461 = vadd.f32 %v3459, %v3460
    %v3462 = vsel %vm3242, %v2965, 0.0
    %v3463 = vadd.f32 %v3461, %v3462
    %v3464 = vsel %vm3242, %v2966, 0.0
    %v3465 = vadd.f32 %v3463, %v3464
    %v3466 = vsel %vm3242, %v2967, 0.0
    %v3467 = vadd.f32 %v3465, %v3466
    %v3468 = vsel %vm3242, %v2968, 0.0
    %v3469 = vadd.f32 %v3467, %v3468
    %v3470 = vsel %vm3242, %v2969, 0.0
    %v3471 = vadd.f32 %v3469, %v3470
    %3472 = vadd.xlane.f32.xlu0 %v3471
    %v3473 = vpop.xlane.xlu0 %3472
    %v3474 = vsel %vm3242, %v2970, 0.0
    %v3475 = vsel %vm3242, %v2971, 0.0
    %v3476 = vadd.f32 %v3474, %v3475
    %v3477 = vsel %vm3242, %v2972, 0.0
    %v3478 = vadd.f32 %v3476, %v3477
    %v3479 = vsel %vm3242, %v2973, 0.0
    %v3480 = vadd.f32 %v3478, %v3479
    %v3481 = vsel %vm3242, %v2974, 0.0
    %v3482 = vadd.f32 %v3480, %v3481
    %v3483 = vsel %vm3242, %v2975, 0.0
    %v3484 = vadd.f32 %v3482, %v3483
    %v3485 = vsel %vm3242, %v2976, 0.0
    %v3486 = vadd.f32 %v3484, %v3485
    %v3487 = vsel %vm3242, %v2977, 0.0
    %v3488 = vadd.f32 %v3486, %v3487
    %v3489 = vsel %vm3242, %v2978, 0.0
    %v3490 = vadd.f32 %v3488, %v3489
    %v3491 = vsel %vm3242, %v2979, 0.0
    %v3492 = vadd.f32 %v3490, %v3491
    %v3493 = vsel %vm3242, %v2980, 0.0
    %v3494 = vadd.f32 %v3492, %v3493
    %v3495 = vsel %vm3242, %v2981, 0.0
    %v3496 = vadd.f32 %v3494, %v3495
    %v3497 = vsel %vm3242, %v2982, 0.0
    %v3498 = vadd.f32 %v3496, %v3497
    %v3499 = vsel %vm3242, %v2983, 0.0
    %v3500 = vadd.f32 %v3498, %v3499
    %v3501 = vsel %vm3242, %v2984, 0.0
    %v3502 = vadd.f32 %v3500, %v3501
    %v3503 = vsel %vm3242, %v2985, 0.0
    %v3504 = vadd.f32 %v3502, %v3503
    %3505 = vadd.xlane.f32.xlu0 %v3504
    %v3506 = vpop.xlane.xlu0 %3505
    %v3507 = vsel %vm3242, %v2986, 0.0
    %v3508 = vsel %vm3242, %v2987, 0.0
    %v3509 = vadd.f32 %v3507, %v3508
    %v3510 = vsel %vm3242, %v2988, 0.0
    %v3511 = vadd.f32 %v3509, %v3510
    %v3512 = vsel %vm3242, %v2989, 0.0
    %v3513 = vadd.f32 %v3511, %v3512
    %v3514 = vsel %vm3242, %v2990, 0.0
    %v3515 = vadd.f32 %v3513, %v3514
    %v3516 = vsel %vm3242, %v2991, 0.0
    %v3517 = vadd.f32 %v3515, %v3516
    %v3518 = vsel %vm3242, %v2992, 0.0
    %v3519 = vadd.f32 %v3517, %v3518
    %v3520 = vsel %vm3242, %v2993, 0.0
    %v3521 = vadd.f32 %v3519, %v3520
    %v3522 = vsel %vm3242, %v2994, 0.0
    %v3523 = vadd.f32 %v3521, %v3522
    %v3524 = vsel %vm3242, %v2995, 0.0
    %v3525 = vadd.f32 %v3523, %v3524
    %v3526 = vsel %vm3242, %v2996, 0.0
    %v3527 = vadd.f32 %v3525, %v3526
    %v3528 = vsel %vm3242, %v2997, 0.0
    %v3529 = vadd.f32 %v3527, %v3528
    %v3530 = vsel %vm3242, %v2998, 0.0
    %v3531 = vadd.f32 %v3529, %v3530
    %v3532 = vsel %vm3242, %v2999, 0.0
    %v3533 = vadd.f32 %v3531, %v3532
    %v3534 = vsel %vm3242, %v3000, 0.0
    %v3535 = vadd.f32 %v3533, %v3534
    %v3536 = vsel %vm3242, %v3001, 0.0
    %v3537 = vadd.f32 %v3535, %v3536
    %3538 = vadd.xlane.f32.xlu0 %v3537
    %v3539 = vpop.xlane.xlu0 %3538
    %v3540 = vsel %vm3242, %v3002, 0.0
    %v3541 = vsel %vm3242, %v3003, 0.0
    %v3542 = vadd.f32 %v3540, %v3541
    %v3543 = vsel %vm3242, %v3004, 0.0
    %v3544 = vadd.f32 %v3542, %v3543
    %v3545 = vsel %vm3242, %v3005, 0.0
    %v3546 = vadd.f32 %v3544, %v3545
    %v3547 = vsel %vm3242, %v3006, 0.0
    %v3548 = vadd.f32 %v3546, %v3547
    %v3549 = vsel %vm3242, %v3007, 0.0
    %v3550 = vadd.f32 %v3548, %v3549
    %v3551 = vsel %vm3242, %v3008, 0.0
    %v3552 = vadd.f32 %v3550, %v3551
    %v3553 = vsel %vm3242, %v3009, 0.0
    %v3554 = vadd.f32 %v3552, %v3553
    %v3555 = vsel %vm3242, %v3010, 0.0
    %v3556 = vadd.f32 %v3554, %v3555
    %v3557 = vsel %vm3242, %v3011, 0.0
    %v3558 = vadd.f32 %v3556, %v3557
    %v3559 = vsel %vm3242, %v3012, 0.0
    %v3560 = vadd.f32 %v3558, %v3559
    %v3561 = vsel %vm3242, %v3013, 0.0
    %v3562 = vadd.f32 %v3560, %v3561
    %v3563 = vsel %vm3242, %v3014, 0.0
    %v3564 = vadd.f32 %v3562, %v3563
    %v3565 = vsel %vm3242, %v3015, 0.0
    %v3566 = vadd.f32 %v3564, %v3565
    %v3567 = vsel %vm3242, %v3016, 0.0
    %v3568 = vadd.f32 %v3566, %v3567
    %v3569 = vsel %vm3242, %v3017, 0.0
    %v3570 = vadd.f32 %v3568, %v3569
    %3571 = vadd.xlane.f32.xlu0 %v3570
    %v3572 = vpop.xlane.xlu0 %3571
    %v3573 = vsel %vm3242, %v3018, 0.0
    %v3574 = vsel %vm3242, %v3019, 0.0
    %v3575 = vadd.f32 %v3573, %v3574
    %v3576 = vsel %vm3242, %v3020, 0.0
    %v3577 = vadd.f32 %v3575, %v3576
    %v3578 = vsel %vm3242, %v3021, 0.0
    %v3579 = vadd.f32 %v3577, %v3578
    %v3580 = vsel %vm3242, %v3022, 0.0
    %v3581 = vadd.f32 %v3579, %v3580
    %v3582 = vsel %vm3242, %v3023, 0.0
    %v3583 = vadd.f32 %v3581, %v3582
    %v3584 = vsel %vm3242, %v3024, 0.0
    %v3585 = vadd.f32 %v3583, %v3584
    %v3586 = vsel %vm3242, %v3025, 0.0
    %v3587 = vadd.f32 %v3585, %v3586
    %v3588 = vsel %vm3242, %v3026, 0.0
    %v3589 = vadd.f32 %v3587, %v3588
    %v3590 = vsel %vm3242, %v3027, 0.0
    %v3591 = vadd.f32 %v3589, %v3590
    %v3592 = vsel %vm3242, %v3028, 0.0
    %v3593 = vadd.f32 %v3591, %v3592
    %v3594 = vsel %vm3242, %v3029, 0.0
    %v3595 = vadd.f32 %v3593, %v3594
    %v3596 = vsel %vm3242, %v3030, 0.0
    %v3597 = vadd.f32 %v3595, %v3596
    %v3598 = vsel %vm3242, %v3031, 0.0
    %v3599 = vadd.f32 %v3597, %v3598
    %v3600 = vsel %vm3242, %v3032, 0.0
    %v3601 = vadd.f32 %v3599, %v3600
    %v3602 = vsel %vm3242, %v3033, 0.0
    %v3603 = vadd.f32 %v3601, %v3602
    %3604 = vadd.xlane.f32.xlu0 %v3603
    %v3605 = vpop.xlane.xlu0 %3604
    %v3606 = vsel %vm3242, %v3034, 0.0
    %v3607 = vsel %vm3242, %v3035, 0.0
    %v3608 = vadd.f32 %v3606, %v3607
    %v3609 = vsel %vm3242, %v3036, 0.0
    %v3610 = vadd.f32 %v3608, %v3609
    %v3611 = vsel %vm3242, %v3037, 0.0
    %v3612 = vadd.f32 %v3610, %v3611
    %v3613 = vsel %vm3242, %v3038, 0.0
    %v3614 = vadd.f32 %v3612, %v3613
    %v3615 = vsel %vm3242, %v3039, 0.0
    %v3616 = vadd.f32 %v3614, %v3615
    %v3617 = vsel %vm3242, %v3040, 0.0
    %v3618 = vadd.f32 %v3616, %v3617
    %v3619 = vsel %vm3242, %v3041, 0.0
    %v3620 = vadd.f32 %v3618, %v3619
    %v3621 = vsel %vm3242, %v3042, 0.0
    %v3622 = vadd.f32 %v3620, %v3621
    %v3623 = vsel %vm3242, %v3043, 0.0
    %v3624 = vadd.f32 %v3622, %v3623
    %v3625 = vsel %vm3242, %v3044, 0.0
    %v3626 = vadd.f32 %v3624, %v3625
    %v3627 = vsel %vm3242, %v3045, 0.0
    %v3628 = vadd.f32 %v3626, %v3627
    %v3629 = vsel %vm3242, %v3046, 0.0
    %v3630 = vadd.f32 %v3628, %v3629
    %v3631 = vsel %vm3242, %v3047, 0.0
    %v3632 = vadd.f32 %v3630, %v3631
    %v3633 = vsel %vm3242, %v3048, 0.0
    %v3634 = vadd.f32 %v3632, %v3633
    %v3635 = vsel %vm3242, %v3049, 0.0
    %v3636 = vadd.f32 %v3634, %v3635
    %3637 = vadd.xlane.f32.xlu0 %v3636
    %v3638 = vpop.xlane.xlu0 %3637
    %v3639 = vld [vmem:[%s16] sm:$0x1]
    %v3640 = vadd.f32 %v3275, %v3639
    %v3641 = vadd.f32 %v3308, %v3639
    %v3642 = vadd.f32 %v3341, %v3639
    %v3643 = vadd.f32 %v3374, %v3639
    %v3644 = vadd.f32 %v3407, %v3639
    %v3645 = vadd.f32 %v3440, %v3639
    %v3646 = vadd.f32 %v3473, %v3639
    %v3647 = vadd.f32 %v3506, %v3639
    %v3648 = vadd.f32 %v3539, %v3639
    %v3649 = vadd.f32 %v3572, %v3639
    %v3650 = vadd.f32 %v3605, %v3639
    %v3651 = vadd.f32 %v3638, %v3639
    %s3652 = scalar_lea.vmem [#allocation10], 1
    %v3653 = vld [vmem:[%s3652] ss:$2 sm:$0xff]
    %s3654 = scalar_lea.vmem [#allocation10], 17
    %v3655 = vld [vmem:[%s3654] ss:$2 sm:$0xff]
    %v3659 = vunpack.c.l.s4 857870592
    %v3660 = vunpack.c.0.s8 %v3659
    %v3661 = vperm.slane %v3653, %v3660
    %v3663 = vunpack.c.l.s4 2003195204
    %v3664 = vunpack.c.0.s8 %v3663
    %v3665 = vperm.slane %v3653, %v3664
    %v3667 = vunpack.c.l.s4 857870592
    %v3668 = vunpack.c.0.s8 %v3667
    %v3669 = vperm.slane %v3655, %v3668
    %v3671 = vunpack.c.l.s4 2003195204
    %v3672 = vunpack.c.0.s8 %v3671
    %v3673 = vperm.slane %v3655, %v3672
    %v3678 = vmul.f32 %v2689, %v3661
    %v3679 = vmul.f32 %v2690, %v3665
    %v3680 = vmul.f32 %v2691, %v3669
    %v3681 = vmul.f32 %v2692, %v3673
    %v3682 = vmul.f32 %v2693, %v3661
    %v3683 = vmul.f32 %v2694, %v3665
    %v3684 = vmul.f32 %v2695, %v3669
    %v3685 = vmul.f32 %v2696, %v3673
    %v3686 = vmul.f32 %v2697, %v3661
    %v3687 = vmul.f32 %v2698, %v3665
    %v3688 = vmul.f32 %v2699, %v3669
    %v3689 = vmul.f32 %v2700, %v3673
    %v3690 = vmul.f32 %v2701, %v3661
    %v3691 = vmul.f32 %v2702, %v3665
    %v3692 = vmul.f32 %v2703, %v3669
    %v3693 = vmul.f32 %v2704, %v3673
    %v3694 = vmul.f32 %v2705, %v3661
    %v3695 = vmul.f32 %v2706, %v3665
    %v3696 = vmul.f32 %v2707, %v3669
    %v3697 = vmul.f32 %v2708, %v3673
    %v3698 = vmul.f32 %v2709, %v3661
    %v3699 = vmul.f32 %v2710, %v3665
    %v3700 = vmul.f32 %v2711, %v3669
    %v3701 = vmul.f32 %v2712, %v3673
    %v3702 = vmul.f32 %v2713, %v3661
    %v3703 = vmul.f32 %v2714, %v3665
    %v3704 = vmul.f32 %v2715, %v3669
    %v3705 = vmul.f32 %v2716, %v3673
    %v3706 = vmul.f32 %v2717, %v3661
    %v3707 = vmul.f32 %v2718, %v3665
    %v3708 = vmul.f32 %v2719, %v3669
    %v3709 = vmul.f32 %v2720, %v3673
    %v3710 = vmul.f32 %v2721, %v3661
    %v3711 = vmul.f32 %v2722, %v3665
    %v3712 = vmul.f32 %v2723, %v3669
    %v3713 = vmul.f32 %v2724, %v3673
    %v3714 = vmul.f32 %v2725, %v3661
    %v3715 = vmul.f32 %v2726, %v3665
    %v3716 = vmul.f32 %v2727, %v3669
    %v3717 = vmul.f32 %v2728, %v3673
    %v3718 = vmul.f32 %v2729, %v3661
    %v3719 = vmul.f32 %v2730, %v3665
    %v3720 = vmul.f32 %v2731, %v3669
    %v3721 = vmul.f32 %v2732, %v3673
    %v3722 = vmul.f32 %v2733, %v3661
    %v3723 = vmul.f32 %v2734, %v3665
    %v3724 = vmul.f32 %v2735, %v3669
    %v3725 = vmul.f32 %v2736, %v3673
    %v3774 = vperm.slane %v3678, 0
    %v3775 = vperm.slane %v3678, 2
    %v3776 = vperm.slane %v3678, 4
    %v3777 = vperm.slane %v3678, 6
    %v3778 = vperm.slane %v3679, 0
    %v3779 = vperm.slane %v3679, 2
    %v3780 = vperm.slane %v3679, 4
    %v3781 = vperm.slane %v3679, 6
    %v3782 = vperm.slane %v3680, 0
    %v3783 = vperm.slane %v3680, 2
    %v3784 = vperm.slane %v3680, 4
    %v3785 = vperm.slane %v3680, 6
    %v3786 = vperm.slane %v3681, 0
    %v3787 = vperm.slane %v3681, 2
    %v3788 = vperm.slane %v3681, 4
    %v3789 = vperm.slane %v3681, 6
    %v3790 = vperm.slane %v3682, 0
    %v3791 = vperm.slane %v3682, 2
    %v3792 = vperm.slane %v3682, 4
    %v3793 = vperm.slane %v3682, 6
    %v3794 = vperm.slane %v3683, 0
    %v3795 = vperm.slane %v3683, 2
    %v3796 = vperm.slane %v3683, 4
    %v3797 = vperm.slane %v3683, 6
    %v3798 = vperm.slane %v3684, 0
    %v3799 = vperm.slane %v3684, 2
    %v3800 = vperm.slane %v3684, 4
    %v3801 = vperm.slane %v3684, 6
    %v3802 = vperm.slane %v3685, 0
    %v3803 = vperm.slane %v3685, 2
    %v3804 = vperm.slane %v3685, 4
    %v3805 = vperm.slane %v3685, 6
    %v3806 = vperm.slane %v3686, 0
    %v3807 = vperm.slane %v3686, 2
    %v3808 = vperm.slane %v3686, 4
    %v3809 = vperm.slane %v3686, 6
    %v3810 = vperm.slane %v3687, 0
    %v3811 = vperm.slane %v3687, 2
    %v3812 = vperm.slane %v3687, 4
    %v3813 = vperm.slane %v3687, 6
    %v3814 = vperm.slane %v3688, 0
    %v3815 = vperm.slane %v3688, 2
    %v3816 = vperm.slane %v3688, 4
    %v3817 = vperm.slane %v3688, 6
    %v3818 = vperm.slane %v3689, 0
    %v3819 = vperm.slane %v3689, 2
    %v3820 = vperm.slane %v3689, 4
    %v3821 = vperm.slane %v3689, 6
    %v3822 = vperm.slane %v3690, 0
    %v3823 = vperm.slane %v3690, 2
    %v3824 = vperm.slane %v3690, 4
    %v3825 = vperm.slane %v3690, 6
    %v3826 = vperm.slane %v3691, 0
    %v3827 = vperm.slane %v3691, 2
    %v3828 = vperm.slane %v3691, 4
    %v3829 = vperm.slane %v3691, 6
    %v3830 = vperm.slane %v3692, 0
    %v3831 = vperm.slane %v3692, 2
    %v3832 = vperm.slane %v3692, 4
    %v3833 = vperm.slane %v3692, 6
    %v3834 = vperm.slane %v3693, 0
    %v3835 = vperm.slane %v3693, 2
    %v3836 = vperm.slane %v3693, 4
    %v3837 = vperm.slane %v3693, 6
    %v3838 = vperm.slane %v3694, 0
    %v3839 = vperm.slane %v3694, 2
    %v3840 = vperm.slane %v3694, 4
    %v3841 = vperm.slane %v3694, 6
    %v3842 = vperm.slane %v3695, 0
    %v3843 = vperm.slane %v3695, 2
    %v3844 = vperm.slane %v3695, 4
    %v3845 = vperm.slane %v3695, 6
    %v3846 = vperm.slane %v3696, 0
    %v3847 = vperm.slane %v3696, 2
    %v3848 = vperm.slane %v3696, 4
    %v3849 = vperm.slane %v3696, 6
    %v3850 = vperm.slane %v3697, 0
    %v3851 = vperm.slane %v3697, 2
    %v3852 = vperm.slane %v3697, 4
    %v3853 = vperm.slane %v3697, 6
    %v3854 = vperm.slane %v3698, 0
    %v3855 = vperm.slane %v3698, 2
    %v3856 = vperm.slane %v3698, 4
    %v3857 = vperm.slane %v3698, 6
    %v3858 = vperm.slane %v3699, 0
    %v3859 = vperm.slane %v3699, 2
    %v3860 = vperm.slane %v3699, 4
    %v3861 = vperm.slane %v3699, 6
    %v3862 = vperm.slane %v3700, 0
    %v3863 = vperm.slane %v3700, 2
    %v3864 = vperm.slane %v3700, 4
    %v3865 = vperm.slane %v3700, 6
    %v3866 = vperm.slane %v3701, 0
    %v3867 = vperm.slane %v3701, 2
    %v3868 = vperm.slane %v3701, 4
    %v3869 = vperm.slane %v3701, 6
    %v3870 = vperm.slane %v3702, 0
    %v3871 = vperm.slane %v3702, 2
    %v3872 = vperm.slane %v3702, 4
    %v3873 = vperm.slane %v3702, 6
    %v3874 = vperm.slane %v3703, 0
    %v3875 = vperm.slane %v3703, 2
    %v3876 = vperm.slane %v3703, 4
    %v3877 = vperm.slane %v3703, 6
    %v3878 = vperm.slane %v3704, 0
    %v3879 = vperm.slane %v3704, 2
    %v3880 = vperm.slane %v3704, 4
    %v3881 = vperm.slane %v3704, 6
    %v3882 = vperm.slane %v3705, 0
    %v3883 = vperm.slane %v3705, 2
    %v3884 = vperm.slane %v3705, 4
    %v3885 = vperm.slane %v3705, 6
    %v3886 = vperm.slane %v3706, 0
    %v3887 = vperm.slane %v3706, 2
    %v3888 = vperm.slane %v3706, 4
    %v3889 = vperm.slane %v3706, 6
    %v3890 = vperm.slane %v3707, 0
    %v3891 = vperm.slane %v3707, 2
    %v3892 = vperm.slane %v3707, 4
    %v3893 = vperm.slane %v3707, 6
    %v3894 = vperm.slane %v3708, 0
    %v3895 = vperm.slane %v3708, 2
    %v3896 = vperm.slane %v3708, 4
    %v3897 = vperm.slane %v3708, 6
    %v3898 = vperm.slane %v3709, 0
    %v3899 = vperm.slane %v3709, 2
    %v3900 = vperm.slane %v3709, 4
    %v3901 = vperm.slane %v3709, 6
    %v3902 = vperm.slane %v3710, 0
    %v3903 = vperm.slane %v3710, 2
    %v3904 = vperm.slane %v3710, 4
    %v3905 = vperm.slane %v3710, 6
    %v3906 = vperm.slane %v3711, 0
    %v3907 = vperm.slane %v3711, 2
    %v3908 = vperm.slane %v3711, 4
    %v3909 = vperm.slane %v3711, 6
    %v3910 = vperm.slane %v3712, 0
    %v3911 = vperm.slane %v3712, 2
    %v3912 = vperm.slane %v3712, 4
    %v3913 = vperm.slane %v3712, 6
    %v3914 = vperm.slane %v3713, 0
    %v3915 = vperm.slane %v3713, 2
    %v3916 = vperm.slane %v3713, 4
    %v3917 = vperm.slane %v3713, 6
    %v3918 = vperm.slane %v3714, 0
    %v3919 = vperm.slane %v3714, 2
    %v3920 = vperm.slane %v3714, 4
    %v3921 = vperm.slane %v3714, 6
    %v3922 = vperm.slane %v3715, 0
    %v3923 = vperm.slane %v3715, 2
    %v3924 = vperm.slane %v3715, 4
    %v3925 = vperm.slane %v3715, 6
    %v3926 = vperm.slane %v3716, 0
    %v3927 = vperm.slane %v3716, 2
    %v3928 = vperm.slane %v3716, 4
    %v3929 = vperm.slane %v3716, 6
    %v3930 = vperm.slane %v3717, 0
    %v3931 = vperm.slane %v3717, 2
    %v3932 = vperm.slane %v3717, 4
    %v3933 = vperm.slane %v3717, 6
    %v3934 = vperm.slane %v3718, 0
    %v3935 = vperm.slane %v3718, 2
    %v3936 = vperm.slane %v3718, 4
    %v3937 = vperm.slane %v3718, 6
    %v3938 = vperm.slane %v3719, 0
    %v3939 = vperm.slane %v3719, 2
    %v3940 = vperm.slane %v3719, 4
    %v3941 = vperm.slane %v3719, 6
    %v3942 = vperm.slane %v3720, 0
    %v3943 = vperm.slane %v3720, 2
    %v3944 = vperm.slane %v3720, 4
    %v3945 = vperm.slane %v3720, 6
    %v3946 = vperm.slane %v3721, 0
    %v3947 = vperm.slane %v3721, 2
    %v3948 = vperm.slane %v3721, 4
    %v3949 = vperm.slane %v3721, 6
    %v3950 = vperm.slane %v3722, 0
    %v3951 = vperm.slane %v3722, 2
    %v3952 = vperm.slane %v3722, 4
    %v3953 = vperm.slane %v3722, 6
    %v3954 = vperm.slane %v3723, 0
    %v3955 = vperm.slane %v3723, 2
    %v3956 = vperm.slane %v3723, 4
    %v3957 = vperm.slane %v3723, 6
    %v3958 = vperm.slane %v3724, 0
    %v3959 = vperm.slane %v3724, 2
    %v3960 = vperm.slane %v3724, 4
    %v3961 = vperm.slane %v3724, 6
    %v3962 = vperm.slane %v3725, 0
    %v3963 = vperm.slane %v3725, 2
    %v3964 = vperm.slane %v3725, 4
    %v3965 = vperm.slane %v3725, 6
    %v4158 = vsel %vm3242, %v3774, 0.0
    %v4159 = vsel %vm3242, %v3775, 0.0
    %v4160 = vadd.f32 %v4158, %v4159
    %v4161 = vsel %vm3242, %v3776, 0.0
    %v4162 = vadd.f32 %v4160, %v4161
    %v4163 = vsel %vm3242, %v3777, 0.0
    %v4164 = vadd.f32 %v4162, %v4163
    %v4165 = vsel %vm3242, %v3778, 0.0
    %v4166 = vadd.f32 %v4164, %v4165
    %v4167 = vsel %vm3242, %v3779, 0.0
    %v4168 = vadd.f32 %v4166, %v4167
    %v4169 = vsel %vm3242, %v3780, 0.0
    %v4170 = vadd.f32 %v4168, %v4169
    %v4171 = vsel %vm3242, %v3781, 0.0
    %v4172 = vadd.f32 %v4170, %v4171
    %v4173 = vsel %vm3242, %v3782, 0.0
    %v4174 = vadd.f32 %v4172, %v4173
    %v4175 = vsel %vm3242, %v3783, 0.0
    %v4176 = vadd.f32 %v4174, %v4175
    %v4177 = vsel %vm3242, %v3784, 0.0
    %v4178 = vadd.f32 %v4176, %v4177
    %v4179 = vsel %vm3242, %v3785, 0.0
    %v4180 = vadd.f32 %v4178, %v4179
    %v4181 = vsel %vm3242, %v3786, 0.0
    %v4182 = vadd.f32 %v4180, %v4181
    %v4183 = vsel %vm3242, %v3787, 0.0
    %v4184 = vadd.f32 %v4182, %v4183
    %v4185 = vsel %vm3242, %v3788, 0.0
    %v4186 = vadd.f32 %v4184, %v4185
    %v4187 = vsel %vm3242, %v3789, 0.0
    %v4188 = vadd.f32 %v4186, %v4187
    %4189 = vadd.xlane.f32.xlu0 %v4188
    %v4190 = vpop.xlane.xlu0 %4189
    %v4191 = vsel %vm3242, %v3790, 0.0
    %v4192 = vsel %vm3242, %v3791, 0.0
    %v4193 = vadd.f32 %v4191, %v4192
    %v4194 = vsel %vm3242, %v3792, 0.0
    %v4195 = vadd.f32 %v4193, %v4194
    %v4196 = vsel %vm3242, %v3793, 0.0
    %v4197 = vadd.f32 %v4195, %v4196
    %v4198 = vsel %vm3242, %v3794, 0.0
    %v4199 = vadd.f32 %v4197, %v4198
    %v4200 = vsel %vm3242, %v3795, 0.0
    %v4201 = vadd.f32 %v4199, %v4200
    %v4202 = vsel %vm3242, %v3796, 0.0
    %v4203 = vadd.f32 %v4201, %v4202
    %v4204 = vsel %vm3242, %v3797, 0.0
    %v4205 = vadd.f32 %v4203, %v4204
    %v4206 = vsel %vm3242, %v3798, 0.0
    %v4207 = vadd.f32 %v4205, %v4206
    %v4208 = vsel %vm3242, %v3799, 0.0
    %v4209 = vadd.f32 %v4207, %v4208
    %v4210 = vsel %vm3242, %v3800, 0.0
    %v4211 = vadd.f32 %v4209, %v4210
    %v4212 = vsel %vm3242, %v3801, 0.0
    %v4213 = vadd.f32 %v4211, %v4212
    %v4214 = vsel %vm3242, %v3802, 0.0
    %v4215 = vadd.f32 %v4213, %v4214
    %v4216 = vsel %vm3242, %v3803, 0.0
    %v4217 = vadd.f32 %v4215, %v4216
    %v4218 = vsel %vm3242, %v3804, 0.0
    %v4219 = vadd.f32 %v4217, %v4218
    %v4220 = vsel %vm3242, %v3805, 0.0
    %v4221 = vadd.f32 %v4219, %v4220
    %4222 = vadd.xlane.f32.xlu0 %v4221
    %v4223 = vpop.xlane.xlu0 %4222
    %v4224 = vsel %vm3242, %v3806, 0.0
    %v4225 = vsel %vm3242, %v3807, 0.0
    %v4226 = vadd.f32 %v4224, %v4225
    %v4227 = vsel %vm3242, %v3808, 0.0
    %v4228 = vadd.f32 %v4226, %v4227
    %v4229 = vsel %vm3242, %v3809, 0.0
    %v4230 = vadd.f32 %v4228, %v4229
    %v4231 = vsel %vm3242, %v3810, 0.0
    %v4232 = vadd.f32 %v4230, %v4231
    %v4233 = vsel %vm3242, %v3811, 0.0
    %v4234 = vadd.f32 %v4232, %v4233
    %v4235 = vsel %vm3242, %v3812, 0.0
    %v4236 = vadd.f32 %v4234, %v4235
    %v4237 = vsel %vm3242, %v3813, 0.0
    %v4238 = vadd.f32 %v4236, %v4237
    %v4239 = vsel %vm3242, %v3814, 0.0
    %v4240 = vadd.f32 %v4238, %v4239
    %v4241 = vsel %vm3242, %v3815, 0.0
    %v4242 = vadd.f32 %v4240, %v4241
    %v4243 = vsel %vm3242, %v3816, 0.0
    %v4244 = vadd.f32 %v4242, %v4243
    %v4245 = vsel %vm3242, %v3817, 0.0
    %v4246 = vadd.f32 %v4244, %v4245
    %v4247 = vsel %vm3242, %v3818, 0.0
    %v4248 = vadd.f32 %v4246, %v4247
    %v4249 = vsel %vm3242, %v3819, 0.0
    %v4250 = vadd.f32 %v4248, %v4249
    %v4251 = vsel %vm3242, %v3820, 0.0
    %v4252 = vadd.f32 %v4250, %v4251
    %v4253 = vsel %vm3242, %v3821, 0.0
    %v4254 = vadd.f32 %v4252, %v4253
    %4255 = vadd.xlane.f32.xlu0 %v4254
    %v4256 = vpop.xlane.xlu0 %4255
    %v4257 = vsel %vm3242, %v3822, 0.0
    %v4258 = vsel %vm3242, %v3823, 0.0
    %v4259 = vadd.f32 %v4257, %v4258
    %v4260 = vsel %vm3242, %v3824, 0.0
    %v4261 = vadd.f32 %v4259, %v4260
    %v4262 = vsel %vm3242, %v3825, 0.0
    %v4263 = vadd.f32 %v4261, %v4262
    %v4264 = vsel %vm3242, %v3826, 0.0
    %v4265 = vadd.f32 %v4263, %v4264
    %v4266 = vsel %vm3242, %v3827, 0.0
    %v4267 = vadd.f32 %v4265, %v4266
    %v4268 = vsel %vm3242, %v3828, 0.0
    %v4269 = vadd.f32 %v4267, %v4268
    %v4270 = vsel %vm3242, %v3829, 0.0
    %v4271 = vadd.f32 %v4269, %v4270
    %v4272 = vsel %vm3242, %v3830, 0.0
    %v4273 = vadd.f32 %v4271, %v4272
    %v4274 = vsel %vm3242, %v3831, 0.0
    %v4275 = vadd.f32 %v4273, %v4274
    %v4276 = vsel %vm3242, %v3832, 0.0
    %v4277 = vadd.f32 %v4275, %v4276
    %v4278 = vsel %vm3242, %v3833, 0.0
    %v4279 = vadd.f32 %v4277, %v4278
    %v4280 = vsel %vm3242, %v3834, 0.0
    %v4281 = vadd.f32 %v4279, %v4280
    %v4282 = vsel %vm3242, %v3835, 0.0
    %v4283 = vadd.f32 %v4281, %v4282
    %v4284 = vsel %vm3242, %v3836, 0.0
    %v4285 = vadd.f32 %v4283, %v4284
    %v4286 = vsel %vm3242, %v3837, 0.0
    %v4287 = vadd.f32 %v4285, %v4286
    %4288 = vadd.xlane.f32.xlu0 %v4287
    %v4289 = vpop.xlane.xlu0 %4288
    %v4290 = vsel %vm3242, %v3838, 0.0
    %v4291 = vsel %vm3242, %v3839, 0.0
    %v4292 = vadd.f32 %v4290, %v4291
    %v4293 = vsel %vm3242, %v3840, 0.0
    %v4294 = vadd.f32 %v4292, %v4293
    %v4295 = vsel %vm3242, %v3841, 0.0
    %v4296 = vadd.f32 %v4294, %v4295
    %v4297 = vsel %vm3242, %v3842, 0.0
    %v4298 = vadd.f32 %v4296, %v4297
    %v4299 = vsel %vm3242, %v3843, 0.0
    %v4300 = vadd.f32 %v4298, %v4299
    %v4301 = vsel %vm3242, %v3844, 0.0
    %v4302 = vadd.f32 %v4300, %v4301
    %v4303 = vsel %vm3242, %v3845, 0.0
    %v4304 = vadd.f32 %v4302, %v4303
    %v4305 = vsel %vm3242, %v3846, 0.0
    %v4306 = vadd.f32 %v4304, %v4305
    %v4307 = vsel %vm3242, %v3847, 0.0
    %v4308 = vadd.f32 %v4306, %v4307
    %v4309 = vsel %vm3242, %v3848, 0.0
    %v4310 = vadd.f32 %v4308, %v4309
    %v4311 = vsel %vm3242, %v3849, 0.0
    %v4312 = vadd.f32 %v4310, %v4311
    %v4313 = vsel %vm3242, %v3850, 0.0
    %v4314 = vadd.f32 %v4312, %v4313
    %v4315 = vsel %vm3242, %v3851, 0.0
    %v4316 = vadd.f32 %v4314, %v4315
    %v4317 = vsel %vm3242, %v3852, 0.0
    %v4318 = vadd.f32 %v4316, %v4317
    %v4319 = vsel %vm3242, %v3853, 0.0
    %v4320 = vadd.f32 %v4318, %v4319
    %4321 = vadd.xlane.f32.xlu0 %v4320
    %v4322 = vpop.xlane.xlu0 %4321
    %v4323 = vsel %vm3242, %v3854, 0.0
    %v4324 = vsel %vm3242, %v3855, 0.0
    %v4325 = vadd.f32 %v4323, %v4324
    %v4326 = vsel %vm3242, %v3856, 0.0
    %v4327 = vadd.f32 %v4325, %v4326
    %v4328 = vsel %vm3242, %v3857, 0.0
    %v4329 = vadd.f32 %v4327, %v4328
    %v4330 = vsel %vm3242, %v3858, 0.0
    %v4331 = vadd.f32 %v4329, %v4330
    %v4332 = vsel %vm3242, %v3859, 0.0
    %v4333 = vadd.f32 %v4331, %v4332
    %v4334 = vsel %vm3242, %v3860, 0.0
    %v4335 = vadd.f32 %v4333, %v4334
    %v4336 = vsel %vm3242, %v3861, 0.0
    %v4337 = vadd.f32 %v4335, %v4336
    %v4338 = vsel %vm3242, %v3862, 0.0
    %v4339 = vadd.f32 %v4337, %v4338
    %v4340 = vsel %vm3242, %v3863, 0.0
    %v4341 = vadd.f32 %v4339, %v4340
    %v4342 = vsel %vm3242, %v3864, 0.0
    %v4343 = vadd.f32 %v4341, %v4342
    %v4344 = vsel %vm3242, %v3865, 0.0
    %v4345 = vadd.f32 %v4343, %v4344
    %v4346 = vsel %vm3242, %v3866, 0.0
    %v4347 = vadd.f32 %v4345, %v4346
    %v4348 = vsel %vm3242, %v3867, 0.0
    %v4349 = vadd.f32 %v4347, %v4348
    %v4350 = vsel %vm3242, %v3868, 0.0
    %v4351 = vadd.f32 %v4349, %v4350
    %v4352 = vsel %vm3242, %v3869, 0.0
    %v4353 = vadd.f32 %v4351, %v4352
    %4354 = vadd.xlane.f32.xlu0 %v4353
    %v4355 = vpop.xlane.xlu0 %4354
    %v4356 = vsel %vm3242, %v3870, 0.0
    %v4357 = vsel %vm3242, %v3871, 0.0
    %v4358 = vadd.f32 %v4356, %v4357
    %v4359 = vsel %vm3242, %v3872, 0.0
    %v4360 = vadd.f32 %v4358, %v4359
    %v4361 = vsel %vm3242, %v3873, 0.0
    %v4362 = vadd.f32 %v4360, %v4361
    %v4363 = vsel %vm3242, %v3874, 0.0
    %v4364 = vadd.f32 %v4362, %v4363
    %v4365 = vsel %vm3242, %v3875, 0.0
    %v4366 = vadd.f32 %v4364, %v4365
    %v4367 = vsel %vm3242, %v3876, 0.0
    %v4368 = vadd.f32 %v4366, %v4367
    %v4369 = vsel %vm3242, %v3877, 0.0
    %v4370 = vadd.f32 %v4368, %v4369
    %v4371 = vsel %vm3242, %v3878, 0.0
    %v4372 = vadd.f32 %v4370, %v4371
    %v4373 = vsel %vm3242, %v3879, 0.0
    %v4374 = vadd.f32 %v4372, %v4373
    %v4375 = vsel %vm3242, %v3880, 0.0
    %v4376 = vadd.f32 %v4374, %v4375
    %v4377 = vsel %vm3242, %v3881, 0.0
    %v4378 = vadd.f32 %v4376, %v4377
    %v4379 = vsel %vm3242, %v3882, 0.0
    %v4380 = vadd.f32 %v4378, %v4379
    %v4381 = vsel %vm3242, %v3883, 0.0
    %v4382 = vadd.f32 %v4380, %v4381
    %v4383 = vsel %vm3242, %v3884, 0.0
    %v4384 = vadd.f32 %v4382, %v4383
    %v4385 = vsel %vm3242, %v3885, 0.0
    %v4386 = vadd.f32 %v4384, %v4385
    %4387 = vadd.xlane.f32.xlu0 %v4386
    %v4388 = vpop.xlane.xlu0 %4387
    %v4389 = vsel %vm3242, %v3886, 0.0
    %v4390 = vsel %vm3242, %v3887, 0.0
    %v4391 = vadd.f32 %v4389, %v4390
    %v4392 = vsel %vm3242, %v3888, 0.0
    %v4393 = vadd.f32 %v4391, %v4392
    %v4394 = vsel %vm3242, %v3889, 0.0
    %v4395 = vadd.f32 %v4393, %v4394
    %v4396 = vsel %vm3242, %v3890, 0.0
    %v4397 = vadd.f32 %v4395, %v4396
    %v4398 = vsel %vm3242, %v3891, 0.0
    %v4399 = vadd.f32 %v4397, %v4398
    %v4400 = vsel %vm3242, %v3892, 0.0
    %v4401 = vadd.f32 %v4399, %v4400
    %v4402 = vsel %vm3242, %v3893, 0.0
    %v4403 = vadd.f32 %v4401, %v4402
    %v4404 = vsel %vm3242, %v3894, 0.0
    %v4405 = vadd.f32 %v4403, %v4404
    %v4406 = vsel %vm3242, %v3895, 0.0
    %v4407 = vadd.f32 %v4405, %v4406
    %v4408 = vsel %vm3242, %v3896, 0.0
    %v4409 = vadd.f32 %v4407, %v4408
    %v4410 = vsel %vm3242, %v3897, 0.0
    %v4411 = vadd.f32 %v4409, %v4410
    %v4412 = vsel %vm3242, %v3898, 0.0
    %v4413 = vadd.f32 %v4411, %v4412
    %v4414 = vsel %vm3242, %v3899, 0.0
    %v4415 = vadd.f32 %v4413, %v4414
    %v4416 = vsel %vm3242, %v3900, 0.0
    %v4417 = vadd.f32 %v4415, %v4416
    %v4418 = vsel %vm3242, %v3901, 0.0
    %v4419 = vadd.f32 %v4417, %v4418
    %4420 = vadd.xlane.f32.xlu0 %v4419
    %v4421 = vpop.xlane.xlu0 %4420
    %v4422 = vsel %vm3242, %v3902, 0.0
    %v4423 = vsel %vm3242, %v3903, 0.0
    %v4424 = vadd.f32 %v4422, %v4423
    %v4425 = vsel %vm3242, %v3904, 0.0
    %v4426 = vadd.f32 %v4424, %v4425
    %v4427 = vsel %vm3242, %v3905, 0.0
    %v4428 = vadd.f32 %v4426, %v4427
    %v4429 = vsel %vm3242, %v3906, 0.0
    %v4430 = vadd.f32 %v4428, %v4429
    %v4431 = vsel %vm3242, %v3907, 0.0
    %v4432 = vadd.f32 %v4430, %v4431
    %v4433 = vsel %vm3242, %v3908, 0.0
    %v4434 = vadd.f32 %v4432, %v4433
    %v4435 = vsel %vm3242, %v3909, 0.0
    %v4436 = vadd.f32 %v4434, %v4435
    %v4437 = vsel %vm3242, %v3910, 0.0
    %v4438 = vadd.f32 %v4436, %v4437
    %v4439 = vsel %vm3242, %v3911, 0.0
    %v4440 = vadd.f32 %v4438, %v4439
    %v4441 = vsel %vm3242, %v3912, 0.0
    %v4442 = vadd.f32 %v4440, %v4441
    %v4443 = vsel %vm3242, %v3913, 0.0
    %v4444 = vadd.f32 %v4442, %v4443
    %v4445 = vsel %vm3242, %v3914, 0.0
    %v4446 = vadd.f32 %v4444, %v4445
    %v4447 = vsel %vm3242, %v3915, 0.0
    %v4448 = vadd.f32 %v4446, %v4447
    %v4449 = vsel %vm3242, %v3916, 0.0
    %v4450 = vadd.f32 %v4448, %v4449
    %v4451 = vsel %vm3242, %v3917, 0.0
    %v4452 = vadd.f32 %v4450, %v4451
    %4453 = vadd.xlane.f32.xlu0 %v4452
    %v4454 = vpop.xlane.xlu0 %4453
    %v4455 = vsel %vm3242, %v3918, 0.0
    %v4456 = vsel %vm3242, %v3919, 0.0
    %v4457 = vadd.f32 %v4455, %v4456
    %v4458 = vsel %vm3242, %v3920, 0.0
    %v4459 = vadd.f32 %v4457, %v4458
    %v4460 = vsel %vm3242, %v3921, 0.0
    %v4461 = vadd.f32 %v4459, %v4460
    %v4462 = vsel %vm3242, %v3922, 0.0
    %v4463 = vadd.f32 %v4461, %v4462
    %v4464 = vsel %vm3242, %v3923, 0.0
    %v4465 = vadd.f32 %v4463, %v4464
    %v4466 = vsel %vm3242, %v3924, 0.0
    %v4467 = vadd.f32 %v4465, %v4466
    %v4468 = vsel %vm3242, %v3925, 0.0
    %v4469 = vadd.f32 %v4467, %v4468
    %v4470 = vsel %vm3242, %v3926, 0.0
    %v4471 = vadd.f32 %v4469, %v4470
    %v4472 = vsel %vm3242, %v3927, 0.0
    %v4473 = vadd.f32 %v4471, %v4472
    %v4474 = vsel %vm3242, %v3928, 0.0
    %v4475 = vadd.f32 %v4473, %v4474
    %v4476 = vsel %vm3242, %v3929, 0.0
    %v4477 = vadd.f32 %v4475, %v4476
    %v4478 = vsel %vm3242, %v3930, 0.0
    %v4479 = vadd.f32 %v4477, %v4478
    %v4480 = vsel %vm3242, %v3931, 0.0
    %v4481 = vadd.f32 %v4479, %v4480
    %v4482 = vsel %vm3242, %v3932, 0.0
    %v4483 = vadd.f32 %v4481, %v4482
    %v4484 = vsel %vm3242, %v3933, 0.0
    %v4485 = vadd.f32 %v4483, %v4484
    %4486 = vadd.xlane.f32.xlu0 %v4485
    %v4487 = vpop.xlane.xlu0 %4486
    %v4488 = vsel %vm3242, %v3934, 0.0
    %v4489 = vsel %vm3242, %v3935, 0.0
    %v4490 = vadd.f32 %v4488, %v4489
    %v4491 = vsel %vm3242, %v3936, 0.0
    %v4492 = vadd.f32 %v4490, %v4491
    %v4493 = vsel %vm3242, %v3937, 0.0
    %v4494 = vadd.f32 %v4492, %v4493
    %v4495 = vsel %vm3242, %v3938, 0.0
    %v4496 = vadd.f32 %v4494, %v4495
    %v4497 = vsel %vm3242, %v3939, 0.0
    %v4498 = vadd.f32 %v4496, %v4497
    %v4499 = vsel %vm3242, %v3940, 0.0
    %v4500 = vadd.f32 %v4498, %v4499
    %v4501 = vsel %vm3242, %v3941, 0.0
    %v4502 = vadd.f32 %v4500, %v4501
    %v4503 = vsel %vm3242, %v3942, 0.0
    %v4504 = vadd.f32 %v4502, %v4503
    %v4505 = vsel %vm3242, %v3943, 0.0
    %v4506 = vadd.f32 %v4504, %v4505
    %v4507 = vsel %vm3242, %v3944, 0.0
    %v4508 = vadd.f32 %v4506, %v4507
    %v4509 = vsel %vm3242, %v3945, 0.0
    %v4510 = vadd.f32 %v4508, %v4509
    %v4511 = vsel %vm3242, %v3946, 0.0
    %v4512 = vadd.f32 %v4510, %v4511
    %v4513 = vsel %vm3242, %v3947, 0.0
    %v4514 = vadd.f32 %v4512, %v4513
    %v4515 = vsel %vm3242, %v3948, 0.0
    %v4516 = vadd.f32 %v4514, %v4515
    %v4517 = vsel %vm3242, %v3949, 0.0
    %v4518 = vadd.f32 %v4516, %v4517
    %4519 = vadd.xlane.f32.xlu0 %v4518
    %v4520 = vpop.xlane.xlu0 %4519
    %v4521 = vsel %vm3242, %v3950, 0.0
    %v4522 = vsel %vm3242, %v3951, 0.0
    %v4523 = vadd.f32 %v4521, %v4522
    %v4524 = vsel %vm3242, %v3952, 0.0
    %v4525 = vadd.f32 %v4523, %v4524
    %v4526 = vsel %vm3242, %v3953, 0.0
    %v4527 = vadd.f32 %v4525, %v4526
    %v4528 = vsel %vm3242, %v3954, 0.0
    %v4529 = vadd.f32 %v4527, %v4528
    %v4530 = vsel %vm3242, %v3955, 0.0
    %v4531 = vadd.f32 %v4529, %v4530
    %v4532 = vsel %vm3242, %v3956, 0.0
    %v4533 = vadd.f32 %v4531, %v4532
    %v4534 = vsel %vm3242, %v3957, 0.0
    %v4535 = vadd.f32 %v4533, %v4534
    %v4536 = vsel %vm3242, %v3958, 0.0
    %v4537 = vadd.f32 %v4535, %v4536
    %v4538 = vsel %vm3242, %v3959, 0.0
    %v4539 = vadd.f32 %v4537, %v4538
    %v4540 = vsel %vm3242, %v3960, 0.0
    %v4541 = vadd.f32 %v4539, %v4540
    %v4542 = vsel %vm3242, %v3961, 0.0
    %v4543 = vadd.f32 %v4541, %v4542
    %v4544 = vsel %vm3242, %v3962, 0.0
    %v4545 = vadd.f32 %v4543, %v4544
    %v4546 = vsel %vm3242, %v3963, 0.0
    %v4547 = vadd.f32 %v4545, %v4546
    %v4548 = vsel %vm3242, %v3964, 0.0
    %v4549 = vadd.f32 %v4547, %v4548
    %v4550 = vsel %vm3242, %v3965, 0.0
    %v4551 = vadd.f32 %v4549, %v4550
    %4552 = vadd.xlane.f32.xlu0 %v4551
    %v4553 = vpop.xlane.xlu0 %4552
    %v4555 = vperm.slane %v3639, 0
    %4556 = vrot.lane.b32.xlu0 %v4555, 127
    %v4557 = vpop.permute.xlu0 %4556
    %v4559 = vadd.f32 %v4190, %v4557
    %v4560 = vadd.f32 %v4223, %v4557
    %v4561 = vadd.f32 %v4256, %v4557
    %v4562 = vadd.f32 %v4289, %v4557
    %v4563 = vadd.f32 %v4322, %v4557
    %v4564 = vadd.f32 %v4355, %v4557
    %v4565 = vadd.f32 %v4388, %v4557
    %v4566 = vadd.f32 %v4421, %v4557
    %v4567 = vadd.f32 %v4454, %v4557
    %v4568 = vadd.f32 %v4487, %v4557
    %v4569 = vadd.f32 %v4520, %v4557
    %v4570 = vadd.f32 %v4553, %v4557
    %v4571 = vadd.f32 %v2037, %v3640
    %v4572 = vadd.f32 %v2038, %v3641
    %v4573 = vadd.f32 %v2039, %v3642
    %v4574 = vadd.f32 %v2040, %v3643
    %v4575 = vadd.f32 %v2041, %v3644
    %v4576 = vadd.f32 %v2042, %v3645
    %v4577 = vadd.f32 %v2043, %v3646
    %v4578 = vadd.f32 %v2044, %v3647
    %v4579 = vadd.f32 %v2045, %v3648
    %v4580 = vadd.f32 %v2046, %v3649
    %v4581 = vadd.f32 %v2047, %v3650
    %v4582 = vadd.f32 %v2048, %v3651
    %4595 = vrot.lane.b32.xlu0 %v4559, 1
    %v4596 = vpop.permute.xlu0 %4595
    %4597 = vrot.lane.b32.xlu0 %v4560, 1
    %v4598 = vpop.permute.xlu0 %4597
    %4599 = vrot.lane.b32.xlu0 %v4561, 1
    %v4600 = vpop.permute.xlu0 %4599
    %4601 = vrot.lane.b32.xlu0 %v4562, 1
    %v4602 = vpop.permute.xlu0 %4601
    %4603 = vrot.lane.b32.xlu0 %v4563, 1
    %v4604 = vpop.permute.xlu0 %4603
    %4605 = vrot.lane.b32.xlu0 %v4564, 1
    %v4606 = vpop.permute.xlu0 %4605
    %4607 = vrot.lane.b32.xlu0 %v4565, 1
    %v4608 = vpop.permute.xlu0 %4607
    %4609 = vrot.lane.b32.xlu0 %v4566, 1
    %v4610 = vpop.permute.xlu0 %4609
    %4611 = vrot.lane.b32.xlu0 %v4567, 1
    %v4612 = vpop.permute.xlu0 %4611
    %4613 = vrot.lane.b32.xlu0 %v4568, 1
    %v4614 = vpop.permute.xlu0 %4613
    %4615 = vrot.lane.b32.xlu0 %v4569, 1
    %v4616 = vpop.permute.xlu0 %4615
    %4617 = vrot.lane.b32.xlu0 %v4570, 1
    %v4618 = vpop.permute.xlu0 %4617
    %v4631 = vadd.f32 %v2121, %v4596
    %v4632 = vadd.f32 %v2122, %v4598
    %v4633 = vadd.f32 %v2123, %v4600
    %v4634 = vadd.f32 %v2124, %v4602
    %v4635 = vadd.f32 %v2125, %v4604
    %v4636 = vadd.f32 %v2126, %v4606
    %v4637 = vadd.f32 %v2127, %v4608
    %v4638 = vadd.f32 %v2128, %v4610
    %v4639 = vadd.f32 %v2129, %v4612
    %v4640 = vadd.f32 %v2130, %v4614
    %v4641 = vadd.f32 %v2131, %v4616
    %v4642 = vadd.f32 %v2132, %v4618
    %v4643 = vld [vmem:[%s17] sm:$0x1]
    %v4644 = vld [vmem:[%s18] sm:$0x1]
    %4657 = vrot.lane.b32.xlu0 %v4631, 127
    %v4658 = vpop.permute.xlu0 %4657
    %4659 = vrot.lane.b32.xlu0 %v4632, 127
    %v4660 = vpop.permute.xlu0 %4659
    %4661 = vrot.lane.b32.xlu0 %v4633, 127
    %v4662 = vpop.permute.xlu0 %4661
    %4663 = vrot.lane.b32.xlu0 %v4634, 127
    %v4664 = vpop.permute.xlu0 %4663
    %4665 = vrot.lane.b32.xlu0 %v4635, 127
    %v4666 = vpop.permute.xlu0 %4665
    %4667 = vrot.lane.b32.xlu0 %v4636, 127
    %v4668 = vpop.permute.xlu0 %4667
    %4669 = vrot.lane.b32.xlu0 %v4637, 127
    %v4670 = vpop.permute.xlu0 %4669
    %4671 = vrot.lane.b32.xlu0 %v4638, 127
    %v4672 = vpop.permute.xlu0 %4671
    %4673 = vrot.lane.b32.xlu0 %v4639, 127
    %v4674 = vpop.permute.xlu0 %4673
    %4675 = vrot.lane.b32.xlu0 %v4640, 127
    %v4676 = vpop.permute.xlu0 %4675
    %4677 = vrot.lane.b32.xlu0 %v4641, 127
    %v4678 = vpop.permute.xlu0 %4677
    %4679 = vrot.lane.b32.xlu0 %v4642, 127
    %v4680 = vpop.permute.xlu0 %4679
    %v4693 = vadd.f32 %v4571, %v4658
    %v4694 = vadd.f32 %v4572, %v4660
    %v4695 = vadd.f32 %v4573, %v4662
    %v4696 = vadd.f32 %v4574, %v4664
    %v4697 = vadd.f32 %v4575, %v4666
    %v4698 = vadd.f32 %v4576, %v4668
    %v4699 = vadd.f32 %v4577, %v4670
    %v4700 = vadd.f32 %v4578, %v4672
    %v4701 = vadd.f32 %v4579, %v4674
    %v4702 = vadd.f32 %v4580, %v4676
    %v4703 = vadd.f32 %v4581, %v4678
    %v4704 = vadd.f32 %v4582, %v4680
    %v4705 = vmul.f32 %v4693, 0.5
    %v4706 = vmul.f32 %v4694, 0.5
    %v4707 = vmul.f32 %v4695, 0.5
    %v4708 = vmul.f32 %v4696, 0.5
    %v4709 = vmul.f32 %v4697, 0.5
    %v4710 = vmul.f32 %v4698, 0.5
    %v4711 = vmul.f32 %v4699, 0.5
    %v4712 = vmul.f32 %v4700, 0.5
    %v4713 = vmul.f32 %v4701, 0.5
    %v4714 = vmul.f32 %v4702, 0.5
    %v4715 = vmul.f32 %v4703, 0.5
    %v4716 = vmul.f32 %v4704, 0.5
    %v4717 = vsub.f32 %v4571, %v4705
    %v4718 = vsub.f32 %v4572, %v4706
    %v4719 = vsub.f32 %v4573, %v4707
    %v4720 = vsub.f32 %v4574, %v4708
    %v4721 = vsub.f32 %v4575, %v4709
    %v4722 = vsub.f32 %v4576, %v4710
    %v4723 = vsub.f32 %v4577, %v4711
    %v4724 = vsub.f32 %v4578, %v4712
    %v4725 = vsub.f32 %v4579, %v4713
    %v4726 = vsub.f32 %v4580, %v4714
    %v4727 = vsub.f32 %v4581, %v4715
    %v4728 = vsub.f32 %v4582, %v4716
    %4741 = vrot.lane.b32.xlu0 %v4705, 1
    %v4742 = vpop.permute.xlu0 %4741
    %4743 = vrot.lane.b32.xlu0 %v4706, 1
    %v4744 = vpop.permute.xlu0 %4743
    %4745 = vrot.lane.b32.xlu0 %v4707, 1
    %v4746 = vpop.permute.xlu0 %4745
    %4747 = vrot.lane.b32.xlu0 %v4708, 1
    %v4748 = vpop.permute.xlu0 %4747
    %4749 = vrot.lane.b32.xlu0 %v4709, 1
    %v4750 = vpop.permute.xlu0 %4749
    %4751 = vrot.lane.b32.xlu0 %v4710, 1
    %v4752 = vpop.permute.xlu0 %4751
    %4753 = vrot.lane.b32.xlu0 %v4711, 1
    %v4754 = vpop.permute.xlu0 %4753
    %4755 = vrot.lane.b32.xlu0 %v4712, 1
    %v4756 = vpop.permute.xlu0 %4755
    %4757 = vrot.lane.b32.xlu0 %v4713, 1
    %v4758 = vpop.permute.xlu0 %4757
    %4759 = vrot.lane.b32.xlu0 %v4714, 1
    %v4760 = vpop.permute.xlu0 %4759
    %4761 = vrot.lane.b32.xlu0 %v4715, 1
    %v4762 = vpop.permute.xlu0 %4761
    %4763 = vrot.lane.b32.xlu0 %v4716, 1
    %v4764 = vpop.permute.xlu0 %4763
    %v4777 = vsub.f32 %v4631, %v4742
    %v4778 = vsub.f32 %v4632, %v4744
    %v4779 = vsub.f32 %v4633, %v4746
    %v4780 = vsub.f32 %v4634, %v4748
    %v4781 = vsub.f32 %v4635, %v4750
    %v4782 = vsub.f32 %v4636, %v4752
    %v4783 = vsub.f32 %v4637, %v4754
    %v4784 = vsub.f32 %v4638, %v4756
    %v4785 = vsub.f32 %v4639, %v4758
    %v4786 = vsub.f32 %v4640, %v4760
    %v4787 = vsub.f32 %v4641, %v4762
    %v4788 = vsub.f32 %v4642, %v4764
    %v4789 = vmul.f32 %v4717, %v4717
    %v4790 = vmul.f32 %v4718, %v4718
    %v4791 = vmul.f32 %v4719, %v4719
    %v4792 = vmul.f32 %v4720, %v4720
    %v4793 = vmul.f32 %v4721, %v4721
    %v4794 = vmul.f32 %v4722, %v4722
    %v4795 = vmul.f32 %v4723, %v4723
    %v4796 = vmul.f32 %v4724, %v4724
    %v4797 = vmul.f32 %v4725, %v4725
    %v4798 = vmul.f32 %v4726, %v4726
    %v4799 = vmul.f32 %v4727, %v4727
    %v4800 = vmul.f32 %v4728, %v4728
    %v4801 = vmul.f32 %v4777, %v4777
    %v4802 = vmul.f32 %v4778, %v4778
    %v4803 = vmul.f32 %v4779, %v4779
    %v4804 = vmul.f32 %v4780, %v4780
    %v4805 = vmul.f32 %v4781, %v4781
    %v4806 = vmul.f32 %v4782, %v4782
    %v4807 = vmul.f32 %v4783, %v4783
    %v4808 = vmul.f32 %v4784, %v4784
    %v4809 = vmul.f32 %v4785, %v4785
    %v4810 = vmul.f32 %v4786, %v4786
    %v4811 = vmul.f32 %v4787, %v4787
    %v4812 = vmul.f32 %v4788, %v4788
    %4825 = vrot.lane.b32.xlu0 %v4801, 127
    %v4826 = vpop.permute.xlu0 %4825
    %4827 = vrot.lane.b32.xlu0 %v4802, 127
    %v4828 = vpop.permute.xlu0 %4827
    %4829 = vrot.lane.b32.xlu0 %v4803, 127
    %v4830 = vpop.permute.xlu0 %4829
    %4831 = vrot.lane.b32.xlu0 %v4804, 127
    %v4832 = vpop.permute.xlu0 %4831
    %4833 = vrot.lane.b32.xlu0 %v4805, 127
    %v4834 = vpop.permute.xlu0 %4833
    %4835 = vrot.lane.b32.xlu0 %v4806, 127
    %v4836 = vpop.permute.xlu0 %4835
    %4837 = vrot.lane.b32.xlu0 %v4807, 127
    %v4838 = vpop.permute.xlu0 %4837
    %4839 = vrot.lane.b32.xlu0 %v4808, 127
    %v4840 = vpop.permute.xlu0 %4839
    %4841 = vrot.lane.b32.xlu0 %v4809, 127
    %v4842 = vpop.permute.xlu0 %4841
    %4843 = vrot.lane.b32.xlu0 %v4810, 127
    %v4844 = vpop.permute.xlu0 %4843
    %4845 = vrot.lane.b32.xlu0 %v4811, 127
    %v4846 = vpop.permute.xlu0 %4845
    %4847 = vrot.lane.b32.xlu0 %v4812, 127
    %v4848 = vpop.permute.xlu0 %4847
    %v4861 = vadd.f32 %v4789, %v4826
    %v4862 = vadd.f32 %v4790, %v4828
    %v4863 = vadd.f32 %v4791, %v4830
    %v4864 = vadd.f32 %v4792, %v4832
    %v4865 = vadd.f32 %v4793, %v4834
    %v4866 = vadd.f32 %v4794, %v4836
    %v4867 = vadd.f32 %v4795, %v4838
    %v4868 = vadd.f32 %v4796, %v4840
    %v4869 = vadd.f32 %v4797, %v4842
    %v4870 = vadd.f32 %v4798, %v4844
    %v4871 = vadd.f32 %v4799, %v4846
    %v4872 = vadd.f32 %v4800, %v4848
    %v4873 = vmul.f32 %v4861, 0.5
    %v4874 = vmul.f32 %v4862, 0.5
    %v4875 = vmul.f32 %v4863, 0.5
    %v4876 = vmul.f32 %v4864, 0.5
    %v4877 = vmul.f32 %v4865, 0.5
    %v4878 = vmul.f32 %v4866, 0.5
    %v4879 = vmul.f32 %v4867, 0.5
    %v4880 = vmul.f32 %v4868, 0.5
    %v4881 = vmul.f32 %v4869, 0.5
    %v4882 = vmul.f32 %v4870, 0.5
    %v4883 = vmul.f32 %v4871, 0.5
    %v4884 = vmul.f32 %v4872, 0.5
    %v4885 = vadd.f32 %v4873, 1e-05
    %v4886 = vadd.f32 %v4874, 1e-05
    %v4887 = vadd.f32 %v4875, 1e-05
    %v4888 = vadd.f32 %v4876, 1e-05
    %v4889 = vadd.f32 %v4877, 1e-05
    %v4890 = vadd.f32 %v4878, 1e-05
    %v4891 = vadd.f32 %v4879, 1e-05
    %v4892 = vadd.f32 %v4880, 1e-05
    %v4893 = vadd.f32 %v4881, 1e-05
    %v4894 = vadd.f32 %v4882, 1e-05
    %v4895 = vadd.f32 %v4883, 1e-05
    %v4896 = vadd.f32 %v4884, 1e-05
    %v4897 = vrsqrt.pop %v4885
    %v4898 = vmul.f32 %v4897, %v4885
    %v4899 = vmul.f32 %v4898, %v4897
    %v4900 = vmul.f32 0.5, %v4899
    %v4901 = vsub.f32 1.5, %v4900
    %v4902 = vmul.f32 %v4897, %v4901
    %vm4903 = vweird.f32 %v4885
    %vm4904 = vweird.f32 %v4897
    %vm4905 = vmor %vm4903, %vm4904
    %v4906 = vsel %vm4905, %v4897, %v4902
    %v4907 = vrsqrt.pop %v4886
    %v4908 = vmul.f32 %v4907, %v4886
    %v4909 = vmul.f32 %v4908, %v4907
    %v4910 = vmul.f32 0.5, %v4909
    %v4911 = vsub.f32 1.5, %v4910
    %v4912 = vmul.f32 %v4907, %v4911
    %vm4913 = vweird.f32 %v4886
    %vm4914 = vweird.f32 %v4907
    %vm4915 = vmor %vm4913, %vm4914
    %v4916 = vsel %vm4915, %v4907, %v4912
    %v4917 = vrsqrt.pop %v4887
    %v4918 = vmul.f32 %v4917, %v4887
    %v4919 = vmul.f32 %v4918, %v4917
    %v4920 = vmul.f32 0.5, %v4919
    %v4921 = vsub.f32 1.5, %v4920
    %v4922 = vmul.f32 %v4917, %v4921
    %vm4923 = vweird.f32 %v4887
    %vm4924 = vweird.f32 %v4917
    %vm4925 = vmor %vm4923, %vm4924
    %v4926 = vsel %vm4925, %v4917, %v4922
    %v4927 = vrsqrt.pop %v4888
    %v4928 = vmul.f32 %v4927, %v4888
    %v4929 = vmul.f32 %v4928, %v4927
    %v4930 = vmul.f32 0.5, %v4929
    %v4931 = vsub.f32 1.5, %v4930
    %v4932 = vmul.f32 %v4927, %v4931
    %vm4933 = vweird.f32 %v4888
    %vm4934 = vweird.f32 %v4927
    %vm4935 = vmor %vm4933, %vm4934
    %v4936 = vsel %vm4935, %v4927, %v4932
    %v4937 = vrsqrt.pop %v4889
    %v4938 = vmul.f32 %v4937, %v4889
    %v4939 = vmul.f32 %v4938, %v4937
    %v4940 = vmul.f32 0.5, %v4939
    %v4941 = vsub.f32 1.5, %v4940
    %v4942 = vmul.f32 %v4937, %v4941
    %vm4943 = vweird.f32 %v4889
    %vm4944 = vweird.f32 %v4937
    %vm4945 = vmor %vm4943, %vm4944
    %v4946 = vsel %vm4945, %v4937, %v4942
    %v4947 = vrsqrt.pop %v4890
    %v4948 = vmul.f32 %v4947, %v4890
    %v4949 = vmul.f32 %v4948, %v4947
    %v4950 = vmul.f32 0.5, %v4949
    %v4951 = vsub.f32 1.5, %v4950
    %v4952 = vmul.f32 %v4947, %v4951
    %vm4953 = vweird.f32 %v4890
    %vm4954 = vweird.f32 %v4947
    %vm4955 = vmor %vm4953, %vm4954
    %v4956 = vsel %vm4955, %v4947, %v4952
    %v4957 = vrsqrt.pop %v4891
    %v4958 = vmul.f32 %v4957, %v4891
    %v4959 = vmul.f32 %v4958, %v4957
    %v4960 = vmul.f32 0.5, %v4959
    %v4961 = vsub.f32 1.5, %v4960
    %v4962 = vmul.f32 %v4957, %v4961
    %vm4963 = vweird.f32 %v4891
    %vm4964 = vweird.f32 %v4957
    %vm4965 = vmor %vm4963, %vm4964
    %v4966 = vsel %vm4965, %v4957, %v4962
    %v4967 = vrsqrt.pop %v4892
    %v4968 = vmul.f32 %v4967, %v4892
    %v4969 = vmul.f32 %v4968, %v4967
    %v4970 = vmul.f32 0.5, %v4969
    %v4971 = vsub.f32 1.5, %v4970
    %v4972 = vmul.f32 %v4967, %v4971
    %vm4973 = vweird.f32 %v4892
    %vm4974 = vweird.f32 %v4967
    %vm4975 = vmor %vm4973, %vm4974
    %v4976 = vsel %vm4975, %v4967, %v4972
    %v4977 = vrsqrt.pop %v4893
    %v4978 = vmul.f32 %v4977, %v4893
    %v4979 = vmul.f32 %v4978, %v4977
    %v4980 = vmul.f32 0.5, %v4979
    %v4981 = vsub.f32 1.5, %v4980
    %v4982 = vmul.f32 %v4977, %v4981
    %vm4983 = vweird.f32 %v4893
    %vm4984 = vweird.f32 %v4977
    %vm4985 = vmor %vm4983, %vm4984
    %v4986 = vsel %vm4985, %v4977, %v4982
    %v4987 = vrsqrt.pop %v4894
    %v4988 = vmul.f32 %v4987, %v4894
    %v4989 = vmul.f32 %v4988, %v4987
    %v4990 = vmul.f32 0.5, %v4989
    %v4991 = vsub.f32 1.5, %v4990
    %v4992 = vmul.f32 %v4987, %v4991
    %vm4993 = vweird.f32 %v4894
    %vm4994 = vweird.f32 %v4987
    %vm4995 = vmor %vm4993, %vm4994
    %v4996 = vsel %vm4995, %v4987, %v4992
    %v4997 = vrsqrt.pop %v4895
    %v4998 = vmul.f32 %v4997, %v4895
    %v4999 = vmul.f32 %v4998, %v4997
    %v5000 = vmul.f32 0.5, %v4999
    %v5001 = vsub.f32 1.5, %v5000
    %v5002 = vmul.f32 %v4997, %v5001
    %vm5003 = vweird.f32 %v4895
    %vm5004 = vweird.f32 %v4997
    %vm5005 = vmor %vm5003, %vm5004
    %v5006 = vsel %vm5005, %v4997, %v5002
    %v5007 = vrsqrt.pop %v4896
    %v5008 = vmul.f32 %v5007, %v4896
    %v5009 = vmul.f32 %v5008, %v5007
    %v5010 = vmul.f32 0.5, %v5009
    %v5011 = vsub.f32 1.5, %v5010
    %v5012 = vmul.f32 %v5007, %v5011
    %vm5013 = vweird.f32 %v4896
    %vm5014 = vweird.f32 %v5007
    %vm5015 = vmor %vm5013, %vm5014
    %v5016 = vsel %vm5015, %v5007, %v5012
    %v5017 = vmul.f32 %v4717, %v4906
    %v5018 = vmul.f32 %v4718, %v4916
    %v5019 = vmul.f32 %v4719, %v4926
    %v5020 = vmul.f32 %v4720, %v4936
    %v5021 = vmul.f32 %v4721, %v4946
    %v5022 = vmul.f32 %v4722, %v4956
    %v5023 = vmul.f32 %v4723, %v4966
    %v5024 = vmul.f32 %v4724, %v4976
    %v5025 = vmul.f32 %v4725, %v4986
    %v5026 = vmul.f32 %v4726, %v4996
    %v5027 = vmul.f32 %v4727, %v5006
    %v5028 = vmul.f32 %v4728, %v5016
    %v5029 = vmul.f32 %v5017, %v4643
    %v5030 = vmul.f32 %v5018, %v4643
    %v5031 = vmul.f32 %v5019, %v4643
    %v5032 = vmul.f32 %v5020, %v4643
    %v5033 = vmul.f32 %v5021, %v4643
    %v5034 = vmul.f32 %v5022, %v4643
    %v5035 = vmul.f32 %v5023, %v4643
    %v5036 = vmul.f32 %v5024, %v4643
    %v5037 = vmul.f32 %v5025, %v4643
    %v5038 = vmul.f32 %v5026, %v4643
    %v5039 = vmul.f32 %v5027, %v4643
    %v5040 = vmul.f32 %v5028, %v4643
    %v5041 = vadd.f32 %v5029, %v4644
    %v5042 = vadd.f32 %v5030, %v4644
    %v5043 = vadd.f32 %v5031, %v4644
    %v5044 = vadd.f32 %v5032, %v4644
    %v5045 = vadd.f32 %v5033, %v4644
    %v5046 = vadd.f32 %v5034, %v4644
    %v5047 = vadd.f32 %v5035, %v4644
    %v5048 = vadd.f32 %v5036, %v4644
    %v5049 = vadd.f32 %v5037, %v4644
    %v5050 = vadd.f32 %v5038, %v4644
    %v5051 = vadd.f32 %v5039, %v4644
    %v5052 = vadd.f32 %v5040, %v4644
    %5065 = vrot.lane.b32.xlu0 %v4906, 1
    %v5066 = vpop.permute.xlu0 %5065
    %5067 = vrot.lane.b32.xlu0 %v4916, 1
    %v5068 = vpop.permute.xlu0 %5067
    %5069 = vrot.lane.b32.xlu0 %v4926, 1
    %v5070 = vpop.permute.xlu0 %5069
    %5071 = vrot.lane.b32.xlu0 %v4936, 1
    %v5072 = vpop.permute.xlu0 %5071
    %5073 = vrot.lane.b32.xlu0 %v4946, 1
    %v5074 = vpop.permute.xlu0 %5073
    %5075 = vrot.lane.b32.xlu0 %v4956, 1
    %v5076 = vpop.permute.xlu0 %5075
    %5077 = vrot.lane.b32.xlu0 %v4966, 1
    %v5078 = vpop.permute.xlu0 %5077
    %5079 = vrot.lane.b32.xlu0 %v4976, 1
    %v5080 = vpop.permute.xlu0 %5079
    %5081 = vrot.lane.b32.xlu0 %v4986, 1
    %v5082 = vpop.permute.xlu0 %5081
    %5083 = vrot.lane.b32.xlu0 %v4996, 1
    %v5084 = vpop.permute.xlu0 %5083
    %5085 = vrot.lane.b32.xlu0 %v5006, 1
    %v5086 = vpop.permute.xlu0 %5085
    %5087 = vrot.lane.b32.xlu0 %v5016, 1
    %v5088 = vpop.permute.xlu0 %5087
    %v5101 = vmul.f32 %v4777, %v5066
    %v5102 = vmul.f32 %v4778, %v5068
    %v5103 = vmul.f32 %v4779, %v5070
    %v5104 = vmul.f32 %v4780, %v5072
    %v5105 = vmul.f32 %v4781, %v5074
    %v5106 = vmul.f32 %v4782, %v5076
    %v5107 = vmul.f32 %v4783, %v5078
    %v5108 = vmul.f32 %v4784, %v5080
    %v5109 = vmul.f32 %v4785, %v5082
    %v5110 = vmul.f32 %v4786, %v5084
    %v5111 = vmul.f32 %v4787, %v5086
    %v5112 = vmul.f32 %v4788, %v5088
    %v5113 = vmul.f32 %v5101, %v4643
    %v5114 = vmul.f32 %v5102, %v4643
    %v5115 = vmul.f32 %v5103, %v4643
    %v5116 = vmul.f32 %v5104, %v4643
    %v5117 = vmul.f32 %v5105, %v4643
    %v5118 = vmul.f32 %v5106, %v4643
    %v5119 = vmul.f32 %v5107, %v4643
    %v5120 = vmul.f32 %v5108, %v4643
    %v5121 = vmul.f32 %v5109, %v4643
    %v5122 = vmul.f32 %v5110, %v4643
    %v5123 = vmul.f32 %v5111, %v4643
    %v5124 = vmul.f32 %v5112, %v4643
    %v5125 = vadd.f32 %v5113, %v4644
    %v5126 = vadd.f32 %v5114, %v4644
    %v5127 = vadd.f32 %v5115, %v4644
    %v5128 = vadd.f32 %v5116, %v4644
    %v5129 = vadd.f32 %v5117, %v4644
    %v5130 = vadd.f32 %v5118, %v4644
    %v5131 = vadd.f32 %v5119, %v4644
    %v5132 = vadd.f32 %v5120, %v4644
    %v5133 = vadd.f32 %v5121, %v4644
    %v5134 = vadd.f32 %v5122, %v4644
    %v5135 = vadd.f32 %v5123, %v4644
    %v5136 = vadd.f32 %v5124, %v4644
    %v5137 = vld [vmem:[%s19] sm:$0x3]
    %v5138 = vld [vmem:[%s20] sm:$0x1]
    %5140 = vset.pattern.permute.xlu0 0
    %5141 = vperm.xlu0 %5140, %v5041
    %v5142 = vpop.permute.xlu0 %5141
    %v5144 = vperm.slane %v5142, 0
    %5146 = vset.pattern.permute.xlu0 0
    %5147 = vperm.xlu0 %5146, %v5042
    %v5148 = vpop.permute.xlu0 %5147
    %v5150 = vperm.slane %v5148, 0
    %5152 = vset.pattern.permute.xlu0 0
    %5153 = vperm.xlu0 %5152, %v5043
    %v5154 = vpop.permute.xlu0 %5153
    %v5156 = vperm.slane %v5154, 0
    %5158 = vset.pattern.permute.xlu0 0
    %5159 = vperm.xlu0 %5158, %v5044
    %v5160 = vpop.permute.xlu0 %5159
    %v5162 = vperm.slane %v5160, 0
    %5164 = vset.pattern.permute.xlu0 0
    %5165 = vperm.xlu0 %5164, %v5045
    %v5166 = vpop.permute.xlu0 %5165
    %v5168 = vperm.slane %v5166, 0
    %5170 = vset.pattern.permute.xlu0 0
    %5171 = vperm.xlu0 %5170, %v5046
    %v5172 = vpop.permute.xlu0 %5171
    %v5174 = vperm.slane %v5172, 0
    %5176 = vset.pattern.permute.xlu0 0
    %5177 = vperm.xlu0 %5176, %v5047
    %v5178 = vpop.permute.xlu0 %5177
    %v5180 = vperm.slane %v5178, 0
    %5182 = vset.pattern.permute.xlu0 0
    %5183 = vperm.xlu0 %5182, %v5048
    %v5184 = vpop.permute.xlu0 %5183
    %v5186 = vperm.slane %v5184, 0
    %5188 = vset.pattern.permute.xlu0 0
    %5189 = vperm.xlu0 %5188, %v5049
    %v5190 = vpop.permute.xlu0 %5189
    %v5192 = vperm.slane %v5190, 0
    %5194 = vset.pattern.permute.xlu0 0
    %5195 = vperm.xlu0 %5194, %v5050
    %v5196 = vpop.permute.xlu0 %5195
    %v5198 = vperm.slane %v5196, 0
    %5200 = vset.pattern.permute.xlu0 0
    %5201 = vperm.xlu0 %5200, %v5051
    %v5202 = vpop.permute.xlu0 %5201
    %v5204 = vperm.slane %v5202, 0
    %5206 = vset.pattern.permute.xlu0 0
    %5207 = vperm.xlu0 %5206, %v5052
    %v5208 = vpop.permute.xlu0 %5207
    %v5210 = vperm.slane %v5208, 0
    %v5211 = vmul.f32 %v5144, %v5137
    %v5212 = vmul.f32 %v5150, %v5137
    %v5213 = vmul.f32 %v5156, %v5137
    %v5214 = vmul.f32 %v5162, %v5137
    %v5215 = vmul.f32 %v5168, %v5137
    %v5216 = vmul.f32 %v5174, %v5137
    %v5217 = vmul.f32 %v5180, %v5137
    %v5218 = vmul.f32 %v5186, %v5137
    %v5219 = vmul.f32 %v5192, %v5137
    %v5220 = vmul.f32 %v5198, %v5137
    %v5221 = vmul.f32 %v5204, %v5137
    %v5222 = vmul.f32 %v5210, %v5137
    %5224 = vset.pattern.permute.xlu0 1
    %5225 = vperm.xlu0 %5224, %v5125
    %v5226 = vpop.permute.xlu0 %5225
    %v5228 = vperm.slane %v5226, 0
    %5230 = vset.pattern.permute.xlu0 1
    %5231 = vperm.xlu0 %5230, %v5126
    %v5232 = vpop.permute.xlu0 %5231
    %v5234 = vperm.slane %v5232, 0
    %5236 = vset.pattern.permute.xlu0 1
    %5237 = vperm.xlu0 %5236, %v5127
    %v5238 = vpop.permute.xlu0 %5237
    %v5240 = vperm.slane %v5238, 0
    %5242 = vset.pattern.permute.xlu0 1
    %5243 = vperm.xlu0 %5242, %v5128
    %v5244 = vpop.permute.xlu0 %5243
    %v5246 = vperm.slane %v5244, 0
    %5248 = vset.pattern.permute.xlu0 1
    %5249 = vperm.xlu0 %5248, %v5129
    %v5250 = vpop.permute.xlu0 %5249
    %v5252 = vperm.slane %v5250, 0
    %5254 = vset.pattern.permute.xlu0 1
    %5255 = vperm.xlu0 %5254, %v5130
    %v5256 = vpop.permute.xlu0 %5255
    %v5258 = vperm.slane %v5256, 0
    %5260 = vset.pattern.permute.xlu0 1
    %5261 = vperm.xlu0 %5260, %v5131
    %v5262 = vpop.permute.xlu0 %5261
    %v5264 = vperm.slane %v5262, 0
    %5266 = vset.pattern.permute.xlu0 1
    %5267 = vperm.xlu0 %5266, %v5132
    %v5268 = vpop.permute.xlu0 %5267
    %v5270 = vperm.slane %v5268, 0
    %5272 = vset.pattern.permute.xlu0 1
    %5273 = vperm.xlu0 %5272, %v5133
    %v5274 = vpop.permute.xlu0 %5273
    %v5276 = vperm.slane %v5274, 0
    %5278 = vset.pattern.permute.xlu0 1
    %5279 = vperm.xlu0 %5278, %v5134
    %v5280 = vpop.permute.xlu0 %5279
    %v5282 = vperm.slane %v5280, 0
    %5284 = vset.pattern.permute.xlu0 1
    %5285 = vperm.xlu0 %5284, %v5135
    %v5286 = vpop.permute.xlu0 %5285
    %v5288 = vperm.slane %v5286, 0
    %5290 = vset.pattern.permute.xlu0 1
    %5291 = vperm.xlu0 %5290, %v5136
    %v5292 = vpop.permute.xlu0 %5291
    %v5294 = vperm.slane %v5292, 0
    %v5295 = vmul.f32 %v5228, %v5137
    %v5296 = vmul.f32 %v5234, %v5137
    %v5297 = vmul.f32 %v5240, %v5137
    %v5298 = vmul.f32 %v5246, %v5137
    %v5299 = vmul.f32 %v5252, %v5137
    %v5300 = vmul.f32 %v5258, %v5137
    %v5301 = vmul.f32 %v5264, %v5137
    %v5302 = vmul.f32 %v5270, %v5137
    %v5303 = vmul.f32 %v5276, %v5137
    %v5304 = vmul.f32 %v5282, %v5137
    %v5305 = vmul.f32 %v5288, %v5137
    %v5306 = vmul.f32 %v5294, %v5137
    %v5319 = vrot.slane %v5295, 1
    %v5320 = vrot.slane %v5296, 1
    %v5321 = vrot.slane %v5297, 1
    %v5322 = vrot.slane %v5298, 1
    %v5323 = vrot.slane %v5299, 1
    %v5324 = vrot.slane %v5300, 1
    %v5325 = vrot.slane %v5301, 1
    %v5326 = vrot.slane %v5302, 1
    %v5327 = vrot.slane %v5303, 1
    %v5328 = vrot.slane %v5304, 1
    %v5329 = vrot.slane %v5305, 1
    %v5330 = vrot.slane %v5306, 1
    %v5343 = vadd.f32 %v5211, %v5319
    %v5344 = vadd.f32 %v5212, %v5320
    %v5345 = vadd.f32 %v5213, %v5321
    %v5346 = vadd.f32 %v5214, %v5322
    %v5347 = vadd.f32 %v5215, %v5323
    %v5348 = vadd.f32 %v5216, %v5324
    %v5349 = vadd.f32 %v5217, %v5325
    %v5350 = vadd.f32 %v5218, %v5326
    %v5351 = vadd.f32 %v5219, %v5327
    %v5352 = vadd.f32 %v5220, %v5328
    %v5353 = vadd.f32 %v5221, %v5329
    %v5354 = vadd.f32 %v5222, %v5330
    %v5355 = vadd.f32 %v5343, %v5138
    %v5356 = vadd.f32 %v5344, %v5138
    %v5357 = vadd.f32 %v5345, %v5138
    %v5358 = vadd.f32 %v5346, %v5138
    %v5359 = vadd.f32 %v5347, %v5138
    %v5360 = vadd.f32 %v5348, %v5138
    %v5361 = vadd.f32 %v5349, %v5138
    %v5362 = vadd.f32 %v5350, %v5138
    %v5363 = vadd.f32 %v5351, %v5138
    %v5364 = vadd.f32 %v5352, %v5138
    %v5365 = vadd.f32 %v5353, %v5138
    %v5366 = vadd.f32 %v5354, %v5138
    %vm5367 = vcmask 24576
    %5368 = vst.msk [vmem:[%s21] sm:$0x1] %vm5367, %v5355
    %5369 = vst.msk [vmem:[%s21 + $0x1] sm:$0x1] %vm5367, %v5356
    %5370 = vst.msk [vmem:[%s21 + $0x2] sm:$0x1] %vm5367, %v5357
    %5371 = vst.msk [vmem:[%s21 + $0x3] sm:$0x1] %vm5367, %v5358
    %5372 = vst.msk [vmem:[%s21 + $0x4] sm:$0x1] %vm5367, %v5359
    %5373 = vst.msk [vmem:[%s21 + $0x5] sm:$0x1] %vm5367, %v5360
    %5374 = vst.msk [vmem:[%s21 + $0x6] sm:$0x1] %vm5367, %v5361
    %5375 = vst.msk [vmem:[%s21 + $0x7] sm:$0x1] %vm5367, %v5362
    %5376 = vst.msk [vmem:[%s21 + $0x8] sm:$0x1] %vm5367, %v5363
    %5377 = vst.msk [vmem:[%s21 + $0x9] sm:$0x1] %vm5367, %v5364
    %5378 = vst.msk [vmem:[%s21 + $0xa] sm:$0x1] %vm5367, %v5365
    %5379 = vst.msk [vmem:[%s21 + $0xb] sm:$0x1] %vm5367, %v5366
    // Predicated region
    $region110: #{tpu_custom_call.1} parent=1 // pred_check
      _
    $region111: #{tpu_custom_call.1} parent=1 // pred_check_branch
      %5381 = sbr.rel (0) target = $region113
    $region112: #{tpu_custom_call.1} parent=1 // pred_region
      _
    $region113: #{tpu_custom_call.1} parent=1 // pred_fallthru
      _
    // Predicated region
    $region114: #{tpu_custom_call.1} parent=1 // pred_check
      _
    $region115: #{tpu_custom_call.1} parent=1 // pred_check_branch
      %5383 = sbr.rel (0) target = $region117
    $region116: #{tpu_custom_call.1} parent=1 // pred_region
      _
    $region117: #{tpu_custom_call.1} parent=1 // pred_fallthru
      _
    %5384 = vsyncpa [#allocation3], 1
    %5385 = vsyncpa [#allocation5], 1
    %5386 = vsyncpa [#allocation8], 1
    %5387 = vsyncpa [#allocation11], 1

</llo_original>
